<compile_context>
chip_gen: v7x
topology: tpu7x:2x2x1
jax: 0.10.0
libtpu: 0.0.40
codegen_flags: <defaults>
</compile_context>

<pallas_src>
import functools
import math

import jax
import jax.numpy as jnp
from jax.experimental import pallas as pl
from jax.experimental.pallas import tpu as pltpu


_VMEM_LIMIT = 48 * 1024 * 1024  # safe on v5e/v6e (128 MiB) and v7x (64 MiB)


def _cparams(sem):
    return pltpu.CompilerParams(dimension_semantics=sem,
                                vmem_limit_bytes=_VMEM_LIMIT)


def _pick_tile(total, target):
    """Largest divisor of `total` that is <= target and a multiple of 8 (or total)."""
    if total <= target:
        return total
    for t in range(target, 7, -1):
        if total % t == 0 and t % 8 == 0:
            return t
    return total


# ----------------------------------------------------------------------------
# Pallas kernels
# ----------------------------------------------------------------------------

def _pdist_kernel(vq_ref, vr_ref, d_ref):
    # vq: (1, TVQ, 3) query points (column source); vr: (1, 3, V) all points (rows).
    vq = vq_ref[0]                                  # (TVQ, 3)
    vr = vr_ref[0]                                  # (3, V)
    dx = vq[:, 0:1] - vr[0:1, :]                    # (TVQ, V) via broadcast
    dy = vq[:, 1:2] - vr[1:2, :]
    dz = vq[:, 2:3] - vr[2:3, :]
    d_ref[0] = dx * dx + dy * dy + dz * dz


def _conv_surface_kernel(ndir_ref, dirs_ref, ssum_ref, out_ref, *, neighbor_num):
    # ndir: (1, n, TV, 3); dirs: (3, s*k) pre-normalized; ssum: (s*k, k) group-sum.
    d = dirs_ref[...]
    tmax = None
    for j in range(neighbor_num):                   # static unroll, small live set
        nd = ndir_ref[0, j]                         # (TV, 3)
        inv = jax.lax.rsqrt(
            jnp.maximum(jnp.sum(nd * nd, axis=-1, keepdims=True), 1e-24))
        theta = jnp.maximum(
            jnp.dot(nd * inv, d, preferred_element_type=jnp.float32), 0.0)  # MXU
        tmax = theta if tmax is None else jnp.maximum(tmax, theta)          # (TV, s*k)
    # Sum over support groups on the MXU (avoids strided 32-lane slices on the VPU).
    out_ref[0] = jnp.dot(tmax, ssum_ref[...], preferred_element_type=jnp.float32)


def _conv_layer_fuse_kernel(ndir_ref, dirs_ref, fsupp_ref, ctr_ref, ssum_ref,
                            out_ref, *, neighbor_num):
    # ndir: (1, n, TV, 3); fsupp: (1, n, TV, s*k); ctr: (1, TV, k); ssum: (s*k, k).
    d = dirs_ref[...]
    amax = None
    for j in range(neighbor_num):
        nd = ndir_ref[0, j]                         # (TV, 3)
        inv = jax.lax.rsqrt(
            jnp.maximum(jnp.sum(nd * nd, axis=-1, keepdims=True), 1e-24))
        theta = jnp.maximum(
            jnp.dot(nd * inv, d, preferred_element_type=jnp.float32), 0.0)  # (TV, s*k)
        act = theta * fsupp_ref[0, j]                                       # (TV, s*k)
        amax = act if amax is None else jnp.maximum(amax, act)
    out_ref[0] = ctr_ref[0] + jnp.dot(amax, ssum_ref[...],
                                      preferred_element_type=jnp.float32)


def _linear_bn_relu_kernel(x_ref, sc_ref, sh_ref, w_ref, b_ref, o_ref):
    # x: (TM, Cin) pre-BN features; BN affine + ReLU fused with x @ W + b.
    x = jnp.maximum(x_ref[...] * sc_ref[...] + sh_ref[...], 0.0)
    o_ref[...] = jnp.dot(x, w_ref[...], preferred_element_type=jnp.float32) + b_ref[...]


def _bn_relu_concat_kernel(xl_ref, scl_ref, shl_ref, xg_ref, scg_ref, shg_ref,
                           o_ref, *, k):
    # Fuses the two final BN+ReLU passes with the channel concat.
    o_ref[0, :, 0:k] = jnp.maximum(xl_ref[0] * scl_ref[...] + shl_ref[...], 0.0)
    o_ref[0, :, k:2 * k] = jnp.maximum(xg_ref[0] * scg_ref[...] + shg_ref[...], 0.0)


# ----------------------------------------------------------------------------
# Wrappers (pallas_call plumbing + JAX glue)
# ----------------------------------------------------------------------------

def pairwise_distance(vertices):
    B, V, _ = vertices.shape
    tvq = _pick_tile(V, 256)
    vt = jnp.transpose(vertices, (0, 2, 1))                    # (B, 3, V)
    return pl.pallas_call(
        _pdist_kernel,
        out_shape=jax.ShapeDtypeStruct((B, V, V), jnp.float32),
        grid=(B, V // tvq),
        in_specs=[pl.BlockSpec((1, tvq, 3), lambda b, q: (b, q, 0)),
                  pl.BlockSpec((1, 3, V), lambda b, q: (b, 0, 0))],
        out_specs=pl.BlockSpec((1, tvq, V), lambda b, q: (b, q, 0)),
        compiler_params=_cparams(("parallel", "parallel")),
    )(vertices, vt)


def get_neighbor_index(dist, neighbor_num):
    # gcn3d.get_neighbor_index: (k+1) smallest distances, drop self.
    _, idx = jax.lax.top_k(-dist, neighbor_num + 1)
    return idx[:, :, 1:]


def _gather_rows(table, idx):
    # table: (B, V, C), idx: (B, n, V) -> (B, n, V, C)
    return jax.vmap(lambda t, i: t[i])(table, idx)


def neighbor_directions(vertices, neighbor_index):
    # (B, V, 3), (B, V, n) -> neighbor-major (B, n, V, 3) directions.
    idx_t = jnp.transpose(neighbor_index, (0, 2, 1))           # (B, n, V)
    nbrs = _gather_rows(vertices, idx_t)                       # (B, n, V, 3)
    return nbrs - vertices[:, None, :, :]


def _normalize_columns(directions):
    dnorm = jnp.sqrt(jnp.sum(directions * directions, axis=0, keepdims=True))
    return directions / jnp.maximum(dnorm, 1e-12)              # F.normalize(dim=0)


def _support_sum_matrix(support_num, kernel_num):
    eye = jnp.eye(kernel_num, dtype=jnp.float32)
    return jnp.concatenate([eye] * support_num, axis=0)        # (s*k, k)


def _bn_scale_shift(x, gamma, beta, eps=1e-5):
    # Training-mode BatchNorm1d statistics (biased var) over (B, V) per channel.
    mean = jnp.mean(x, axis=(0, 1))
    var = jnp.mean(jnp.square(x - mean[None, None, :]), axis=(0, 1))
    scale = gamma * jax.lax.rsqrt(var + eps)
    shift = beta - mean * scale
    C = x.shape[-1]
    return scale.reshape(1, C), shift.reshape(1, C)


def conv_surface(ndir, directions, sum_mat, *, kernel_num):
    # ndir: (B, n, V, 3) neighbor-major directions -> (B, V, kernel_num) pre-BN.
    B, n, V, _ = ndir.shape
    sk = directions.shape[1]
    tv = _pick_tile(V, 128)
    dirs_norm = _normalize_columns(directions)
    kern = functools.partial(_conv_surface_kernel, neighbor_num=n)
    return pl.pallas_call(
        kern,
        out_shape=jax.ShapeDtypeStruct((B, V, kernel_num), jnp.float32),
        grid=(B, V // tv),
        in_specs=[pl.BlockSpec((1, n, tv, 3), lambda b, v: (b, 0, v, 0)),
                  pl.BlockSpec((3, sk), lambda b, v: (0, 0)),
                  pl.BlockSpec((sk, kernel_num), lambda b, v: (0, 0))],
        out_specs=pl.BlockSpec((1, tv, kernel_num), lambda b, v: (b, v, 0)),
        compiler_params=_cparams(("parallel", "parallel")),
    )(ndir, dirs_norm, sum_mat)


def conv_layer(ndir, feat_raw, bn_scale, bn_shift, weights, bias, directions,
               neighbor_index, sum_mat, *, support_num, out_channel):
    # Conv_layer with the g0 BN+ReLU fused into its input matmul.
    B, n, V, _ = ndir.shape
    in_channel = feat_raw.shape[-1]
    total = (support_num + 1) * out_channel
    sk = support_num * out_channel

    # --- fused BN+ReLU + (x @ W + b), tiled over M = B*V, weights resident ---
    M = B * V
    tm = _pick_tile(M, 256)
    x2d = feat_raw.reshape(M, in_channel)
    feat_out = pl.pallas_call(
        _linear_bn_relu_kernel,
        out_shape=jax.ShapeDtypeStruct((M, total), jnp.float32),
        grid=(M // tm,),
        in_specs=[pl.BlockSpec((tm, in_channel), lambda m: (m, 0)),
                  pl.BlockSpec((1, in_channel), lambda m: (0, 0)),
                  pl.BlockSpec((1, in_channel), lambda m: (0, 0)),
                  pl.BlockSpec((in_channel, total), lambda m: (0, 0)),
                  pl.BlockSpec((1, total), lambda m: (0, 0))],
        out_specs=pl.BlockSpec((tm, total), lambda m: (m, 0)),
        compiler_params=_cparams(("parallel",)),
    )(x2d, bn_scale, bn_shift, weights, bias.reshape(1, total))
    feat_out = feat_out.reshape(B, V, total)

    feature_center = feat_out[:, :, :out_channel]              # (B, V, k)
    feature_support = feat_out[:, :, out_channel:]             # (B, V, s*k)
    # TODO(synk): move this row-gather into the fuse kernel (jnp.take on a
    # VMEM-resident (V, s*k) block) once Mosaic supports arbitrary-row gathers;
    # for now XLA's gather materializes (B, n, V, s*k) once in HBM.
    idx_t = jnp.transpose(neighbor_index, (0, 2, 1))           # (B, n, V)
    fsupp = _gather_rows(feature_support, idx_t)               # (B, n, V, s*k)

    dirs_norm = _normalize_columns(directions)
    tv = _pick_tile(V, 128)
    kern = functools.partial(_conv_layer_fuse_kernel, neighbor_num=n)
    return pl.pallas_call(
        kern,
        out_shape=jax.ShapeDtypeStruct((B, V, out_channel), jnp.float32),
        grid=(B, V // tv),
        in_specs=[pl.BlockSpec((1, n, tv, 3), lambda b, v: (b, 0, v, 0)),
                  pl.BlockSpec((3, sk), lambda b, v: (0, 0)),
                  pl.BlockSpec((1, n, tv, sk), lambda b, v: (b, 0, v, 0)),
                  pl.BlockSpec((1, tv, out_channel), lambda b, v: (b, v, 0)),
                  pl.BlockSpec((sk, out_channel), lambda b, v: (0, 0))],
        out_specs=pl.BlockSpec((1, tv, out_channel), lambda b, v: (b, v, 0)),
        compiler_params=_cparams(("parallel", "parallel")),
    )(ndir, dirs_norm, fsupp, feature_center, sum_mat)


def bn_relu_concat(raw_l, sc_l, sh_l, raw_g, sc_g, sh_g):
    B, V, k = raw_l.shape
    tv = _pick_tile(V, 256)
    kern = functools.partial(_bn_relu_concat_kernel, k=k)
    return pl.pallas_call(
        kern,
        out_shape=jax.ShapeDtypeStruct((B, V, 2 * k), jnp.float32),
        grid=(B, V // tv),
        in_specs=[pl.BlockSpec((1, tv, k), lambda b, v: (b, v, 0)),
                  pl.BlockSpec((1, k), lambda b, v: (0, 0)),
                  pl.BlockSpec((1, k), lambda b, v: (0, 0)),
                  pl.BlockSpec((1, tv, k), lambda b, v: (b, v, 0)),
                  pl.BlockSpec((1, k), lambda b, v: (0, 0)),
                  pl.BlockSpec((1, k), lambda b, v: (0, 0))],
        out_specs=pl.BlockSpec((1, tv, 2 * k), lambda b, v: (b, v, 0)),
        compiler_params=_cparams(("parallel", "parallel")),
    )(raw_l, sc_l, sh_l, raw_g, sc_g, sh_g)


def gcn_fusion_surface_forward(vertices, params, *, dim_input, support_num,
                               neighbor_num_l, neighbor_num_g):
    k = dim_input

    # Pairwise distances once, reused for both k-NN queries.
    dist = pairwise_distance(vertices)
    idx_l = get_neighbor_index(dist, neighbor_num_l)
    idx_g = get_neighbor_index(dist, neighbor_num_g)

    ndir_l = neighbor_directions(vertices, idx_l)              # (B, n_l, V, 3)
    ndir_g = neighbor_directions(vertices, idx_g)              # (B, n_g, V, 3)
    sum_mat = _support_sum_matrix(support_num, k)              # (s*k, k)

    # Local branch: Conv_surface (pre-BN).
    raw_l = conv_surface(ndir_l, params["conv_l_dirs"], sum_mat, kernel_num=k)
    sc_l, sh_l = _bn_scale_shift(raw_l, params["bn_l_gamma"], params["bn_l_beta"])

    # Global branch: Conv_surface (pre-BN), BN+ReLU fused into conv_g1's matmul.
    raw_g0 = conv_surface(ndir_g, params["conv_g0_dirs"], sum_mat, kernel_num=k)
    sc_g0, sh_g0 = _bn_scale_shift(raw_g0, params["bn_g0_gamma"], params["bn_g0_beta"])

    raw_g1 = conv_layer(ndir_g, raw_g0, sc_g0, sh_g0,
                        params["conv_g1_w"], params["conv_g1_b"],
                        params["conv_g1_dirs"], idx_g, sum_mat,
                        support_num=support_num, out_channel=k)
    sc_g1, sh_g1 = _bn_scale_shift(raw_g1, params["bn_g1_gamma"], params["bn_g1_beta"])

    # Final BN+ReLU on both branches fused with the concat -> (B, V, 2*k).
    return bn_relu_concat(raw_l, sc_l, sh_l, raw_g1, sc_g1, sh_g1)


# ----------------------------------------------------------------------------
# Deterministic parameter init (matches the PyTorch __init__ shapes / stdv)
# ----------------------------------------------------------------------------

def init_params(key, dim_input, support_num):
    ks = jax.random.split(key, 5)
    stdv_s = 1.0 / math.sqrt(support_num * dim_input)          # Conv_surface
    stdv_c = 1.0 / math.sqrt(dim_input * (support_num + 1))    # Conv_layer
    return {
        "conv_l_dirs": jax.random.uniform(
            ks[0], (3, support_num * dim_input), jnp.float32, -stdv_s, stdv_s),
        "conv_g0_dirs": jax.random.uniform(
            ks[1], (3, support_num * dim_input), jnp.float32, -stdv_s, stdv_s),
        "conv_g1_w": jax.random.uniform(
            ks[2], (dim_input, (support_num + 1) * dim_input), jnp.float32, -stdv_c, stdv_c),
        "conv_g1_b": jax.random.uniform(
            ks[3], ((support_num + 1) * dim_input,), jnp.float32, -stdv_c, stdv_c),
        "conv_g1_dirs": jax.random.uniform(
            ks[4], (3, support_num * dim_input), jnp.float32, -stdv_c, stdv_c),
        "bn_l_gamma": jnp.ones((dim_input,), jnp.float32),
        "bn_l_beta": jnp.zeros((dim_input,), jnp.float32),
        "bn_g0_gamma": jnp.ones((dim_input,), jnp.float32),
        "bn_g0_beta": jnp.zeros((dim_input,), jnp.float32),
        "bn_g1_gamma": jnp.ones((dim_input,), jnp.float32),
        "bn_g1_beta": jnp.zeros((dim_input,), jnp.float32),
    }


if __name__ == "__main__":
    B, V = 2, 64                     # batch, vertices (point cloud)
    dim_input = 32                   # kernel_num / feature channels (=> s*k = 128)
    support_num = 4
    neighbor_num_l, neighbor_num_g = 10, 50

    key = jax.random.PRNGKey(0)
    kv, kp = jax.random.split(key)
    vertices = jax.random.normal(kv, (B, V, 3), dtype=jnp.float32)
    params = init_params(kp, dim_input, support_num)

    fwd = jax.jit(functools.partial(
        gcn_fusion_surface_forward,
        dim_input=dim_input, support_num=support_num,
        neighbor_num_l=neighbor_num_l, neighbor_num_g=neighbor_num_g))

    out = jax.block_until_ready(fwd(vertices, params))

    assert out.shape == (B, V, 2 * dim_input), out.shape
    assert bool(jnp.all(jnp.isfinite(out)))
    print("KERNEL_OK")
</pallas_src>

<mosaic_0001>
module attributes {stable_mosaic.version = 11 : i64} {
  func.func @_pdist_kernel(%arg0: i32, %arg1: i32, %arg2: memref<1x64x3xf32, #tpu.memory_space<vmem>>, %arg3: memref<1x3x64xf32, #tpu.memory_space<vmem>>, %arg4: memref<1x64x64xf32, #tpu.memory_space<vmem>>) attributes {dimension_semantics = [#tpu.dimension_semantics<parallel>, #tpu.dimension_semantics<parallel>], iteration_bounds = array<i64: 2, 1>, scalar_prefetch = 0 : i64, scratch_operands = 0 : i64, tpu.core_type = #tpu.core_type<tc>, window_params = [{transform_indices = @transform_0, window_bounds = array<i64: 1, 64, 3>}, {transform_indices = @transform_1, window_bounds = array<i64: 1, 3, 64>}, {transform_indices = @transform_2, window_bounds = array<i64: 1, 64, 64>}]} {
    %c0 = arith.constant 0 : index
    %c0_0 = arith.constant 0 : index
    %c0_1 = arith.constant 0 : index
    %0 = vector.load %arg2[%c0, %c0_0, %c0_1] : memref<1x64x3xf32, #tpu.memory_space<vmem>>, vector<1x64x3xf32>
    %1 = vector.shape_cast %0 : vector<1x64x3xf32> to vector<64x3xf32>
    %c0_2 = arith.constant 0 : index
    %c0_3 = arith.constant 0 : index
    %c0_4 = arith.constant 0 : index
    %2 = vector.load %arg3[%c0_2, %c0_3, %c0_4] : memref<1x3x64xf32, #tpu.memory_space<vmem>>, vector<1x3x64xf32>
    %3 = vector.shape_cast %2 : vector<1x3x64xf32> to vector<3x64xf32>
    %4 = vector.extract_strided_slice %1 {offsets = [0, 0], sizes = [64, 1], strides = [1, 1]} : vector<64x3xf32> to vector<64x1xf32>
    %5 = vector.extract_strided_slice %3 {offsets = [0, 0], sizes = [1, 64], strides = [1, 1]} : vector<3x64xf32> to vector<1x64xf32>
    %6 = vector.broadcast %4 : vector<64x1xf32> to vector<64x64xf32>
    %7 = vector.broadcast %5 : vector<1x64xf32> to vector<64x64xf32>
    %8 = arith.subf %6, %7 : vector<64x64xf32>
    %9 = vector.extract_strided_slice %1 {offsets = [0, 1], sizes = [64, 1], strides = [1, 1]} : vector<64x3xf32> to vector<64x1xf32>
    %10 = vector.extract_strided_slice %3 {offsets = [1, 0], sizes = [1, 64], strides = [1, 1]} : vector<3x64xf32> to vector<1x64xf32>
    %11 = vector.broadcast %9 : vector<64x1xf32> to vector<64x64xf32>
    %12 = vector.broadcast %10 : vector<1x64xf32> to vector<64x64xf32>
    %13 = arith.subf %11, %12 : vector<64x64xf32>
    %14 = vector.extract_strided_slice %1 {offsets = [0, 2], sizes = [64, 1], strides = [1, 1]} : vector<64x3xf32> to vector<64x1xf32>
    %15 = vector.extract_strided_slice %3 {offsets = [2, 0], sizes = [1, 64], strides = [1, 1]} : vector<3x64xf32> to vector<1x64xf32>
    %16 = vector.broadcast %14 : vector<64x1xf32> to vector<64x64xf32>
    %17 = vector.broadcast %15 : vector<1x64xf32> to vector<64x64xf32>
    %18 = arith.subf %16, %17 : vector<64x64xf32>
    %19 = arith.mulf %8, %8 : vector<64x64xf32>
    %20 = arith.mulf %13, %13 : vector<64x64xf32>
    %21 = arith.addf %19, %20 : vector<64x64xf32>
    %22 = arith.mulf %18, %18 : vector<64x64xf32>
    %23 = arith.addf %21, %22 : vector<64x64xf32>
    %c0_5 = arith.constant 0 : index
    %c0_6 = arith.constant 0 : index
    %c0_7 = arith.constant 0 : index
    %24 = vector.load %arg4[%c0_5, %c0_6, %c0_7] : memref<1x64x64xf32, #tpu.memory_space<vmem>>, vector<1x64x64xf32>
    %25 = vector.shape_cast %24 : vector<1x64x64xf32> to vector<64x64xf32>
    %26 = vector.shape_cast %23 : vector<64x64xf32> to vector<1x64x64xf32>
    tpu.vector_store %arg4[%c0_5, %c0_6, %c0_7], %26 {strides = array<i32>} : memref<1x64x64xf32, #tpu.memory_space<vmem>>, vector<1x64x64xf32>,
    return
  }
  func.func @transform_0(%arg0: i32, %arg1: i32) -> (i32, i32, i32) {
    %c0_i32 = arith.constant 0 : i32
    %c0_i32_0 = arith.constant 0 : i32
    return %arg0, %arg1, %c0_i32 : i32, i32, i32
  }
  func.func @transform_1(%arg0: i32, %arg1: i32) -> (i32, i32, i32) {
    %c0_i32 = arith.constant 0 : i32
    %c0_i32_0 = arith.constant 0 : i32
    %c0_i32_1 = arith.constant 0 : i32
    return %arg0, %c0_i32, %c0_i32_0 : i32, i32, i32
  }
  func.func @transform_2(%arg0: i32, %arg1: i32) -> (i32, i32, i32) {
    %c0_i32 = arith.constant 0 : i32
    %c0_i32_0 = arith.constant 0 : i32
    return %arg0, %arg1, %c0_i32 : i32, i32, i32
  }
}

module attributes {stable_mosaic.version = 11 : i64} {
  func.func @_conv_surface_kernel(%arg0: i32, %arg1: i32, %arg2: memref<1x10x64x3xf32, #tpu.memory_space<vmem>>, %arg3: memref<3x128xf32, #tpu.memory_space<vmem>>, %arg4: memref<128x32xf32, #tpu.memory_space<vmem>>, %arg5: memref<1x64x32xf32, #tpu.memory_space<vmem>>) attributes {dimension_semantics = [#tpu.dimension_semantics<parallel>, #tpu.dimension_semantics<parallel>], iteration_bounds = array<i64: 2, 1>, scalar_prefetch = 0 : i64, scratch_operands = 0 : i64, tpu.core_type = #tpu.core_type<tc>, window_params = [{transform_indices = @transform_0, window_bounds = array<i64: 1, 10, 64, 3>}, {pipeline_mode = #tpu.pipeline_mode<synchronous>, transform_indices = @transform_1, window_bounds = array<i64: 3, 128>}, {pipeline_mode = #tpu.pipeline_mode<synchronous>, transform_indices = @transform_2, window_bounds = array<i64: 128, 32>}, {transform_indices = @transform_3, window_bounds = array<i64: 1, 64, 32>}]} {
    %c0 = arith.constant 0 : index
    %c0_0 = arith.constant 0 : index
    %0 = vector.load %arg3[%c0, %c0_0] : memref<3x128xf32, #tpu.memory_space<vmem>>, vector<3x128xf32>
    %c0_1 = arith.constant 0 : index
    %c0_2 = arith.constant 0 : index
    %c0_3 = arith.constant 0 : index
    %c0_4 = arith.constant 0 : index
    %1 = vector.load %arg2[%c0_1, %c0_2, %c0_3, %c0_4] : memref<1x10x64x3xf32, #tpu.memory_space<vmem>>, vector<1x1x64x3xf32>
    %2 = vector.shape_cast %1 : vector<1x1x64x3xf32> to vector<64x3xf32>
    %3 = arith.mulf %2, %2 : vector<64x3xf32>
    %cst = arith.constant dense<0.000000e+00> : vector<64xf32>
    %4 = vector.multi_reduction <add>, %3, %cst [1] : vector<64x3xf32> to vector<64xf32>
    %5 = vector.shape_cast %4 : vector<64xf32> to vector<64x1xf32>
    %cst_5 = arith.constant 1.000000e-24 : f32
    %6 = vector.broadcast %cst_5 : f32 to vector<64x1xf32>
    %7 = arith.maximumf %5, %6 : vector<64x1xf32>
    %8 = math.rsqrt %7 : vector<64x1xf32>
    %9 = vector.broadcast %8 : vector<64x1xf32> to vector<64x3xf32>
    %10 = arith.mulf %2, %9 : vector<64x3xf32>
    %cst_6 = arith.constant dense<0.000000e+00> : vector<64x128xf32>
    %11 = tpu.matmul %10, %0, %cst_6 {dimension_numbers = #tpu.dot_dimension_numbers<[1], [0], [0], [1], [0, 0, 1, 1], [], []>} : vector<64x3xf32>, vector<3x128xf32>, vector<64x128xf32> -> vector<64x128xf32>
    %cst_7 = arith.constant 0.000000e+00 : f32
    %12 = vector.broadcast %cst_7 : f32 to vector<64x128xf32>
    %13 = arith.maximumf %11, %12 : vector<64x128xf32>
    %c0_8 = arith.constant 0 : index
    %c1 = arith.constant 1 : index
    %c0_9 = arith.constant 0 : index
    %c0_10 = arith.constant 0 : index
    %14 = vector.load %arg2[%c0_8, %c1, %c0_9, %c0_10] : memref<1x10x64x3xf32, #tpu.memory_space<vmem>>, vector<1x1x64x3xf32>
    %15 = vector.shape_cast %14 : vector<1x1x64x3xf32> to vector<64x3xf32>
    %16 = arith.mulf %15, %15 : vector<64x3xf32>
    %cst_11 = arith.constant dense<0.000000e+00> : vector<64xf32>
    %17 = vector.multi_reduction <add>, %16, %cst_11 [1] : vector<64x3xf32> to vector<64xf32>
    %18 = vector.shape_cast %17 : vector<64xf32> to vector<64x1xf32>
    %cst_12 = arith.constant 1.000000e-24 : f32
    %19 = vector.broadcast %cst_12 : f32 to vector<64x1xf32>
    %20 = arith.maximumf %18, %19 : vector<64x1xf32>
    %21 = math.rsqrt %20 : vector<64x1xf32>
    %22 = vector.broadcast %21 : vector<64x1xf32> to vector<64x3xf32>
    %23 = arith.mulf %15, %22 : vector<64x3xf32>
    %cst_13 = arith.constant dense<0.000000e+00> : vector<64x128xf32>
    %24 = tpu.matmul %23, %0, %cst_13 {dimension_numbers = #tpu.dot_dimension_numbers<[1], [0], [0], [1], [0, 0, 1, 1], [], []>} : vector<64x3xf32>, vector<3x128xf32>, vector<64x128xf32> -> vector<64x128xf32>
    %cst_14 = arith.constant 0.000000e+00 : f32
    %25 = vector.broadcast %cst_14 : f32 to vector<64x128xf32>
    %26 = arith.maximumf %24, %25 : vector<64x128xf32>
    %27 = arith.maximumf %13, %26 : vector<64x128xf32>
    %c0_15 = arith.constant 0 : index
    %c2 = arith.constant 2 : index
    %c0_16 = arith.constant 0 : index
    %c0_17 = arith.constant 0 : index
    %28 = vector.load %arg2[%c0_15, %c2, %c0_16, %c0_17] : memref<1x10x64x3xf32, #tpu.memory_space<vmem>>, vector<1x1x64x3xf32>
    %29 = vector.shape_cast %28 : vector<1x1x64x3xf32> to vector<64x3xf32>
    %30 = arith.mulf %29, %29 : vector<64x3xf32>
    %cst_18 = arith.constant dense<0.000000e+00> : vector<64xf32>
    %31 = vector.multi_reduction <add>, %30, %cst_18 [1] : vector<64x3xf32> to vector<64xf32>
    %32 = vector.shape_cast %31 : vector<64xf32> to vector<64x1xf32>
    %cst_19 = arith.constant 1.000000e-24 : f32
    %33 = vector.broadcast %cst_19 : f32 to vector<64x1xf32>
    %34 = arith.maximumf %32, %33 : vector<64x1xf32>
    %35 = math.rsqrt %34 : vector<64x1xf32>
    %36 = vector.broadcast %35 : vector<64x1xf32> to vector<64x3xf32>
    %37 = arith.mulf %29, %36 : vector<64x3xf32>
    %cst_20 = arith.constant dense<0.000000e+00> : vector<64x128xf32>
    %38 = tpu.matmul %37, %0, %cst_20 {dimension_numbers = #tpu.dot_dimension_numbers<[1], [0], [0], [1], [0, 0, 1, 1], [], []>} : vector<64x3xf32>, vector<3x128xf32>, vector<64x128xf32> -> vector<64x128xf32>
    %cst_21 = arith.constant 0.000000e+00 : f32
    %39 = vector.broadcast %cst_21 : f32 to vector<64x128xf32>
    %40 = arith.maximumf %38, %39 : vector<64x128xf32>
    %41 = arith.maximumf %27, %40 : vector<64x128xf32>
    %c0_22 = arith.constant 0 : index
    %c3 = arith.constant 3 : index
    %c0_23 = arith.constant 0 : index
    %c0_24 = arith.constant 0 : index
    %42 = vector.load %arg2[%c0_22, %c3, %c0_23, %c0_24] : memref<1x10x64x3xf32, #tpu.memory_space<vmem>>, vector<1x1x64x3xf32>
    %43 = vector.shape_cast %42 : vector<1x1x64x3xf32> to vector<64x3xf32>
    %44 = arith.mulf %43, %43 : vector<64x3xf32>
    %cst_25 = arith.constant dense<0.000000e+00> : vector<64xf32>
    %45 = vector.multi_reduction <add>, %44, %cst_25 [1] : vector<64x3xf32> to vector<64xf32>
    %46 = vector.shape_cast %45 : vector<64xf32> to vector<64x1xf32>
    %cst_26 = arith.constant 1.000000e-24 : f32
    %47 = vector.broadcast %cst_26 : f32 to vector<64x1xf32>
    %48 = arith.maximumf %46, %47 : vector<64x1xf32>
    %49 = math.rsqrt %48 : vector<64x1xf32>
    %50 = vector.broadcast %49 : vector<64x1xf32> to vector<64x3xf32>
    %51 = arith.mulf %43, %50 : vector<64x3xf32>
    %cst_27 = arith.constant dense<0.000000e+00> : vector<64x128xf32>
    %52 = tpu.matmul %51, %0, %cst_27 {dimension_numbers = #tpu.dot_dimension_numbers<[1], [0], [0], [1], [0, 0, 1, 1], [], []>} : vector<64x3xf32>, vector<3x128xf32>, vector<64x128xf32> -> vector<64x128xf32>
    %cst_28 = arith.constant 0.000000e+00 : f32
    %53 = vector.broadcast %cst_28 : f32 to vector<64x128xf32>
    %54 = arith.maximumf %52, %53 : vector<64x128xf32>
    %55 = arith.maximumf %41, %54 : vector<64x128xf32>
    %c0_29 = arith.constant 0 : index
    %c4 = arith.constant 4 : index
    %c0_30 = arith.constant 0 : index
    %c0_31 = arith.constant 0 : index
    %56 = vector.load %arg2[%c0_29, %c4, %c0_30, %c0_31] : memref<1x10x64x3xf32, #tpu.memory_space<vmem>>, vector<1x1x64x3xf32>
    %57 = vector.shape_cast %56 : vector<1x1x64x3xf32> to vector<64x3xf32>
    %58 = arith.mulf %57, %57 : vector<64x3xf32>
    %cst_32 = arith.constant dense<0.000000e+00> : vector<64xf32>
    %59 = vector.multi_reduction <add>, %58, %cst_32 [1] : vector<64x3xf32> to vector<64xf32>
    %60 = vector.shape_cast %59 : vector<64xf32> to vector<64x1xf32>
    %cst_33 = arith.constant 1.000000e-24 : f32
    %61 = vector.broadcast %cst_33 : f32 to vector<64x1xf32>
    %62 = arith.maximumf %60, %61 : vector<64x1xf32>
    %63 = math.rsqrt %62 : vector<64x1xf32>
    %64 = vector.broadcast %63 : vector<64x1xf32> to vector<64x3xf32>
    %65 = arith.mulf %57, %64 : vector<64x3xf32>
    %cst_34 = arith.constant dense<0.000000e+00> : vector<64x128xf32>
    %66 = tpu.matmul %65, %0, %cst_34 {dimension_numbers = #tpu.dot_dimension_numbers<[1], [0], [0], [1], [0, 0, 1, 1], [], []>} : vector<64x3xf32>, vector<3x128xf32>, vector<64x128xf32> -> vector<64x128xf32>
    %cst_35 = arith.constant 0.000000e+00 : f32
    %67 = vector.broadcast %cst_35 : f32 to vector<64x128xf32>
    %68 = arith.maximumf %66, %67 : vector<64x128xf32>
    %69 = arith.maximumf %55, %68 : vector<64x128xf32>
    %c0_36 = arith.constant 0 : index
    %c5 = arith.constant 5 : index
    %c0_37 = arith.constant 0 : index
    %c0_38 = arith.constant 0 : index
    %70 = vector.load %arg2[%c0_36, %c5, %c0_37, %c0_38] : memref<1x10x64x3xf32, #tpu.memory_space<vmem>>, vector<1x1x64x3xf32>
    %71 = vector.shape_cast %70 : vector<1x1x64x3xf32> to vector<64x3xf32>
    %72 = arith.mulf %71, %71 : vector<64x3xf32>
    %cst_39 = arith.constant dense<0.000000e+00> : vector<64xf32>
    %73 = vector.multi_reduction <add>, %72, %cst_39 [1] : vector<64x3xf32> to vector<64xf32>
    %74 = vector.shape_cast %73 : vector<64xf32> to vector<64x1xf32>
    %cst_40 = arith.constant 1.000000e-24 : f32
    %75 = vector.broadcast %cst_40 : f32 to vector<64x1xf32>
    %76 = arith.maximumf %74, %75 : vector<64x1xf32>
    %77 = math.rsqrt %76 : vector<64x1xf32>
    %78 = vector.broadcast %77 : vector<64x1xf32> to vector<64x3xf32>
    %79 = arith.mulf %71, %78 : vector<64x3xf32>
    %cst_41 = arith.constant dense<0.000000e+00> : vector<64x128xf32>
    %80 = tpu.matmul %79, %0, %cst_41 {dimension_numbers = #tpu.dot_dimension_numbers<[1], [0], [0], [1], [0, 0, 1, 1], [], []>} : vector<64x3xf32>, vector<3x128xf32>, vector<64x128xf32> -> vector<64x128xf32>
    %cst_42 = arith.constant 0.000000e+00 : f32
    %81 = vector.broadcast %cst_42 : f32 to vector<64x128xf32>
    %82 = arith.maximumf %80, %81 : vector<64x128xf32>
    %83 = arith.maximumf %69, %82 : vector<64x128xf32>
    %c0_43 = arith.constant 0 : index
    %c6 = arith.constant 6 : index
    %c0_44 = arith.constant 0 : index
    %c0_45 = arith.constant 0 : index
    %84 = vector.load %arg2[%c0_43, %c6, %c0_44, %c0_45] : memref<1x10x64x3xf32, #tpu.memory_space<vmem>>, vector<1x1x64x3xf32>
    %85 = vector.shape_cast %84 : vector<1x1x64x3xf32> to vector<64x3xf32>
    %86 = arith.mulf %85, %85 : vector<64x3xf32>
    %cst_46 = arith.constant dense<0.000000e+00> : vector<64xf32>
    %87 = vector.multi_reduction <add>, %86, %cst_46 [1] : vector<64x3xf32> to vector<64xf32>
    %88 = vector.shape_cast %87 : vector<64xf32> to vector<64x1xf32>
    %cst_47 = arith.constant 1.000000e-24 : f32
    %89 = vector.broadcast %cst_47 : f32 to vector<64x1xf32>
    %90 = arith.maximumf %88, %89 : vector<64x1xf32>
    %91 = math.rsqrt %90 : vector<64x1xf32>
    %92 = vector.broadcast %91 : vector<64x1xf32> to vector<64x3xf32>
    %93 = arith.mulf %85, %92 : vector<64x3xf32>
    %cst_48 = arith.constant dense<0.000000e+00> : vector<64x128xf32>
    %94 = tpu.matmul %93, %0, %cst_48 {dimension_numbers = #tpu.dot_dimension_numbers<[1], [0], [0], [1], [0, 0, 1, 1], [], []>} : vector<64x3xf32>, vector<3x128xf32>, vector<64x128xf32> -> vector<64x128xf32>
    %cst_49 = arith.constant 0.000000e+00 : f32
    %95 = vector.broadcast %cst_49 : f32 to vector<64x128xf32>
    %96 = arith.maximumf %94, %95 : vector<64x128xf32>
    %97 = arith.maximumf %83, %96 : vector<64x128xf32>
    %c0_50 = arith.constant 0 : index
    %c7 = arith.constant 7 : index
    %c0_51 = arith.constant 0 : index
    %c0_52 = arith.constant 0 : index
    %98 = vector.load %arg2[%c0_50, %c7, %c0_51, %c0_52] : memref<1x10x64x3xf32, #tpu.memory_space<vmem>>, vector<1x1x64x3xf32>
    %99 = vector.shape_cast %98 : vector<1x1x64x3xf32> to vector<64x3xf32>
    %100 = arith.mulf %99, %99 : vector<64x3xf32>
    %cst_53 = arith.constant dense<0.000000e+00> : vector<64xf32>
    %101 = vector.multi_reduction <add>, %100, %cst_53 [1] : vector<64x3xf32> to vector<64xf32>
    %102 = vector.shape_cast %101 : vector<64xf32> to vector<64x1xf32>
    %cst_54 = arith.constant 1.000000e-24 : f32
    %103 = vector.broadcast %cst_54 : f32 to vector<64x1xf32>
    %104 = arith.maximumf %102, %103 : vector<64x1xf32>
    %105 = math.rsqrt %104 : vector<64x1xf32>
    %106 = vector.broadcast %105 : vector<64x1xf32> to vector<64x3xf32>
    %107 = arith.mulf %99, %106 : vector<64x3xf32>
    %cst_55 = arith.constant dense<0.000000e+00> : vector<64x128xf32>
    %108 = tpu.matmul %107, %0, %cst_55 {dimension_numbers = #tpu.dot_dimension_numbers<[1], [0], [0], [1], [0, 0, 1, 1], [], []>} : vector<64x3xf32>, vector<3x128xf32>, vector<64x128xf32> -> vector<64x128xf32>
    %cst_56 = arith.constant 0.000000e+00 : f32
    %109 = vector.broadcast %cst_56 : f32 to vector<64x128xf32>
    %110 = arith.maximumf %108, %109 : vector<64x128xf32>
    %111 = arith.maximumf %97, %110 : vector<64x128xf32>
    %c0_57 = arith.constant 0 : index
    %c8 = arith.constant 8 : index
    %c0_58 = arith.constant 0 : index
    %c0_59 = arith.constant 0 : index
    %112 = vector.load %arg2[%c0_57, %c8, %c0_58, %c0_59] : memref<1x10x64x3xf32, #tpu.memory_space<vmem>>, vector<1x1x64x3xf32>
    %113 = vector.shape_cast %112 : vector<1x1x64x3xf32> to vector<64x3xf32>
    %114 = arith.mulf %113, %113 : vector<64x3xf32>
    %cst_60 = arith.constant dense<0.000000e+00> : vector<64xf32>
    %115 = vector.multi_reduction <add>, %114, %cst_60 [1] : vector<64x3xf32> to vector<64xf32>
    %116 = vector.shape_cast %115 : vector<64xf32> to vector<64x1xf32>
    %cst_61 = arith.constant 1.000000e-24 : f32
    %117 = vector.broadcast %cst_61 : f32 to vector<64x1xf32>
    %118 = arith.maximumf %116, %117 : vector<64x1xf32>
    %119 = math.rsqrt %118 : vector<64x1xf32>
    %120 = vector.broadcast %119 : vector<64x1xf32> to vector<64x3xf32>
    %121 = arith.mulf %113, %120 : vector<64x3xf32>
    %cst_62 = arith.constant dense<0.000000e+00> : vector<64x128xf32>
    %122 = tpu.matmul %121, %0, %cst_62 {dimension_numbers = #tpu.dot_dimension_numbers<[1], [0], [0], [1], [0, 0, 1, 1], [], []>} : vector<64x3xf32>, vector<3x128xf32>, vector<64x128xf32> -> vector<64x128xf32>
    %cst_63 = arith.constant 0.000000e+00 : f32
    %123 = vector.broadcast %cst_63 : f32 to vector<64x128xf32>
    %124 = arith.maximumf %122, %123 : vector<64x128xf32>
    %125 = arith.maximumf %111, %124 : vector<64x128xf32>
    %c0_64 = arith.constant 0 : index
    %c9 = arith.constant 9 : index
    %c0_65 = arith.constant 0 : index
    %c0_66 = arith.constant 0 : index
    %126 = vector.load %arg2[%c0_64, %c9, %c0_65, %c0_66] : memref<1x10x64x3xf32, #tpu.memory_space<vmem>>, vector<1x1x64x3xf32>
    %127 = vector.shape_cast %126 : vector<1x1x64x3xf32> to vector<64x3xf32>
    %128 = arith.mulf %127, %127 : vector<64x3xf32>
    %cst_67 = arith.constant dense<0.000000e+00> : vector<64xf32>
    %129 = vector.multi_reduction <add>, %128, %cst_67 [1] : vector<64x3xf32> to vector<64xf32>
    %130 = vector.shape_cast %129 : vector<64xf32> to vector<64x1xf32>
    %cst_68 = arith.constant 1.000000e-24 : f32
    %131 = vector.broadcast %cst_68 : f32 to vector<64x1xf32>
    %132 = arith.maximumf %130, %131 : vector<64x1xf32>
    %133 = math.rsqrt %132 : vector<64x1xf32>
    %134 = vector.broadcast %133 : vector<64x1xf32> to vector<64x3xf32>
    %135 = arith.mulf %127, %134 : vector<64x3xf32>
    %cst_69 = arith.constant dense<0.000000e+00> : vector<64x128xf32>
    %136 = tpu.matmul %135, %0, %cst_69 {dimension_numbers = #tpu.dot_dimension_numbers<[1], [0], [0], [1], [0, 0, 1, 1], [], []>} : vector<64x3xf32>, vector<3x128xf32>, vector<64x128xf32> -> vector<64x128xf32>
    %cst_70 = arith.constant 0.000000e+00 : f32
    %137 = vector.broadcast %cst_70 : f32 to vector<64x128xf32>
    %138 = arith.maximumf %136, %137 : vector<64x128xf32>
    %139 = arith.maximumf %125, %138 : vector<64x128xf32>
    %c0_71 = arith.constant 0 : index
    %c0_72 = arith.constant 0 : index
    %140 = vector.load %arg4[%c0_71, %c0_72] : memref<128x32xf32, #tpu.memory_space<vmem>>, vector<128x32xf32>
    %cst_73 = arith.constant dense<0.000000e+00> : vector<64x32xf32>
    %141 = tpu.matmul %139, %140, %cst_73 {dimension_numbers = #tpu.dot_dimension_numbers<[1], [0], [0], [1], [0, 0, 1, 1], [], []>} : vector<64x128xf32>, vector<128x32xf32>, vector<64x32xf32> -> vector<64x32xf32>
    %c0_74 = arith.constant 0 : index
    %c0_75 = arith.constant 0 : index
    %c0_76 = arith.constant 0 : index
    %142 = vector.load %arg5[%c0_74, %c0_75, %c0_76] : memref<1x64x32xf32, #tpu.memory_space<vmem>>, vector<1x64x32xf32>
    %143 = vector.shape_cast %142 : vector<1x64x32xf32> to vector<64x32xf32>
    %144 = vector.shape_cast %141 : vector<64x32xf32> to vector<1x64x32xf32>
    tpu.vector_store %arg5[%c0_74, %c0_75, %c0_76], %144 {strides = array<i32>} : memref<1x64x32xf32, #tpu.memory_space<vmem>>, vector<1x64x32xf32>,
    return
  }
  func.func @transform_0(%arg0: i32, %arg1: i32) -> (i32, i32, i32, i32) {
    %c0_i32 = arith.constant 0 : i32
    %c0_i32_0 = arith.constant 0 : i32
    %c0_i32_1 = arith.constant 0 : i32
    return %arg0, %c0_i32, %arg1, %c0_i32_0 : i32, i32, i32, i32
  }
  func.func @transform_1(%arg0: i32, %arg1: i32) -> (i32, i32) {
    %c0_i32 = arith.constant 0 : i32
    %c0_i32_0 = arith.constant 0 : i32
    %c0_i32_1 = arith.constant 0 : i32
    return %c0_i32, %c0_i32_0 : i32, i32
  }
  func.func @transform_2(%arg0: i32, %arg1: i32) -> (i32, i32) {
    %c0_i32 = arith.constant 0 : i32
    %c0_i32_0 = arith.constant 0 : i32
    %c0_i32_1 = arith.constant 0 : i32
    return %c0_i32, %c0_i32_0 : i32, i32
  }
  func.func @transform_3(%arg0: i32, %arg1: i32) -> (i32, i32, i32) {
    %c0_i32 = arith.constant 0 : i32
    %c0_i32_0 = arith.constant 0 : i32
    return %arg0, %arg1, %c0_i32 : i32, i32, i32
  }
}

module attributes {stable_mosaic.version = 11 : i64} {
  func.func @_conv_surface_kernel(%arg0: i32, %arg1: i32, %arg2: memref<1x50x64x3xf32, #tpu.memory_space<vmem>>, %arg3: memref<3x128xf32, #tpu.memory_space<vmem>>, %arg4: memref<128x32xf32, #tpu.memory_space<vmem>>, %arg5: memref<1x64x32xf32, #tpu.memory_space<vmem>>) attributes {dimension_semantics = [#tpu.dimension_semantics<parallel>, #tpu.dimension_semantics<parallel>], iteration_bounds = array<i64: 2, 1>, scalar_prefetch = 0 : i64, scratch_operands = 0 : i64, tpu.core_type = #tpu.core_type<tc>, window_params = [{transform_indices = @transform_0, window_bounds = array<i64: 1, 50, 64, 3>}, {pipeline_mode = #tpu.pipeline_mode<synchronous>, transform_indices = @transform_1, window_bounds = array<i64: 3, 128>}, {pipeline_mode = #tpu.pipeline_mode<synchronous>, transform_indices = @transform_2, window_bounds = array<i64: 128, 32>}, {transform_indices = @transform_3, window_bounds = array<i64: 1, 64, 32>}]} {
    %c0 = arith.constant 0 : index
    %c0_0 = arith.constant 0 : index
    %0 = vector.load %arg3[%c0, %c0_0] : memref<3x128xf32, #tpu.memory_space<vmem>>, vector<3x128xf32>
    %c0_1 = arith.constant 0 : index
    %c0_2 = arith.constant 0 : index
    %c0_3 = arith.constant 0 : index
    %c0_4 = arith.constant 0 : index
    %1 = vector.load %arg2[%c0_1, %c0_2, %c0_3, %c0_4] : memref<1x50x64x3xf32, #tpu.memory_space<vmem>>, vector<1x1x64x3xf32>
    %2 = vector.shape_cast %1 : vector<1x1x64x3xf32> to vector<64x3xf32>
    %3 = arith.mulf %2, %2 : vector<64x3xf32>
    %cst = arith.constant dense<0.000000e+00> : vector<64xf32>
    %4 = vector.multi_reduction <add>, %3, %cst [1] : vector<64x3xf32> to vector<64xf32>
    %5 = vector.shape_cast %4 : vector<64xf32> to vector<64x1xf32>
    %cst_5 = arith.constant 1.000000e-24 : f32
    %6 = vector.broadcast %cst_5 : f32 to vector<64x1xf32>
    %7 = arith.maximumf %5, %6 : vector<64x1xf32>
    %8 = math.rsqrt %7 : vector<64x1xf32>
    %9 = vector.broadcast %8 : vector<64x1xf32> to vector<64x3xf32>
    %10 = arith.mulf %2, %9 : vector<64x3xf32>
    %cst_6 = arith.constant dense<0.000000e+00> : vector<64x128xf32>
    %11 = tpu.matmul %10, %0, %cst_6 {dimension_numbers = #tpu.dot_dimension_numbers<[1], [0], [0], [1], [0, 0, 1, 1], [], []>} : vector<64x3xf32>, vector<3x128xf32>, vector<64x128xf32> -> vector<64x128xf32>
    %cst_7 = arith.constant 0.000000e+00 : f32
    %12 = vector.broadcast %cst_7 : f32 to vector<64x128xf32>
    %13 = arith.maximumf %11, %12 : vector<64x128xf32>
    %c0_8 = arith.constant 0 : index
    %c1 = arith.constant 1 : index
    %c0_9 = arith.constant 0 : index
    %c0_10 = arith.constant 0 : index
    %14 = vector.load %arg2[%c0_8, %c1, %c0_9, %c0_10] : memref<1x50x64x3xf32, #tpu.memory_space<vmem>>, vector<1x1x64x3xf32>
    %15 = vector.shape_cast %14 : vector<1x1x64x3xf32> to vector<64x3xf32>
    %16 = arith.mulf %15, %15 : vector<64x3xf32>
    %cst_11 = arith.constant dense<0.000000e+00> : vector<64xf32>
    %17 = vector.multi_reduction <add>, %16, %cst_11 [1] : vector<64x3xf32> to vector<64xf32>
    %18 = vector.shape_cast %17 : vector<64xf32> to vector<64x1xf32>
    %cst_12 = arith.constant 1.000000e-24 : f32
    %19 = vector.broadcast %cst_12 : f32 to vector<64x1xf32>
    %20 = arith.maximumf %18, %19 : vector<64x1xf32>
    %21 = math.rsqrt %20 : vector<64x1xf32>
    %22 = vector.broadcast %21 : vector<64x1xf32> to vector<64x3xf32>
    %23 = arith.mulf %15, %22 : vector<64x3xf32>
    %cst_13 = arith.constant dense<0.000000e+00> : vector<64x128xf32>
    %24 = tpu.matmul %23, %0, %cst_13 {dimension_numbers = #tpu.dot_dimension_numbers<[1], [0], [0], [1], [0, 0, 1, 1], [], []>} : vector<64x3xf32>, vector<3x128xf32>, vector<64x128xf32> -> vector<64x128xf32>
    %cst_14 = arith.constant 0.000000e+00 : f32
    %25 = vector.broadcast %cst_14 : f32 to vector<64x128xf32>
    %26 = arith.maximumf %24, %25 : vector<64x128xf32>
    %27 = arith.maximumf %13, %26 : vector<64x128xf32>
    %c0_15 = arith.constant 0 : index
    %c2 = arith.constant 2 : index
    %c0_16 = arith.constant 0 : index
    %c0_17 = arith.constant 0 : index
    %28 = vector.load %arg2[%c0_15, %c2, %c0_16, %c0_17] : memref<1x50x64x3xf32, #tpu.memory_space<vmem>>, vector<1x1x64x3xf32>
    %29 = vector.shape_cast %28 : vector<1x1x64x3xf32> to vector<64x3xf32>
    %30 = arith.mulf %29, %29 : vector<64x3xf32>
    %cst_18 = arith.constant dense<0.000000e+00> : vector<64xf32>
    %31 = vector.multi_reduction <add>, %30, %cst_18 [1] : vector<64x3xf32> to vector<64xf32>
    %32 = vector.shape_cast %31 : vector<64xf32> to vector<64x1xf32>
    %cst_19 = arith.constant 1.000000e-24 : f32
    %33 = vector.broadcast %cst_19 : f32 to vector<64x1xf32>
    %34 = arith.maximumf %32, %33 : vector<64x1xf32>
    %35 = math.rsqrt %34 : vector<64x1xf32>
    %36 = vector.broadcast %35 : vector<64x1xf32> to vector<64x3xf32>
    %37 = arith.mulf %29, %36 : vector<64x3xf32>
    %cst_20 = arith.constant dense<0.000000e+00> : vector<64x128xf32>
    %38 = tpu.matmul %37, %0, %cst_20 {dimension_numbers = #tpu.dot_dimension_numbers<[1], [0], [0], [1], [0, 0, 1, 1], [], []>} : vector<64x3xf32>, vector<3x128xf32>, vector<64x128xf32> -> vector<64x128xf32>
    %cst_21 = arith.constant 0.000000e+00 : f32
    %39 = vector.broadcast %cst_21 : f32 to vector<64x128xf32>
    %40 = arith.maximumf %38, %39 : vector<64x128xf32>
    %41 = arith.maximumf %27, %40 : vector<64x128xf32>
    %c0_22 = arith.constant 0 : index
    %c3 = arith.constant 3 : index
    %c0_23 = arith.constant 0 : index
    %c0_24 = arith.constant 0 : index
    %42 = vector.load %arg2[%c0_22, %c3, %c0_23, %c0_24] : memref<1x50x64x3xf32, #tpu.memory_space<vmem>>, vector<1x1x64x3xf32>
    %43 = vector.shape_cast %42 : vector<1x1x64x3xf32> to vector<64x3xf32>
    %44 = arith.mulf %43, %43 : vector<64x3xf32>
    %cst_25 = arith.constant dense<0.000000e+00> : vector<64xf32>
    %45 = vector.multi_reduction <add>, %44, %cst_25 [1] : vector<64x3xf32> to vector<64xf32>
    %46 = vector.shape_cast %45 : vector<64xf32> to vector<64x1xf32>
    %cst_26 = arith.constant 1.000000e-24 : f32
    %47 = vector.broadcast %cst_26 : f32 to vector<64x1xf32>
    %48 = arith.maximumf %46, %47 : vector<64x1xf32>
    %49 = math.rsqrt %48 : vector<64x1xf32>
    %50 = vector.broadcast %49 : vector<64x1xf32> to vector<64x3xf32>
    %51 = arith.mulf %43, %50 : vector<64x3xf32>
    %cst_27 = arith.constant dense<0.000000e+00> : vector<64x128xf32>
    %52 = tpu.matmul %51, %0, %cst_27 {dimension_numbers = #tpu.dot_dimension_numbers<[1], [0], [0], [1], [0, 0, 1, 1], [], []>} : vector<64x3xf32>, vector<3x128xf32>, vector<64x128xf32> -> vector<64x128xf32>
    %cst_28 = arith.constant 0.000000e+00 : f32
    %53 = vector.broadcast %cst_28 : f32 to vector<64x128xf32>
    %54 = arith.maximumf %52, %53 : vector<64x128xf32>
    %55 = arith.maximumf %41, %54 : vector<64x128xf32>
    %c0_29 = arith.constant 0 : index
    %c4 = arith.constant 4 : index
    %c0_30 = arith.constant 0 : index
    %c0_31 = arith.constant 0 : index
    %56 = vector.load %arg2[%c0_29, %c4, %c0_30, %c0_31] : memref<1x50x64x3xf32, #tpu.memory_space<vmem>>, vector<1x1x64x3xf32>
    %57 = vector.shape_cast %56 : vector<1x1x64x3xf32> to vector<64x3xf32>
    %58 = arith.mulf %57, %57 : vector<64x3xf32>
    %cst_32 = arith.constant dense<0.000000e+00> : vector<64xf32>
    %59 = vector.multi_reduction <add>, %58, %cst_32 [1] : vector<64x3xf32> to vector<64xf32>
    %60 = vector.shape_cast %59 : vector<64xf32> to vector<64x1xf32>
    %cst_33 = arith.constant 1.000000e-24 : f32
    %61 = vector.broadcast %cst_33 : f32 to vector<64x1xf32>
    %62 = arith.maximumf %60, %61 : vector<64x1xf32>
    %63 = math.rsqrt %62 : vector<64x1xf32>
    %64 = vector.broadcast %63 : vector<64x1xf32> to vector<64x3xf32>
    %65 = arith.mulf %57, %64 : vector<64x3xf32>
    %cst_34 = arith.constant dense<0.000000e+00> : vector<64x128xf32>
    %66 = tpu.matmul %65, %0, %cst_34 {dimension_numbers = #tpu.dot_dimension_numbers<[1], [0], [0], [1], [0, 0, 1, 1], [], []>} : vector<64x3xf32>, vector<3x128xf32>, vector<64x128xf32> -> vector<64x128xf32>
    %cst_35 = arith.constant 0.000000e+00 : f32
    %67 = vector.broadcast %cst_35 : f32 to vector<64x128xf32>
    %68 = arith.maximumf %66, %67 : vector<64x128xf32>
    %69 = arith.maximumf %55, %68 : vector<64x128xf32>
    %c0_36 = arith.constant 0 : index
    %c5 = arith.constant 5 : index
    %c0_37 = arith.constant 0 : index
    %c0_38 = arith.constant 0 : index
    %70 = vector.load %arg2[%c0_36, %c5, %c0_37, %c0_38] : memref<1x50x64x3xf32, #tpu.memory_space<vmem>>, vector<1x1x64x3xf32>
    %71 = vector.shape_cast %70 : vector<1x1x64x3xf32> to vector<64x3xf32>
    %72 = arith.mulf %71, %71 : vector<64x3xf32>
    %cst_39 = arith.constant dense<0.000000e+00> : vector<64xf32>
    %73 = vector.multi_reduction <add>, %72, %cst_39 [1] : vector<64x3xf32> to vector<64xf32>
    %74 = vector.shape_cast %73 : vector<64xf32> to vector<64x1xf32>
    %cst_40 = arith.constant 1.000000e-24 : f32
    %75 = vector.broadcast %cst_40 : f32 to vector<64x1xf32>
    %76 = arith.maximumf %74, %75 : vector<64x1xf32>
    %77 = math.rsqrt %76 : vector<64x1xf32>
    %78 = vector.broadcast %77 : vector<64x1xf32> to vector<64x3xf32>
    %79 = arith.mulf %71, %78 : vector<64x3xf32>
    %cst_41 = arith.constant dense<0.000000e+00> : vector<64x128xf32>
    %80 = tpu.matmul %79, %0, %cst_41 {dimension_numbers = #tpu.dot_dimension_numbers<[1], [0], [0], [1], [0, 0, 1, 1], [], []>} : vector<64x3xf32>, vector<3x128xf32>, vector<64x128xf32> -> vector<64x128xf32>
    %cst_42 = arith.constant 0.000000e+00 : f32
    %81 = vector.broadcast %cst_42 : f32 to vector<64x128xf32>
    %82 = arith.maximumf %80, %81 : vector<64x128xf32>
    %83 = arith.maximumf %69, %82 : vector<64x128xf32>
    %c0_43 = arith.constant 0 : index
    %c6 = arith.constant 6 : index
    %c0_44 = arith.constant 0 : index
    %c0_45 = arith.constant 0 : index
    %84 = vector.load %arg2[%c0_43, %c6, %c0_44, %c0_45] : memref<1x50x64x3xf32, #tpu.memory_space<vmem>>, vector<1x1x64x3xf32>
    %85 = vector.shape_cast %84 : vector<1x1x64x3xf32> to vector<64x3xf32>
    %86 = arith.mulf %85, %85 : vector<64x3xf32>
    %cst_46 = arith.constant dense<0.000000e+00> : vector<64xf32>
    %87 = vector.multi_reduction <add>, %86, %cst_46 [1] : vector<64x3xf32> to vector<64xf32>
    %88 = vector.shape_cast %87 : vector<64xf32> to vector<64x1xf32>
    %cst_47 = arith.constant 1.000000e-24 : f32
    %89 = vector.broadcast %cst_47 : f32 to vector<64x1xf32>
    %90 = arith.maximumf %88, %89 : vector<64x1xf32>
    %91 = math.rsqrt %90 : vector<64x1xf32>
    %92 = vector.broadcast %91 : vector<64x1xf32> to vector<64x3xf32>
    %93 = arith.mulf %85, %92 : vector<64x3xf32>
    %cst_48 = arith.constant dense<0.000000e+00> : vector<64x128xf32>
    %94 = tpu.matmul %93, %0, %cst_48 {dimension_numbers = #tpu.dot_dimension_numbers<[1], [0], [0], [1], [0, 0, 1, 1], [], []>} : vector<64x3xf32>, vector<3x128xf32>, vector<64x128xf32> -> vector<64x128xf32>
    %cst_49 = arith.constant 0.000000e+00 : f32
    %95 = vector.broadcast %cst_49 : f32 to vector<64x128xf32>
    %96 = arith.maximumf %94, %95 : vector<64x128xf32>
    %97 = arith.maximumf %83, %96 : vector<64x128xf32>
    %c0_50 = arith.constant 0 : index
    %c7 = arith.constant 7 : index
    %c0_51 = arith.constant 0 : index
    %c0_52 = arith.constant 0 : index
    %98 = vector.load %arg2[%c0_50, %c7, %c0_51, %c0_52] : memref<1x50x64x3xf32, #tpu.memory_space<vmem>>, vector<1x1x64x3xf32>
    %99 = vector.shape_cast %98 : vector<1x1x64x3xf32> to vector<64x3xf32>
    %100 = arith.mulf %99, %99 : vector<64x3xf32>
    %cst_53 = arith.constant dense<0.000000e+00> : vector<64xf32>
    %101 = vector.multi_reduction <add>, %100, %cst_53 [1] : vector<64x3xf32> to vector<64xf32>
    %102 = vector.shape_cast %101 : vector<64xf32> to vector<64x1xf32>
    %cst_54 = arith.constant 1.000000e-24 : f32
    %103 = vector.broadcast %cst_54 : f32 to vector<64x1xf32>
    %104 = arith.maximumf %102, %103 : vector<64x1xf32>
    %105 = math.rsqrt %104 : vector<64x1xf32>
    %106 = vector.broadcast %105 : vector<64x1xf32> to vector<64x3xf32>
    %107 = arith.mulf %99, %106 : vector<64x3xf32>
    %cst_55 = arith.constant dense<0.000000e+00> : vector<64x128xf32>
    %108 = tpu.matmul %107, %0, %cst_55 {dimension_numbers = #tpu.dot_dimension_numbers<[1], [0], [0], [1], [0, 0, 1, 1], [], []>} : vector<64x3xf32>, vector<3x128xf32>, vector<64x128xf32> -> vector<64x128xf32>
    %cst_56 = arith.constant 0.000000e+00 : f32
    %109 = vector.broadcast %cst_56 : f32 to vector<64x128xf32>
    %110 = arith.maximumf %108, %109 : vector<64x128xf32>
    %111 = arith.maximumf %97, %110 : vector<64x128xf32>
    %c0_57 = arith.constant 0 : index
    %c8 = arith.constant 8 : index
    %c0_58 = arith.constant 0 : index
    %c0_59 = arith.constant 0 : index
    %112 = vector.load %arg2[%c0_57, %c8, %c0_58, %c0_59] : memref<1x50x64x3xf32, #tpu.memory_space<vmem>>, vector<1x1x64x3xf32>
    %113 = vector.shape_cast %112 : vector<1x1x64x3xf32> to vector<64x3xf32>
    %114 = arith.mulf %113, %113 : vector<64x3xf32>
    %cst_60 = arith.constant dense<0.000000e+00> : vector<64xf32>
    %115 = vector.multi_reduction <add>, %114, %cst_60 [1] : vector<64x3xf32> to vector<64xf32>
    %116 = vector.shape_cast %115 : vector<64xf32> to vector<64x1xf32>
    %cst_61 = arith.constant 1.000000e-24 : f32
    %117 = vector.broadcast %cst_61 : f32 to vector<64x1xf32>
    %118 = arith.maximumf %116, %117 : vector<64x1xf32>
    %119 = math.rsqrt %118 : vector<64x1xf32>
    %120 = vector.broadcast %119 : vector<64x1xf32> to vector<64x3xf32>
    %121 = arith.mulf %113, %120 : vector<64x3xf32>
    %cst_62 = arith.constant dense<0.000000e+00> : vector<64x128xf32>
    %122 = tpu.matmul %121, %0, %cst_62 {dimension_numbers = #tpu.dot_dimension_numbers<[1], [0], [0], [1], [0, 0, 1, 1], [], []>} : vector<64x3xf32>, vector<3x128xf32>, vector<64x128xf32> -> vector<64x128xf32>
    %cst_63 = arith.constant 0.000000e+00 : f32
    %123 = vector.broadcast %cst_63 : f32 to vector<64x128xf32>
    %124 = arith.maximumf %122, %123 : vector<64x128xf32>
    %125 = arith.maximumf %111, %124 : vector<64x128xf32>
    %c0_64 = arith.constant 0 : index
    %c9 = arith.constant 9 : index
    %c0_65 = arith.constant 0 : index
    %c0_66 = arith.constant 0 : index
    %126 = vector.load %arg2[%c0_64, %c9, %c0_65, %c0_66] : memref<1x50x64x3xf32, #tpu.memory_space<vmem>>, vector<1x1x64x3xf32>
    %127 = vector.shape_cast %126 : vector<1x1x64x3xf32> to vector<64x3xf32>
    %128 = arith.mulf %127, %127 : vector<64x3xf32>
    %cst_67 = arith.constant dense<0.000000e+00> : vector<64xf32>
    %129 = vector.multi_reduction <add>, %128, %cst_67 [1] : vector<64x3xf32> to vector<64xf32>
    %130 = vector.shape_cast %129 : vector<64xf32> to vector<64x1xf32>
    %cst_68 = arith.constant 1.000000e-24 : f32
    %131 = vector.broadcast %cst_68 : f32 to vector<64x1xf32>
    %132 = arith.maximumf %130, %131 : vector<64x1xf32>
    %133 = math.rsqrt %132 : vector<64x1xf32>
    %134 = vector.broadcast %133 : vector<64x1xf32> to vector<64x3xf32>
    %135 = arith.mulf %127, %134 : vector<64x3xf32>
    %cst_69 = arith.constant dense<0.000000e+00> : vector<64x128xf32>
    %136 = tpu.matmul %135, %0, %cst_69 {dimension_numbers = #tpu.dot_dimension_numbers<[1], [0], [0], [1], [0, 0, 1, 1], [], []>} : vector<64x3xf32>, vector<3x128xf32>, vector<64x128xf32> -> vector<64x128xf32>
    %cst_70 = arith.constant 0.000000e+00 : f32
    %137 = vector.broadcast %cst_70 : f32 to vector<64x128xf32>
    %138 = arith.maximumf %136, %137 : vector<64x128xf32>
    %139 = arith.maximumf %125, %138 : vector<64x128xf32>
    %c0_71 = arith.constant 0 : index
    %c10 = arith.constant 10 : index
    %c0_72 = arith.constant 0 : index
    %c0_73 = arith.constant 0 : index
    %140 = vector.load %arg2[%c0_71, %c10, %c0_72, %c0_73] : memref<1x50x64x3xf32, #tpu.memory_space<vmem>>, vector<1x1x64x3xf32>
    %141 = vector.shape_cast %140 : vector<1x1x64x3xf32> to vector<64x3xf32>
    %142 = arith.mulf %141, %141 : vector<64x3xf32>
    %cst_74 = arith.constant dense<0.000000e+00> : vector<64xf32>
    %143 = vector.multi_reduction <add>, %142, %cst_74 [1] : vector<64x3xf32> to vector<64xf32>
    %144 = vector.shape_cast %143 : vector<64xf32> to vector<64x1xf32>
    %cst_75 = arith.constant 1.000000e-24 : f32
    %145 = vector.broadcast %cst_75 : f32 to vector<64x1xf32>
    %146 = arith.maximumf %144, %145 : vector<64x1xf32>
    %147 = math.rsqrt %146 : vector<64x1xf32>
    %148 = vector.broadcast %147 : vector<64x1xf32> to vector<64x3xf32>
    %149 = arith.mulf %141, %148 : vector<64x3xf32>
    %cst_76 = arith.constant dense<0.000000e+00> : vector<64x128xf32>
    %150 = tpu.matmul %149, %0, %cst_76 {dimension_numbers = #tpu.dot_dimension_numbers<[1], [0], [0], [1], [0, 0, 1, 1], [], []>} : vector<64x3xf32>, vector<3x128xf32>, vector<64x128xf32> -> vector<64x128xf32>
    %cst_77 = arith.constant 0.000000e+00 : f32
    %151 = vector.broadcast %cst_77 : f32 to vector<64x128xf32>
    %152 = arith.maximumf %150, %151 : vector<64x128xf32>
    %153 = arith.maximumf %139, %152 : vector<64x128xf32>
    %c0_78 = arith.constant 0 : index
    %c11 = arith.constant 11 : index
    %c0_79 = arith.constant 0 : index
    %c0_80 = arith.constant 0 : index
    %154 = vector.load %arg2[%c0_78, %c11, %c0_79, %c0_80] : memref<1x50x64x3xf32, #tpu.memory_space<vmem>>, vector<1x1x64x3xf32>
    %155 = vector.shape_cast %154 : vector<1x1x64x3xf32> to vector<64x3xf32>
    %156 = arith.mulf %155, %155 : vector<64x3xf32>
    %cst_81 = arith.constant dense<0.000000e+00> : vector<64xf32>
    %157 = vector.multi_reduction <add>, %156, %cst_81 [1] : vector<64x3xf32> to vector<64xf32>
    %158 = vector.shape_cast %157 : vector<64xf32> to vector<64x1xf32>
    %cst_82 = arith.constant 1.000000e-24 : f32
    %159 = vector.broadcast %cst_82 : f32 to vector<64x1xf32>
    %160 = arith.maximumf %158, %159 : vector<64x1xf32>
    %161 = math.rsqrt %160 : vector<64x1xf32>
    %162 = vector.broadcast %161 : vector<64x1xf32> to vector<64x3xf32>
    %163 = arith.mulf %155, %162 : vector<64x3xf32>
    %cst_83 = arith.constant dense<0.000000e+00> : vector<64x128xf32>
    %164 = tpu.matmul %163, %0, %cst_83 {dimension_numbers = #tpu.dot_dimension_numbers<[1], [0], [0], [1], [0, 0, 1, 1], [], []>} : vector<64x3xf32>, vector<3x128xf32>, vector<64x128xf32> -> vector<64x128xf32>
    %cst_84 = arith.constant 0.000000e+00 : f32
    %165 = vector.broadcast %cst_84 : f32 to vector<64x128xf32>
    %166 = arith.maximumf %164, %165 : vector<64x128xf32>
    %167 = arith.maximumf %153, %166 : vector<64x128xf32>
    %c0_85 = arith.constant 0 : index
    %c12 = arith.constant 12 : index
    %c0_86 = arith.constant 0 : index
    %c0_87 = arith.constant 0 : index
    %168 = vector.load %arg2[%c0_85, %c12, %c0_86, %c0_87] : memref<1x50x64x3xf32, #tpu.memory_space<vmem>>, vector<1x1x64x3xf32>
    %169 = vector.shape_cast %168 : vector<1x1x64x3xf32> to vector<64x3xf32>
    %170 = arith.mulf %169, %169 : vector<64x3xf32>
    %cst_88 = arith.constant dense<0.000000e+00> : vector<64xf32>
    %171 = vector.multi_reduction <add>, %170, %cst_88 [1] : vector<64x3xf32> to vector<64xf32>
    %172 = vector.shape_cast %171 : vector<64xf32> to vector<64x1xf32>
    %cst_89 = arith.constant 1.000000e-24 : f32
    %173 = vector.broadcast %cst_89 : f32 to vector<64x1xf32>
    %174 = arith.maximumf %172, %173 : vector<64x1xf32>
    %175 = math.rsqrt %174 : vector<64x1xf32>
    %176 = vector.broadcast %175 : vector<64x1xf32> to vector<64x3xf32>
    %177 = arith.mulf %169, %176 : vector<64x3xf32>
    %cst_90 = arith.constant dense<0.000000e+00> : vector<64x128xf32>
    %178 = tpu.matmul %177, %0, %cst_90 {dimension_numbers = #tpu.dot_dimension_numbers<[1], [0], [0], [1], [0, 0, 1, 1], [], []>} : vector<64x3xf32>, vector<3x128xf32>, vector<64x128xf32> -> vector<64x128xf32>
    %cst_91 = arith.constant 0.000000e+00 : f32
    %179 = vector.broadcast %cst_91 : f32 to vector<64x128xf32>
    %180 = arith.maximumf %178, %179 : vector<64x128xf32>
    %181 = arith.maximumf %167, %180 : vector<64x128xf32>
    %c0_92 = arith.constant 0 : index
    %c13 = arith.constant 13 : index
    %c0_93 = arith.constant 0 : index
    %c0_94 = arith.constant 0 : index
    %182 = vector.load %arg2[%c0_92, %c13, %c0_93, %c0_94] : memref<1x50x64x3xf32, #tpu.memory_space<vmem>>, vector<1x1x64x3xf32>
    %183 = vector.shape_cast %182 : vector<1x1x64x3xf32> to vector<64x3xf32>
    %184 = arith.mulf %183, %183 : vector<64x3xf32>
    %cst_95 = arith.constant dense<0.000000e+00> : vector<64xf32>
    %185 = vector.multi_reduction <add>, %184, %cst_95 [1] : vector<64x3xf32> to vector<64xf32>
    %186 = vector.shape_cast %185 : vector<64xf32> to vector<64x1xf32>
    %cst_96 = arith.constant 1.000000e-24 : f32
    %187 = vector.broadcast %cst_96 : f32 to vector<64x1xf32>
    %188 = arith.maximumf %186, %187 : vector<64x1xf32>
    %189 = math.rsqrt %188 : vector<64x1xf32>
    %190 = vector.broadcast %189 : vector<64x1xf32> to vector<64x3xf32>
    %191 = arith.mulf %183, %190 : vector<64x3xf32>
    %cst_97 = arith.constant dense<0.000000e+00> : vector<64x128xf32>
    %192 = tpu.matmul %191, %0, %cst_97 {dimension_numbers = #tpu.dot_dimension_numbers<[1], [0], [0], [1], [0, 0, 1, 1], [], []>} : vector<64x3xf32>, vector<3x128xf32>, vector<64x128xf32> -> vector<64x128xf32>
    %cst_98 = arith.constant 0.000000e+00 : f32
    %193 = vector.broadcast %cst_98 : f32 to vector<64x128xf32>
    %194 = arith.maximumf %192, %193 : vector<64x128xf32>
    %195 = arith.maximumf %181, %194 : vector<64x128xf32>
    %c0_99 = arith.constant 0 : index
    %c14 = arith.constant 14 : index
    %c0_100 = arith.constant 0 : index
    %c0_101 = arith.constant 0 : index
    %196 = vector.load %arg2[%c0_99, %c14, %c0_100, %c0_101] : memref<1x50x64x3xf32, #tpu.memory_space<vmem>>, vector<1x1x64x3xf32>
    %197 = vector.shape_cast %196 : vector<1x1x64x3xf32> to vector<64x3xf32>
    %198 = arith.mulf %197, %197 : vector<64x3xf32>
    %cst_102 = arith.constant dense<0.000000e+00> : vector<64xf32>
    %199 = vector.multi_reduction <add>, %198, %cst_102 [1] : vector<64x3xf32> to vector<64xf32>
    %200 = vector.shape_cast %199 : vector<64xf32> to vector<64x1xf32>
    %cst_103 = arith.constant 1.000000e-24 : f32
    %201 = vector.broadcast %cst_103 : f32 to vector<64x1xf32>
    %202 = arith.maximumf %200, %201 : vector<64x1xf32>
    %203 = math.rsqrt %202 : vector<64x1xf32>
    %204 = vector.broadcast %203 : vector<64x1xf32> to vector<64x3xf32>
    %205 = arith.mulf %197, %204 : vector<64x3xf32>
    %cst_104 = arith.constant dense<0.000000e+00> : vector<64x128xf32>
    %206 = tpu.matmul %205, %0, %cst_104 {dimension_numbers = #tpu.dot_dimension_numbers<[1], [0], [0], [1], [0, 0, 1, 1], [], []>} : vector<64x3xf32>, vector<3x128xf32>, vector<64x128xf32> -> vector<64x128xf32>
    %cst_105 = arith.constant 0.000000e+00 : f32
    %207 = vector.broadcast %cst_105 : f32 to vector<64x128xf32>
    %208 = arith.maximumf %206, %207 : vector<64x128xf32>
    %209 = arith.maximumf %195, %208 : vector<64x128xf32>
    %c0_106 = arith.constant 0 : index
    %c15 = arith.constant 15 : index
    %c0_107 = arith.constant 0 : index
    %c0_108 = arith.constant 0 : index
    %210 = vector.load %arg2[%c0_106, %c15, %c0_107, %c0_108] : memref<1x50x64x3xf32, #tpu.memory_space<vmem>>, vector<1x1x64x3xf32>
    %211 = vector.shape_cast %210 : vector<1x1x64x3xf32> to vector<64x3xf32>
    %212 = arith.mulf %211, %211 : vector<64x3xf32>
    %cst_109 = arith.constant dense<0.000000e+00> : vector<64xf32>
    %213 = vector.multi_reduction <add>, %212, %cst_109 [1] : vector<64x3xf32> to vector<64xf32>
    %214 = vector.shape_cast %213 : vector<64xf32> to vector<64x1xf32>
    %cst_110 = arith.constant 1.000000e-24 : f32
    %215 = vector.broadcast %cst_110 : f32 to vector<64x1xf32>
    %216 = arith.maximumf %214, %215 : vector<64x1xf32>
    %217 = math.rsqrt %216 : vector<64x1xf32>
    %218 = vector.broadcast %217 : vector<64x1xf32> to vector<64x3xf32>
    %219 = arith.mulf %211, %218 : vector<64x3xf32>
    %cst_111 = arith.constant dense<0.000000e+00> : vector<64x128xf32>
    %220 = tpu.matmul %219, %0, %cst_111 {dimension_numbers = #tpu.dot_dimension_numbers<[1], [0], [0], [1], [0, 0, 1, 1], [], []>} : vector<64x3xf32>, vector<3x128xf32>, vector<64x128xf32> -> vector<64x128xf32>
    %cst_112 = arith.constant 0.000000e+00 : f32
    %221 = vector.broadcast %cst_112 : f32 to vector<64x128xf32>
    %222 = arith.maximumf %220, %221 : vector<64x128xf32>
    %223 = arith.maximumf %209, %222 : vector<64x128xf32>
    %c0_113 = arith.constant 0 : index
    %c16 = arith.constant 16 : index
    %c0_114 = arith.constant 0 : index
    %c0_115 = arith.constant 0 : index
    %224 = vector.load %arg2[%c0_113, %c16, %c0_114, %c0_115] : memref<1x50x64x3xf32, #tpu.memory_space<vmem>>, vector<1x1x64x3xf32>
    %225 = vector.shape_cast %224 : vector<1x1x64x3xf32> to vector<64x3xf32>
    %226 = arith.mulf %225, %225 : vector<64x3xf32>
    %cst_116 = arith.constant dense<0.000000e+00> : vector<64xf32>
    %227 = vector.multi_reduction <add>, %226, %cst_116 [1] : vector<64x3xf32> to vector<64xf32>
    %228 = vector.shape_cast %227 : vector<64xf32> to vector<64x1xf32>
    %cst_117 = arith.constant 1.000000e-24 : f32
    %229 = vector.broadcast %cst_117 : f32 to vector<64x1xf32>
    %230 = arith.maximumf %228, %229 : vector<64x1xf32>
    %231 = math.rsqrt %230 : vector<64x1xf32>
    %232 = vector.broadcast %231 : vector<64x1xf32> to vector<64x3xf32>
    %233 = arith.mulf %225, %232 : vector<64x3xf32>
    %cst_118 = arith.constant dense<0.000000e+00> : vector<64x128xf32>
    %234 = tpu.matmul %233, %0, %cst_118 {dimension_numbers = #tpu.dot_dimension_numbers<[1], [0], [0], [1], [0, 0, 1, 1], [], []>} : vector<64x3xf32>, vector<3x128xf32>, vector<64x128xf32> -> vector<64x128xf32>
    %cst_119 = arith.constant 0.000000e+00 : f32
    %235 = vector.broadcast %cst_119 : f32 to vector<64x128xf32>
    %236 = arith.maximumf %234, %235 : vector<64x128xf32>
    %237 = arith.maximumf %223, %236 : vector<64x128xf32>
    %c0_120 = arith.constant 0 : index
    %c17 = arith.constant 17 : index
    %c0_121 = arith.constant 0 : index
    %c0_122 = arith.constant 0 : index
    %238 = vector.load %arg2[%c0_120, %c17, %c0_121, %c0_122] : memref<1x50x64x3xf32, #tpu.memory_space<vmem>>, vector<1x1x64x3xf32>
    %239 = vector.shape_cast %238 : vector<1x1x64x3xf32> to vector<64x3xf32>
    %240 = arith.mulf %239, %239 : vector<64x3xf32>
    %cst_123 = arith.constant dense<0.000000e+00> : vector<64xf32>
    %241 = vector.multi_reduction <add>, %240, %cst_123 [1] : vector<64x3xf32> to vector<64xf32>
    %242 = vector.shape_cast %241 : vector<64xf32> to vector<64x1xf32>
    %cst_124 = arith.constant 1.000000e-24 : f32
    %243 = vector.broadcast %cst_124 : f32 to vector<64x1xf32>
    %244 = arith.maximumf %242, %243 : vector<64x1xf32>
    %245 = math.rsqrt %244 : vector<64x1xf32>
    %246 = vector.broadcast %245 : vector<64x1xf32> to vector<64x3xf32>
    %247 = arith.mulf %239, %246 : vector<64x3xf32>
    %cst_125 = arith.constant dense<0.000000e+00> : vector<64x128xf32>
    %248 = tpu.matmul %247, %0, %cst_125 {dimension_numbers = #tpu.dot_dimension_numbers<[1], [0], [0], [1], [0, 0, 1, 1], [], []>} : vector<64x3xf32>, vector<3x128xf32>, vector<64x128xf32> -> vector<64x128xf32>
    %cst_126 = arith.constant 0.000000e+00 : f32
    %249 = vector.broadcast %cst_126 : f32 to vector<64x128xf32>
    %250 = arith.maximumf %248, %249 : vector<64x128xf32>
    %251 = arith.maximumf %237, %250 : vector<64x128xf32>
    %c0_127 = arith.constant 0 : index
    %c18 = arith.constant 18 : index
    %c0_128 = arith.constant 0 : index
    %c0_129 = arith.constant 0 : index
    %252 = vector.load %arg2[%c0_127, %c18, %c0_128, %c0_129] : memref<1x50x64x3xf32, #tpu.memory_space<vmem>>, vector<1x1x64x3xf32>
    %253 = vector.shape_cast %252 : vector<1x1x64x3xf32> to vector<64x3xf32>
    %254 = arith.mulf %253, %253 : vector<64x3xf32>
    %cst_130 = arith.constant dense<0.000000e+00> : vector<64xf32>
    %255 = vector.multi_reduction <add>, %254, %cst_130 [1] : vector<64x3xf32> to vector<64xf32>
    %256 = vector.shape_cast %255 : vector<64xf32> to vector<64x1xf32>
    %cst_131 = arith.constant 1.000000e-24 : f32
    %257 = vector.broadcast %cst_131 : f32 to vector<64x1xf32>
    %258 = arith.maximumf %256, %257 : vector<64x1xf32>
    %259 = math.rsqrt %258 : vector<64x1xf32>
    %260 = vector.broadcast %259 : vector<64x1xf32> to vector<64x3xf32>
    %261 = arith.mulf %253, %260 : vector<64x3xf32>
    %cst_132 = arith.constant dense<0.000000e+00> : vector<64x128xf32>
    %262 = tpu.matmul %261, %0, %cst_132 {dimension_numbers = #tpu.dot_dimension_numbers<[1], [0], [0], [1], [0, 0, 1, 1], [], []>} : vector<64x3xf32>, vector<3x128xf32>, vector<64x128xf32> -> vector<64x128xf32>
    %cst_133 = arith.constant 0.000000e+00 : f32
    %263 = vector.broadcast %cst_133 : f32 to vector<64x128xf32>
    %264 = arith.maximumf %262, %263 : vector<64x128xf32>
    %265 = arith.maximumf %251, %264 : vector<64x128xf32>
    %c0_134 = arith.constant 0 : index
    %c19 = arith.constant 19 : index
    %c0_135 = arith.constant 0 : index
    %c0_136 = arith.constant 0 : index
    %266 = vector.load %arg2[%c0_134, %c19, %c0_135, %c0_136] : memref<1x50x64x3xf32, #tpu.memory_space<vmem>>, vector<1x1x64x3xf32>
    %267 = vector.shape_cast %266 : vector<1x1x64x3xf32> to vector<64x3xf32>
    %268 = arith.mulf %267, %267 : vector<64x3xf32>
    %cst_137 = arith.constant dense<0.000000e+00> : vector<64xf32>
    %269 = vector.multi_reduction <add>, %268, %cst_137 [1] : vector<64x3xf32> to vector<64xf32>
    %270 = vector.shape_cast %269 : vector<64xf32> to vector<64x1xf32>
    %cst_138 = arith.constant 1.000000e-24 : f32
    %271 = vector.broadcast %cst_138 : f32 to vector<64x1xf32>
    %272 = arith.maximumf %270, %271 : vector<64x1xf32>
    %273 = math.rsqrt %272 : vector<64x1xf32>
    %274 = vector.broadcast %273 : vector<64x1xf32> to vector<64x3xf32>
    %275 = arith.mulf %267, %274 : vector<64x3xf32>
    %cst_139 = arith.constant dense<0.000000e+00> : vector<64x128xf32>
    %276 = tpu.matmul %275, %0, %cst_139 {dimension_numbers = #tpu.dot_dimension_numbers<[1], [0], [0], [1], [0, 0, 1, 1], [], []>} : vector<64x3xf32>, vector<3x128xf32>, vector<64x128xf32> -> vector<64x128xf32>
    %cst_140 = arith.constant 0.000000e+00 : f32
    %277 = vector.broadcast %cst_140 : f32 to vector<64x128xf32>
    %278 = arith.maximumf %276, %277 : vector<64x128xf32>
    %279 = arith.maximumf %265, %278 : vector<64x128xf32>
    %c0_141 = arith.constant 0 : index
    %c20 = arith.constant 20 : index
    %c0_142 = arith.constant 0 : index
    %c0_143 = arith.constant 0 : index
    %280 = vector.load %arg2[%c0_141, %c20, %c0_142, %c0_143] : memref<1x50x64x3xf32, #tpu.memory_space<vmem>>, vector<1x1x64x3xf32>
    %281 = vector.shape_cast %280 : vector<1x1x64x3xf32> to vector<64x3xf32>
    %282 = arith.mulf %281, %281 : vector<64x3xf32>
    %cst_144 = arith.constant dense<0.000000e+00> : vector<64xf32>
    %283 = vector.multi_reduction <add>, %282, %cst_144 [1] : vector<64x3xf32> to vector<64xf32>
    %284 = vector.shape_cast %283 : vector<64xf32> to vector<64x1xf32>
    %cst_145 = arith.constant 1.000000e-24 : f32
    %285 = vector.broadcast %cst_145 : f32 to vector<64x1xf32>
    %286 = arith.maximumf %284, %285 : vector<64x1xf32>
    %287 = math.rsqrt %286 : vector<64x1xf32>
    %288 = vector.broadcast %287 : vector<64x1xf32> to vector<64x3xf32>
    %289 = arith.mulf %281, %288 : vector<64x3xf32>
    %cst_146 = arith.constant dense<0.000000e+00> : vector<64x128xf32>
    %290 = tpu.matmul %289, %0, %cst_146 {dimension_numbers = #tpu.dot_dimension_numbers<[1], [0], [0], [1], [0, 0, 1, 1], [], []>} : vector<64x3xf32>, vector<3x128xf32>, vector<64x128xf32> -> vector<64x128xf32>
    %cst_147 = arith.constant 0.000000e+00 : f32
    %291 = vector.broadcast %cst_147 : f32 to vector<64x128xf32>
    %292 = arith.maximumf %290, %291 : vector<64x128xf32>
    %293 = arith.maximumf %279, %292 : vector<64x128xf32>
    %c0_148 = arith.constant 0 : index
    %c21 = arith.constant 21 : index
    %c0_149 = arith.constant 0 : index
    %c0_150 = arith.constant 0 : index
    %294 = vector.load %arg2[%c0_148, %c21, %c0_149, %c0_150] : memref<1x50x64x3xf32, #tpu.memory_space<vmem>>, vector<1x1x64x3xf32>
    %295 = vector.shape_cast %294 : vector<1x1x64x3xf32> to vector<64x3xf32>
    %296 = arith.mulf %295, %295 : vector<64x3xf32>
    %cst_151 = arith.constant dense<0.000000e+00> : vector<64xf32>
    %297 = vector.multi_reduction <add>, %296, %cst_151 [1] : vector<64x3xf32> to vector<64xf32>
    %298 = vector.shape_cast %297 : vector<64xf32> to vector<64x1xf32>
    %cst_152 = arith.constant 1.000000e-24 : f32
    %299 = vector.broadcast %cst_152 : f32 to vector<64x1xf32>
    %300 = arith.maximumf %298, %299 : vector<64x1xf32>
    %301 = math.rsqrt %300 : vector<64x1xf32>
    %302 = vector.broadcast %301 : vector<64x1xf32> to vector<64x3xf32>
    %303 = arith.mulf %295, %302 : vector<64x3xf32>
    %cst_153 = arith.constant dense<0.000000e+00> : vector<64x128xf32>
    %304 = tpu.matmul %303, %0, %cst_153 {dimension_numbers = #tpu.dot_dimension_numbers<[1], [0], [0], [1], [0, 0, 1, 1], [], []>} : vector<64x3xf32>, vector<3x128xf32>, vector<64x128xf32> -> vector<64x128xf32>
    %cst_154 = arith.constant 0.000000e+00 : f32
    %305 = vector.broadcast %cst_154 : f32 to vector<64x128xf32>
    %306 = arith.maximumf %304, %305 : vector<64x128xf32>
    %307 = arith.maximumf %293, %306 : vector<64x128xf32>
    %c0_155 = arith.constant 0 : index
    %c22 = arith.constant 22 : index
    %c0_156 = arith.constant 0 : index
    %c0_157 = arith.constant 0 : index
    %308 = vector.load %arg2[%c0_155, %c22, %c0_156, %c0_157] : memref<1x50x64x3xf32, #tpu.memory_space<vmem>>, vector<1x1x64x3xf32>
    %309 = vector.shape_cast %308 : vector<1x1x64x3xf32> to vector<64x3xf32>
    %310 = arith.mulf %309, %309 : vector<64x3xf32>
    %cst_158 = arith.constant dense<0.000000e+00> : vector<64xf32>
    %311 = vector.multi_reduction <add>, %310, %cst_158 [1] : vector<64x3xf32> to vector<64xf32>
    %312 = vector.shape_cast %311 : vector<64xf32> to vector<64x1xf32>
    %cst_159 = arith.constant 1.000000e-24 : f32
    %313 = vector.broadcast %cst_159 : f32 to vector<64x1xf32>
    %314 = arith.maximumf %312, %313 : vector<64x1xf32>
    %315 = math.rsqrt %314 : vector<64x1xf32>
    %316 = vector.broadcast %315 : vector<64x1xf32> to vector<64x3xf32>
    %317 = arith.mulf %309, %316 : vector<64x3xf32>
    %cst_160 = arith.constant dense<0.000000e+00> : vector<64x128xf32>
    %318 = tpu.matmul %317, %0, %cst_160 {dimension_numbers = #tpu.dot_dimension_numbers<[1], [0], [0], [1], [0, 0, 1, 1], [], []>} : vector<64x3xf32>, vector<3x128xf32>, vector<64x128xf32> -> vector<64x128xf32>
    %cst_161 = arith.constant 0.000000e+00 : f32
    %319 = vector.broadcast %cst_161 : f32 to vector<64x128xf32>
    %320 = arith.maximumf %318, %319 : vector<64x128xf32>
    %321 = arith.maximumf %307, %320 : vector<64x128xf32>
    %c0_162 = arith.constant 0 : index
    %c23 = arith.constant 23 : index
    %c0_163 = arith.constant 0 : index
    %c0_164 = arith.constant 0 : index
    %322 = vector.load %arg2[%c0_162, %c23, %c0_163, %c0_164] : memref<1x50x64x3xf32, #tpu.memory_space<vmem>>, vector<1x1x64x3xf32>
    %323 = vector.shape_cast %322 : vector<1x1x64x3xf32> to vector<64x3xf32>
    %324 = arith.mulf %323, %323 : vector<64x3xf32>
    %cst_165 = arith.constant dense<0.000000e+00> : vector<64xf32>
    %325 = vector.multi_reduction <add>, %324, %cst_165 [1] : vector<64x3xf32> to vector<64xf32>
    %326 = vector.shape_cast %325 : vector<64xf32> to vector<64x1xf32>
    %cst_166 = arith.constant 1.000000e-24 : f32
    %327 = vector.broadcast %cst_166 : f32 to vector<64x1xf32>
    %328 = arith.maximumf %326, %327 : vector<64x1xf32>
    %329 = math.rsqrt %328 : vector<64x1xf32>
    %330 = vector.broadcast %329 : vector<64x1xf32> to vector<64x3xf32>
    %331 = arith.mulf %323, %330 : vector<64x3xf32>
    %cst_167 = arith.constant dense<0.000000e+00> : vector<64x128xf32>
    %332 = tpu.matmul %331, %0, %cst_167 {dimension_numbers = #tpu.dot_dimension_numbers<[1], [0], [0], [1], [0, 0, 1, 1], [], []>} : vector<64x3xf32>, vector<3x128xf32>, vector<64x128xf32> -> vector<64x128xf32>
    %cst_168 = arith.constant 0.000000e+00 : f32
    %333 = vector.broadcast %cst_168 : f32 to vector<64x128xf32>
    %334 = arith.maximumf %332, %333 : vector<64x128xf32>
    %335 = arith.maximumf %321, %334 : vector<64x128xf32>
    %c0_169 = arith.constant 0 : index
    %c24 = arith.constant 24 : index
    %c0_170 = arith.constant 0 : index
    %c0_171 = arith.constant 0 : index
    %336 = vector.load %arg2[%c0_169, %c24, %c0_170, %c0_171] : memref<1x50x64x3xf32, #tpu.memory_space<vmem>>, vector<1x1x64x3xf32>
    %337 = vector.shape_cast %336 : vector<1x1x64x3xf32> to vector<64x3xf32>
    %338 = arith.mulf %337, %337 : vector<64x3xf32>
    %cst_172 = arith.constant dense<0.000000e+00> : vector<64xf32>
    %339 = vector.multi_reduction <add>, %338, %cst_172 [1] : vector<64x3xf32> to vector<64xf32>
    %340 = vector.shape_cast %339 : vector<64xf32> to vector<64x1xf32>
    %cst_173 = arith.constant 1.000000e-24 : f32
    %341 = vector.broadcast %cst_173 : f32 to vector<64x1xf32>
    %342 = arith.maximumf %340, %341 : vector<64x1xf32>
    %343 = math.rsqrt %342 : vector<64x1xf32>
    %344 = vector.broadcast %343 : vector<64x1xf32> to vector<64x3xf32>
    %345 = arith.mulf %337, %344 : vector<64x3xf32>
    %cst_174 = arith.constant dense<0.000000e+00> : vector<64x128xf32>
    %346 = tpu.matmul %345, %0, %cst_174 {dimension_numbers = #tpu.dot_dimension_numbers<[1], [0], [0], [1], [0, 0, 1, 1], [], []>} : vector<64x3xf32>, vector<3x128xf32>, vector<64x128xf32> -> vector<64x128xf32>
    %cst_175 = arith.constant 0.000000e+00 : f32
    %347 = vector.broadcast %cst_175 : f32 to vector<64x128xf32>
    %348 = arith.maximumf %346, %347 : vector<64x128xf32>
    %349 = arith.maximumf %335, %348 : vector<64x128xf32>
    %c0_176 = arith.constant 0 : index
    %c25 = arith.constant 25 : index
    %c0_177 = arith.constant 0 : index
    %c0_178 = arith.constant 0 : index
    %350 = vector.load %arg2[%c0_176, %c25, %c0_177, %c0_178] : memref<1x50x64x3xf32, #tpu.memory_space<vmem>>, vector<1x1x64x3xf32>
    %351 = vector.shape_cast %350 : vector<1x1x64x3xf32> to vector<64x3xf32>
    %352 = arith.mulf %351, %351 : vector<64x3xf32>
    %cst_179 = arith.constant dense<0.000000e+00> : vector<64xf32>
    %353 = vector.multi_reduction <add>, %352, %cst_179 [1] : vector<64x3xf32> to vector<64xf32>
    %354 = vector.shape_cast %353 : vector<64xf32> to vector<64x1xf32>
    %cst_180 = arith.constant 1.000000e-24 : f32
    %355 = vector.broadcast %cst_180 : f32 to vector<64x1xf32>
    %356 = arith.maximumf %354, %355 : vector<64x1xf32>
    %357 = math.rsqrt %356 : vector<64x1xf32>
    %358 = vector.broadcast %357 : vector<64x1xf32> to vector<64x3xf32>
    %359 = arith.mulf %351, %358 : vector<64x3xf32>
    %cst_181 = arith.constant dense<0.000000e+00> : vector<64x128xf32>
    %360 = tpu.matmul %359, %0, %cst_181 {dimension_numbers = #tpu.dot_dimension_numbers<[1], [0], [0], [1], [0, 0, 1, 1], [], []>} : vector<64x3xf32>, vector<3x128xf32>, vector<64x128xf32> -> vector<64x128xf32>
    %cst_182 = arith.constant 0.000000e+00 : f32
    %361 = vector.broadcast %cst_182 : f32 to vector<64x128xf32>
    %362 = arith.maximumf %360, %361 : vector<64x128xf32>
    %363 = arith.maximumf %349, %362 : vector<64x128xf32>
    %c0_183 = arith.constant 0 : index
    %c26 = arith.constant 26 : index
    %c0_184 = arith.constant 0 : index
    %c0_185 = arith.constant 0 : index
    %364 = vector.load %arg2[%c0_183, %c26, %c0_184, %c0_185] : memref<1x50x64x3xf32, #tpu.memory_space<vmem>>, vector<1x1x64x3xf32>
    %365 = vector.shape_cast %364 : vector<1x1x64x3xf32> to vector<64x3xf32>
    %366 = arith.mulf %365, %365 : vector<64x3xf32>
    %cst_186 = arith.constant dense<0.000000e+00> : vector<64xf32>
    %367 = vector.multi_reduction <add>, %366, %cst_186 [1] : vector<64x3xf32> to vector<64xf32>
    %368 = vector.shape_cast %367 : vector<64xf32> to vector<64x1xf32>
    %cst_187 = arith.constant 1.000000e-24 : f32
    %369 = vector.broadcast %cst_187 : f32 to vector<64x1xf32>
    %370 = arith.maximumf %368, %369 : vector<64x1xf32>
    %371 = math.rsqrt %370 : vector<64x1xf32>
    %372 = vector.broadcast %371 : vector<64x1xf32> to vector<64x3xf32>
    %373 = arith.mulf %365, %372 : vector<64x3xf32>
    %cst_188 = arith.constant dense<0.000000e+00> : vector<64x128xf32>
    %374 = tpu.matmul %373, %0, %cst_188 {dimension_numbers = #tpu.dot_dimension_numbers<[1], [0], [0], [1], [0, 0, 1, 1], [], []>} : vector<64x3xf32>, vector<3x128xf32>, vector<64x128xf32> -> vector<64x128xf32>
    %cst_189 = arith.constant 0.000000e+00 : f32
    %375 = vector.broadcast %cst_189 : f32 to vector<64x128xf32>
    %376 = arith.maximumf %374, %375 : vector<64x128xf32>
    %377 = arith.maximumf %363, %376 : vector<64x128xf32>
    %c0_190 = arith.constant 0 : index
    %c27 = arith.constant 27 : index
    %c0_191 = arith.constant 0 : index
    %c0_192 = arith.constant 0 : index
    %378 = vector.load %arg2[%c0_190, %c27, %c0_191, %c0_192] : memref<1x50x64x3xf32, #tpu.memory_space<vmem>>, vector<1x1x64x3xf32>
    %379 = vector.shape_cast %378 : vector<1x1x64x3xf32> to vector<64x3xf32>
    %380 = arith.mulf %379, %379 : vector<64x3xf32>
    %cst_193 = arith.constant dense<0.000000e+00> : vector<64xf32>
    %381 = vector.multi_reduction <add>, %380, %cst_193 [1] : vector<64x3xf32> to vector<64xf32>
    %382 = vector.shape_cast %381 : vector<64xf32> to vector<64x1xf32>
    %cst_194 = arith.constant 1.000000e-24 : f32
    %383 = vector.broadcast %cst_194 : f32 to vector<64x1xf32>
    %384 = arith.maximumf %382, %383 : vector<64x1xf32>
    %385 = math.rsqrt %384 : vector<64x1xf32>
    %386 = vector.broadcast %385 : vector<64x1xf32> to vector<64x3xf32>
    %387 = arith.mulf %379, %386 : vector<64x3xf32>
    %cst_195 = arith.constant dense<0.000000e+00> : vector<64x128xf32>
    %388 = tpu.matmul %387, %0, %cst_195 {dimension_numbers = #tpu.dot_dimension_numbers<[1], [0], [0], [1], [0, 0, 1, 1], [], []>} : vector<64x3xf32>, vector<3x128xf32>, vector<64x128xf32> -> vector<64x128xf32>
    %cst_196 = arith.constant 0.000000e+00 : f32
    %389 = vector.broadcast %cst_196 : f32 to vector<64x128xf32>
    %390 = arith.maximumf %388, %389 : vector<64x128xf32>
    %391 = arith.maximumf %377, %390 : vector<64x128xf32>
    %c0_197 = arith.constant 0 : index
    %c28 = arith.constant 28 : index
    %c0_198 = arith.constant 0 : index
    %c0_199 = arith.constant 0 : index
    %392 = vector.load %arg2[%c0_197, %c28, %c0_198, %c0_199] : memref<1x50x64x3xf32, #tpu.memory_space<vmem>>, vector<1x1x64x3xf32>
    %393 = vector.shape_cast %392 : vector<1x1x64x3xf32> to vector<64x3xf32>
    %394 = arith.mulf %393, %393 : vector<64x3xf32>
    %cst_200 = arith.constant dense<0.000000e+00> : vector<64xf32>
    %395 = vector.multi_reduction <add>, %394, %cst_200 [1] : vector<64x3xf32> to vector<64xf32>
    %396 = vector.shape_cast %395 : vector<64xf32> to vector<64x1xf32>
    %cst_201 = arith.constant 1.000000e-24 : f32
    %397 = vector.broadcast %cst_201 : f32 to vector<64x1xf32>
    %398 = arith.maximumf %396, %397 : vector<64x1xf32>
    %399 = math.rsqrt %398 : vector<64x1xf32>
    %400 = vector.broadcast %399 : vector<64x1xf32> to vector<64x3xf32>
    %401 = arith.mulf %393, %400 : vector<64x3xf32>
    %cst_202 = arith.constant dense<0.000000e+00> : vector<64x128xf32>
    %402 = tpu.matmul %401, %0, %cst_202 {dimension_numbers = #tpu.dot_dimension_numbers<[1], [0], [0], [1], [0, 0, 1, 1], [], []>} : vector<64x3xf32>, vector<3x128xf32>, vector<64x128xf32> -> vector<64x128xf32>
    %cst_203 = arith.constant 0.000000e+00 : f32
    %403 = vector.broadcast %cst_203 : f32 to vector<64x128xf32>
    %404 = arith.maximumf %402, %403 : vector<64x128xf32>
    %405 = arith.maximumf %391, %404 : vector<64x128xf32>
    %c0_204 = arith.constant 0 : index
    %c29 = arith.constant 29 : index
    %c0_205 = arith.constant 0 : index
    %c0_206 = arith.constant 0 : index
    %406 = vector.load %arg2[%c0_204, %c29, %c0_205, %c0_206] : memref<1x50x64x3xf32, #tpu.memory_space<vmem>>, vector<1x1x64x3xf32>
    %407 = vector.shape_cast %406 : vector<1x1x64x3xf32> to vector<64x3xf32>
    %408 = arith.mulf %407, %407 : vector<64x3xf32>
    %cst_207 = arith.constant dense<0.000000e+00> : vector<64xf32>
    %409 = vector.multi_reduction <add>, %408, %cst_207 [1] : vector<64x3xf32> to vector<64xf32>
    %410 = vector.shape_cast %409 : vector<64xf32> to vector<64x1xf32>
    %cst_208 = arith.constant 1.000000e-24 : f32
    %411 = vector.broadcast %cst_208 : f32 to vector<64x1xf32>
    %412 = arith.maximumf %410, %411 : vector<64x1xf32>
    %413 = math.rsqrt %412 : vector<64x1xf32>
    %414 = vector.broadcast %413 : vector<64x1xf32> to vector<64x3xf32>
    %415 = arith.mulf %407, %414 : vector<64x3xf32>
    %cst_209 = arith.constant dense<0.000000e+00> : vector<64x128xf32>
    %416 = tpu.matmul %415, %0, %cst_209 {dimension_numbers = #tpu.dot_dimension_numbers<[1], [0], [0], [1], [0, 0, 1, 1], [], []>} : vector<64x3xf32>, vector<3x128xf32>, vector<64x128xf32> -> vector<64x128xf32>
    %cst_210 = arith.constant 0.000000e+00 : f32
    %417 = vector.broadcast %cst_210 : f32 to vector<64x128xf32>
    %418 = arith.maximumf %416, %417 : vector<64x128xf32>
    %419 = arith.maximumf %405, %418 : vector<64x128xf32>
    %c0_211 = arith.constant 0 : index
    %c30 = arith.constant 30 : index
    %c0_212 = arith.constant 0 : index
    %c0_213 = arith.constant 0 : index
    %420 = vector.load %arg2[%c0_211, %c30, %c0_212, %c0_213] : memref<1x50x64x3xf32, #tpu.memory_space<vmem>>, vector<1x1x64x3xf32>
    %421 = vector.shape_cast %420 : vector<1x1x64x3xf32> to vector<64x3xf32>
    %422 = arith.mulf %421, %421 : vector<64x3xf32>
    %cst_214 = arith.constant dense<0.000000e+00> : vector<64xf32>
    %423 = vector.multi_reduction <add>, %422, %cst_214 [1] : vector<64x3xf32> to vector<64xf32>
    %424 = vector.shape_cast %423 : vector<64xf32> to vector<64x1xf32>
    %cst_215 = arith.constant 1.000000e-24 : f32
    %425 = vector.broadcast %cst_215 : f32 to vector<64x1xf32>
    %426 = arith.maximumf %424, %425 : vector<64x1xf32>
    %427 = math.rsqrt %426 : vector<64x1xf32>
    %428 = vector.broadcast %427 : vector<64x1xf32> to vector<64x3xf32>
    %429 = arith.mulf %421, %428 : vector<64x3xf32>
    %cst_216 = arith.constant dense<0.000000e+00> : vector<64x128xf32>
    %430 = tpu.matmul %429, %0, %cst_216 {dimension_numbers = #tpu.dot_dimension_numbers<[1], [0], [0], [1], [0, 0, 1, 1], [], []>} : vector<64x3xf32>, vector<3x128xf32>, vector<64x128xf32> -> vector<64x128xf32>
    %cst_217 = arith.constant 0.000000e+00 : f32
    %431 = vector.broadcast %cst_217 : f32 to vector<64x128xf32>
    %432 = arith.maximumf %430, %431 : vector<64x128xf32>
    %433 = arith.maximumf %419, %432 : vector<64x128xf32>
    %c0_218 = arith.constant 0 : index
    %c31 = arith.constant 31 : index
    %c0_219 = arith.constant 0 : index
    %c0_220 = arith.constant 0 : index
    %434 = vector.load %arg2[%c0_218, %c31, %c0_219, %c0_220] : memref<1x50x64x3xf32, #tpu.memory_space<vmem>>, vector<1x1x64x3xf32>
    %435 = vector.shape_cast %434 : vector<1x1x64x3xf32> to vector<64x3xf32>
    %436 = arith.mulf %435, %435 : vector<64x3xf32>
    %cst_221 = arith.constant dense<0.000000e+00> : vector<64xf32>
    %437 = vector.multi_reduction <add>, %436, %cst_221 [1] : vector<64x3xf32> to vector<64xf32>
    %438 = vector.shape_cast %437 : vector<64xf32> to vector<64x1xf32>
    %cst_222 = arith.constant 1.000000e-24 : f32
    %439 = vector.broadcast %cst_222 : f32 to vector<64x1xf32>
    %440 = arith.maximumf %438, %439 : vector<64x1xf32>
    %441 = math.rsqrt %440 : vector<64x1xf32>
    %442 = vector.broadcast %441 : vector<64x1xf32> to vector<64x3xf32>
    %443 = arith.mulf %435, %442 : vector<64x3xf32>
    %cst_223 = arith.constant dense<0.000000e+00> : vector<64x128xf32>
    %444 = tpu.matmul %443, %0, %cst_223 {dimension_numbers = #tpu.dot_dimension_numbers<[1], [0], [0], [1], [0, 0, 1, 1], [], []>} : vector<64x3xf32>, vector<3x128xf32>, vector<64x128xf32> -> vector<64x128xf32>
    %cst_224 = arith.constant 0.000000e+00 : f32
    %445 = vector.broadcast %cst_224 : f32 to vector<64x128xf32>
    %446 = arith.maximumf %444, %445 : vector<64x128xf32>
    %447 = arith.maximumf %433, %446 : vector<64x128xf32>
    %c0_225 = arith.constant 0 : index
    %c32 = arith.constant 32 : index
    %c0_226 = arith.constant 0 : index
    %c0_227 = arith.constant 0 : index
    %448 = vector.load %arg2[%c0_225, %c32, %c0_226, %c0_227] : memref<1x50x64x3xf32, #tpu.memory_space<vmem>>, vector<1x1x64x3xf32>
    %449 = vector.shape_cast %448 : vector<1x1x64x3xf32> to vector<64x3xf32>
    %450 = arith.mulf %449, %449 : vector<64x3xf32>
    %cst_228 = arith.constant dense<0.000000e+00> : vector<64xf32>
    %451 = vector.multi_reduction <add>, %450, %cst_228 [1] : vector<64x3xf32> to vector<64xf32>
    %452 = vector.shape_cast %451 : vector<64xf32> to vector<64x1xf32>
    %cst_229 = arith.constant 1.000000e-24 : f32
    %453 = vector.broadcast %cst_229 : f32 to vector<64x1xf32>
    %454 = arith.maximumf %452, %453 : vector<64x1xf32>
    %455 = math.rsqrt %454 : vector<64x1xf32>
    %456 = vector.broadcast %455 : vector<64x1xf32> to vector<64x3xf32>
    %457 = arith.mulf %449, %456 : vector<64x3xf32>
    %cst_230 = arith.constant dense<0.000000e+00> : vector<64x128xf32>
    %458 = tpu.matmul %457, %0, %cst_230 {dimension_numbers = #tpu.dot_dimension_numbers<[1], [0], [0], [1], [0, 0, 1, 1], [], []>} : vector<64x3xf32>, vector<3x128xf32>, vector<64x128xf32> -> vector<64x128xf32>
    %cst_231 = arith.constant 0.000000e+00 : f32
    %459 = vector.broadcast %cst_231 : f32 to vector<64x128xf32>
    %460 = arith.maximumf %458, %459 : vector<64x128xf32>
    %461 = arith.maximumf %447, %460 : vector<64x128xf32>
    %c0_232 = arith.constant 0 : index
    %c33 = arith.constant 33 : index
    %c0_233 = arith.constant 0 : index
    %c0_234 = arith.constant 0 : index
    %462 = vector.load %arg2[%c0_232, %c33, %c0_233, %c0_234] : memref<1x50x64x3xf32, #tpu.memory_space<vmem>>, vector<1x1x64x3xf32>
    %463 = vector.shape_cast %462 : vector<1x1x64x3xf32> to vector<64x3xf32>
    %464 = arith.mulf %463, %463 : vector<64x3xf32>
    %cst_235 = arith.constant dense<0.000000e+00> : vector<64xf32>
    %465 = vector.multi_reduction <add>, %464, %cst_235 [1] : vector<64x3xf32> to vector<64xf32>
    %466 = vector.shape_cast %465 : vector<64xf32> to vector<64x1xf32>
    %cst_236 = arith.constant 1.000000e-24 : f32
    %467 = vector.broadcast %cst_236 : f32 to vector<64x1xf32>
    %468 = arith.maximumf %466, %467 : vector<64x1xf32>
    %469 = math.rsqrt %468 : vector<64x1xf32>
    %470 = vector.broadcast %469 : vector<64x1xf32> to vector<64x3xf32>
    %471 = arith.mulf %463, %470 : vector<64x3xf32>
    %cst_237 = arith.constant dense<0.000000e+00> : vector<64x128xf32>
    %472 = tpu.matmul %471, %0, %cst_237 {dimension_numbers = #tpu.dot_dimension_numbers<[1], [0], [0], [1], [0, 0, 1, 1], [], []>} : vector<64x3xf32>, vector<3x128xf32>, vector<64x128xf32> -> vector<64x128xf32>
    %cst_238 = arith.constant 0.000000e+00 : f32
    %473 = vector.broadcast %cst_238 : f32 to vector<64x128xf32>
    %474 = arith.maximumf %472, %473 : vector<64x128xf32>
    %475 = arith.maximumf %461, %474 : vector<64x128xf32>
    %c0_239 = arith.constant 0 : index
    %c34 = arith.constant 34 : index
    %c0_240 = arith.constant 0 : index
    %c0_241 = arith.constant 0 : index
    %476 = vector.load %arg2[%c0_239, %c34, %c0_240, %c0_241] : memref<1x50x64x3xf32, #tpu.memory_space<vmem>>, vector<1x1x64x3xf32>
    %477 = vector.shape_cast %476 : vector<1x1x64x3xf32> to vector<64x3xf32>
    %478 = arith.mulf %477, %477 : vector<64x3xf32>
    %cst_242 = arith.constant dense<0.000000e+00> : vector<64xf32>
    %479 = vector.multi_reduction <add>, %478, %cst_242 [1] : vector<64x3xf32> to vector<64xf32>
    %480 = vector.shape_cast %479 : vector<64xf32> to vector<64x1xf32>
    %cst_243 = arith.constant 1.000000e-24 : f32
    %481 = vector.broadcast %cst_243 : f32 to vector<64x1xf32>
    %482 = arith.maximumf %480, %481 : vector<64x1xf32>
    %483 = math.rsqrt %482 : vector<64x1xf32>
    %484 = vector.broadcast %483 : vector<64x1xf32> to vector<64x3xf32>
    %485 = arith.mulf %477, %484 : vector<64x3xf32>
    %cst_244 = arith.constant dense<0.000000e+00> : vector<64x128xf32>
    %486 = tpu.matmul %485, %0, %cst_244 {dimension_numbers = #tpu.dot_dimension_numbers<[1], [0], [0], [1], [0, 0, 1, 1], [], []>} : vector<64x3xf32>, vector<3x128xf32>, vector<64x128xf32> -> vector<64x128xf32>
    %cst_245 = arith.constant 0.000000e+00 : f32
    %487 = vector.broadcast %cst_245 : f32 to vector<64x128xf32>
    %488 = arith.maximumf %486, %487 : vector<64x128xf32>
    %489 = arith.maximumf %475, %488 : vector<64x128xf32>
    %c0_246 = arith.constant 0 : index
    %c35 = arith.constant 35 : index
    %c0_247 = arith.constant 0 : index
    %c0_248 = arith.constant 0 : index
    %490 = vector.load %arg2[%c0_246, %c35, %c0_247, %c0_248] : memref<1x50x64x3xf32, #tpu.memory_space<vmem>>, vector<1x1x64x3xf32>
    %491 = vector.shape_cast %490 : vector<1x1x64x3xf32> to vector<64x3xf32>
    %492 = arith.mulf %491, %491 : vector<64x3xf32>
    %cst_249 = arith.constant dense<0.000000e+00> : vector<64xf32>
    %493 = vector.multi_reduction <add>, %492, %cst_249 [1] : vector<64x3xf32> to vector<64xf32>
    %494 = vector.shape_cast %493 : vector<64xf32> to vector<64x1xf32>
    %cst_250 = arith.constant 1.000000e-24 : f32
    %495 = vector.broadcast %cst_250 : f32 to vector<64x1xf32>
    %496 = arith.maximumf %494, %495 : vector<64x1xf32>
    %497 = math.rsqrt %496 : vector<64x1xf32>
    %498 = vector.broadcast %497 : vector<64x1xf32> to vector<64x3xf32>
    %499 = arith.mulf %491, %498 : vector<64x3xf32>
    %cst_251 = arith.constant dense<0.000000e+00> : vector<64x128xf32>
    %500 = tpu.matmul %499, %0, %cst_251 {dimension_numbers = #tpu.dot_dimension_numbers<[1], [0], [0], [1], [0, 0, 1, 1], [], []>} : vector<64x3xf32>, vector<3x128xf32>, vector<64x128xf32> -> vector<64x128xf32>
    %cst_252 = arith.constant 0.000000e+00 : f32
    %501 = vector.broadcast %cst_252 : f32 to vector<64x128xf32>
    %502 = arith.maximumf %500, %501 : vector<64x128xf32>
    %503 = arith.maximumf %489, %502 : vector<64x128xf32>
    %c0_253 = arith.constant 0 : index
    %c36 = arith.constant 36 : index
    %c0_254 = arith.constant 0 : index
    %c0_255 = arith.constant 0 : index
    %504 = vector.load %arg2[%c0_253, %c36, %c0_254, %c0_255] : memref<1x50x64x3xf32, #tpu.memory_space<vmem>>, vector<1x1x64x3xf32>
    %505 = vector.shape_cast %504 : vector<1x1x64x3xf32> to vector<64x3xf32>
    %506 = arith.mulf %505, %505 : vector<64x3xf32>
    %cst_256 = arith.constant dense<0.000000e+00> : vector<64xf32>
    %507 = vector.multi_reduction <add>, %506, %cst_256 [1] : vector<64x3xf32> to vector<64xf32>
    %508 = vector.shape_cast %507 : vector<64xf32> to vector<64x1xf32>
    %cst_257 = arith.constant 1.000000e-24 : f32
    %509 = vector.broadcast %cst_257 : f32 to vector<64x1xf32>
    %510 = arith.maximumf %508, %509 : vector<64x1xf32>
    %511 = math.rsqrt %510 : vector<64x1xf32>
    %512 = vector.broadcast %511 : vector<64x1xf32> to vector<64x3xf32>
    %513 = arith.mulf %505, %512 : vector<64x3xf32>
    %cst_258 = arith.constant dense<0.000000e+00> : vector<64x128xf32>
    %514 = tpu.matmul %513, %0, %cst_258 {dimension_numbers = #tpu.dot_dimension_numbers<[1], [0], [0], [1], [0, 0, 1, 1], [], []>} : vector<64x3xf32>, vector<3x128xf32>, vector<64x128xf32> -> vector<64x128xf32>
    %cst_259 = arith.constant 0.000000e+00 : f32
    %515 = vector.broadcast %cst_259 : f32 to vector<64x128xf32>
    %516 = arith.maximumf %514, %515 : vector<64x128xf32>
    %517 = arith.maximumf %503, %516 : vector<64x128xf32>
    %c0_260 = arith.constant 0 : index
    %c37 = arith.constant 37 : index
    %c0_261 = arith.constant 0 : index
    %c0_262 = arith.constant 0 : index
    %518 = vector.load %arg2[%c0_260, %c37, %c0_261, %c0_262] : memref<1x50x64x3xf32, #tpu.memory_space<vmem>>, vector<1x1x64x3xf32>
    %519 = vector.shape_cast %518 : vector<1x1x64x3xf32> to vector<64x3xf32>
    %520 = arith.mulf %519, %519 : vector<64x3xf32>
    %cst_263 = arith.constant dense<0.000000e+00> : vector<64xf32>
    %521 = vector.multi_reduction <add>, %520, %cst_263 [1] : vector<64x3xf32> to vector<64xf32>
    %522 = vector.shape_cast %521 : vector<64xf32> to vector<64x1xf32>
    %cst_264 = arith.constant 1.000000e-24 : f32
    %523 = vector.broadcast %cst_264 : f32 to vector<64x1xf32>
    %524 = arith.maximumf %522, %523 : vector<64x1xf32>
    %525 = math.rsqrt %524 : vector<64x1xf32>
    %526 = vector.broadcast %525 : vector<64x1xf32> to vector<64x3xf32>
    %527 = arith.mulf %519, %526 : vector<64x3xf32>
    %cst_265 = arith.constant dense<0.000000e+00> : vector<64x128xf32>
    %528 = tpu.matmul %527, %0, %cst_265 {dimension_numbers = #tpu.dot_dimension_numbers<[1], [0], [0], [1], [0, 0, 1, 1], [], []>} : vector<64x3xf32>, vector<3x128xf32>, vector<64x128xf32> -> vector<64x128xf32>
    %cst_266 = arith.constant 0.000000e+00 : f32
    %529 = vector.broadcast %cst_266 : f32 to vector<64x128xf32>
    %530 = arith.maximumf %528, %529 : vector<64x128xf32>
    %531 = arith.maximumf %517, %530 : vector<64x128xf32>
    %c0_267 = arith.constant 0 : index
    %c38 = arith.constant 38 : index
    %c0_268 = arith.constant 0 : index
    %c0_269 = arith.constant 0 : index
    %532 = vector.load %arg2[%c0_267, %c38, %c0_268, %c0_269] : memref<1x50x64x3xf32, #tpu.memory_space<vmem>>, vector<1x1x64x3xf32>
    %533 = vector.shape_cast %532 : vector<1x1x64x3xf32> to vector<64x3xf32>
    %534 = arith.mulf %533, %533 : vector<64x3xf32>
    %cst_270 = arith.constant dense<0.000000e+00> : vector<64xf32>
    %535 = vector.multi_reduction <add>, %534, %cst_270 [1] : vector<64x3xf32> to vector<64xf32>
    %536 = vector.shape_cast %535 : vector<64xf32> to vector<64x1xf32>
    %cst_271 = arith.constant 1.000000e-24 : f32
    %537 = vector.broadcast %cst_271 : f32 to vector<64x1xf32>
    %538 = arith.maximumf %536, %537 : vector<64x1xf32>
    %539 = math.rsqrt %538 : vector<64x1xf32>
    %540 = vector.broadcast %539 : vector<64x1xf32> to vector<64x3xf32>
    %541 = arith.mulf %533, %540 : vector<64x3xf32>
    %cst_272 = arith.constant dense<0.000000e+00> : vector<64x128xf32>
    %542 = tpu.matmul %541, %0, %cst_272 {dimension_numbers = #tpu.dot_dimension_numbers<[1], [0], [0], [1], [0, 0, 1, 1], [], []>} : vector<64x3xf32>, vector<3x128xf32>, vector<64x128xf32> -> vector<64x128xf32>
    %cst_273 = arith.constant 0.000000e+00 : f32
    %543 = vector.broadcast %cst_273 : f32 to vector<64x128xf32>
    %544 = arith.maximumf %542, %543 : vector<64x128xf32>
    %545 = arith.maximumf %531, %544 : vector<64x128xf32>
    %c0_274 = arith.constant 0 : index
    %c39 = arith.constant 39 : index
    %c0_275 = arith.constant 0 : index
    %c0_276 = arith.constant 0 : index
    %546 = vector.load %arg2[%c0_274, %c39, %c0_275, %c0_276] : memref<1x50x64x3xf32, #tpu.memory_space<vmem>>, vector<1x1x64x3xf32>
    %547 = vector.shape_cast %546 : vector<1x1x64x3xf32> to vector<64x3xf32>
    %548 = arith.mulf %547, %547 : vector<64x3xf32>
    %cst_277 = arith.constant dense<0.000000e+00> : vector<64xf32>
    %549 = vector.multi_reduction <add>, %548, %cst_277 [1] : vector<64x3xf32> to vector<64xf32>
    %550 = vector.shape_cast %549 : vector<64xf32> to vector<64x1xf32>
    %cst_278 = arith.constant 1.000000e-24 : f32
    %551 = vector.broadcast %cst_278 : f32 to vector<64x1xf32>
    %552 = arith.maximumf %550, %551 : vector<64x1xf32>
    %553 = math.rsqrt %552 : vector<64x1xf32>
    %554 = vector.broadcast %553 : vector<64x1xf32> to vector<64x3xf32>
    %555 = arith.mulf %547, %554 : vector<64x3xf32>
    %cst_279 = arith.constant dense<0.000000e+00> : vector<64x128xf32>
    %556 = tpu.matmul %555, %0, %cst_279 {dimension_numbers = #tpu.dot_dimension_numbers<[1], [0], [0], [1], [0, 0, 1, 1], [], []>} : vector<64x3xf32>, vector<3x128xf32>, vector<64x128xf32> -> vector<64x128xf32>
    %cst_280 = arith.constant 0.000000e+00 : f32
    %557 = vector.broadcast %cst_280 : f32 to vector<64x128xf32>
    %558 = arith.maximumf %556, %557 : vector<64x128xf32>
    %559 = arith.maximumf %545, %558 : vector<64x128xf32>
    %c0_281 = arith.constant 0 : index
    %c40 = arith.constant 40 : index
    %c0_282 = arith.constant 0 : index
    %c0_283 = arith.constant 0 : index
    %560 = vector.load %arg2[%c0_281, %c40, %c0_282, %c0_283] : memref<1x50x64x3xf32, #tpu.memory_space<vmem>>, vector<1x1x64x3xf32>
    %561 = vector.shape_cast %560 : vector<1x1x64x3xf32> to vector<64x3xf32>
    %562 = arith.mulf %561, %561 : vector<64x3xf32>
    %cst_284 = arith.constant dense<0.000000e+00> : vector<64xf32>
    %563 = vector.multi_reduction <add>, %562, %cst_284 [1] : vector<64x3xf32> to vector<64xf32>
    %564 = vector.shape_cast %563 : vector<64xf32> to vector<64x1xf32>
    %cst_285 = arith.constant 1.000000e-24 : f32
    %565 = vector.broadcast %cst_285 : f32 to vector<64x1xf32>
    %566 = arith.maximumf %564, %565 : vector<64x1xf32>
    %567 = math.rsqrt %566 : vector<64x1xf32>
    %568 = vector.broadcast %567 : vector<64x1xf32> to vector<64x3xf32>
    %569 = arith.mulf %561, %568 : vector<64x3xf32>
    %cst_286 = arith.constant dense<0.000000e+00> : vector<64x128xf32>
    %570 = tpu.matmul %569, %0, %cst_286 {dimension_numbers = #tpu.dot_dimension_numbers<[1], [0], [0], [1], [0, 0, 1, 1], [], []>} : vector<64x3xf32>, vector<3x128xf32>, vector<64x128xf32> -> vector<64x128xf32>
    %cst_287 = arith.constant 0.000000e+00 : f32
    %571 = vector.broadcast %cst_287 : f32 to vector<64x128xf32>
    %572 = arith.maximumf %570, %571 : vector<64x128xf32>
    %573 = arith.maximumf %559, %572 : vector<64x128xf32>
    %c0_288 = arith.constant 0 : index
    %c41 = arith.constant 41 : index
    %c0_289 = arith.constant 0 : index
    %c0_290 = arith.constant 0 : index
    %574 = vector.load %arg2[%c0_288, %c41, %c0_289, %c0_290] : memref<1x50x64x3xf32, #tpu.memory_space<vmem>>, vector<1x1x64x3xf32>
    %575 = vector.shape_cast %574 : vector<1x1x64x3xf32> to vector<64x3xf32>
    %576 = arith.mulf %575, %575 : vector<64x3xf32>
    %cst_291 = arith.constant dense<0.000000e+00> : vector<64xf32>
    %577 = vector.multi_reduction <add>, %576, %cst_291 [1] : vector<64x3xf32> to vector<64xf32>
    %578 = vector.shape_cast %577 : vector<64xf32> to vector<64x1xf32>
    %cst_292 = arith.constant 1.000000e-24 : f32
    %579 = vector.broadcast %cst_292 : f32 to vector<64x1xf32>
    %580 = arith.maximumf %578, %579 : vector<64x1xf32>
    %581 = math.rsqrt %580 : vector<64x1xf32>
    %582 = vector.broadcast %581 : vector<64x1xf32> to vector<64x3xf32>
    %583 = arith.mulf %575, %582 : vector<64x3xf32>
    %cst_293 = arith.constant dense<0.000000e+00> : vector<64x128xf32>
    %584 = tpu.matmul %583, %0, %cst_293 {dimension_numbers = #tpu.dot_dimension_numbers<[1], [0], [0], [1], [0, 0, 1, 1], [], []>} : vector<64x3xf32>, vector<3x128xf32>, vector<64x128xf32> -> vector<64x128xf32>
    %cst_294 = arith.constant 0.000000e+00 : f32
    %585 = vector.broadcast %cst_294 : f32 to vector<64x128xf32>
    %586 = arith.maximumf %584, %585 : vector<64x128xf32>
    %587 = arith.maximumf %573, %586 : vector<64x128xf32>
    %c0_295 = arith.constant 0 : index
    %c42 = arith.constant 42 : index
    %c0_296 = arith.constant 0 : index
    %c0_297 = arith.constant 0 : index
    %588 = vector.load %arg2[%c0_295, %c42, %c0_296, %c0_297] : memref<1x50x64x3xf32, #tpu.memory_space<vmem>>, vector<1x1x64x3xf32>
    %589 = vector.shape_cast %588 : vector<1x1x64x3xf32> to vector<64x3xf32>
    %590 = arith.mulf %589, %589 : vector<64x3xf32>
    %cst_298 = arith.constant dense<0.000000e+00> : vector<64xf32>
    %591 = vector.multi_reduction <add>, %590, %cst_298 [1] : vector<64x3xf32> to vector<64xf32>
    %592 = vector.shape_cast %591 : vector<64xf32> to vector<64x1xf32>
    %cst_299 = arith.constant 1.000000e-24 : f32
    %593 = vector.broadcast %cst_299 : f32 to vector<64x1xf32>
    %594 = arith.maximumf %592, %593 : vector<64x1xf32>
    %595 = math.rsqrt %594 : vector<64x1xf32>
    %596 = vector.broadcast %595 : vector<64x1xf32> to vector<64x3xf32>
    %597 = arith.mulf %589, %596 : vector<64x3xf32>
    %cst_300 = arith.constant dense<0.000000e+00> : vector<64x128xf32>
    %598 = tpu.matmul %597, %0, %cst_300 {dimension_numbers = #tpu.dot_dimension_numbers<[1], [0], [0], [1], [0, 0, 1, 1], [], []>} : vector<64x3xf32>, vector<3x128xf32>, vector<64x128xf32> -> vector<64x128xf32>
    %cst_301 = arith.constant 0.000000e+00 : f32
    %599 = vector.broadcast %cst_301 : f32 to vector<64x128xf32>
    %600 = arith.maximumf %598, %599 : vector<64x128xf32>
    %601 = arith.maximumf %587, %600 : vector<64x128xf32>
    %c0_302 = arith.constant 0 : index
    %c43 = arith.constant 43 : index
    %c0_303 = arith.constant 0 : index
    %c0_304 = arith.constant 0 : index
    %602 = vector.load %arg2[%c0_302, %c43, %c0_303, %c0_304] : memref<1x50x64x3xf32, #tpu.memory_space<vmem>>, vector<1x1x64x3xf32>
    %603 = vector.shape_cast %602 : vector<1x1x64x3xf32> to vector<64x3xf32>
    %604 = arith.mulf %603, %603 : vector<64x3xf32>
    %cst_305 = arith.constant dense<0.000000e+00> : vector<64xf32>
    %605 = vector.multi_reduction <add>, %604, %cst_305 [1] : vector<64x3xf32> to vector<64xf32>
    %606 = vector.shape_cast %605 : vector<64xf32> to vector<64x1xf32>
    %cst_306 = arith.constant 1.000000e-24 : f32
    %607 = vector.broadcast %cst_306 : f32 to vector<64x1xf32>
    %608 = arith.maximumf %606, %607 : vector<64x1xf32>
    %609 = math.rsqrt %608 : vector<64x1xf32>
    %610 = vector.broadcast %609 : vector<64x1xf32> to vector<64x3xf32>
    %611 = arith.mulf %603, %610 : vector<64x3xf32>
    %cst_307 = arith.constant dense<0.000000e+00> : vector<64x128xf32>
    %612 = tpu.matmul %611, %0, %cst_307 {dimension_numbers = #tpu.dot_dimension_numbers<[1], [0], [0], [1], [0, 0, 1, 1], [], []>} : vector<64x3xf32>, vector<3x128xf32>, vector<64x128xf32> -> vector<64x128xf32>
    %cst_308 = arith.constant 0.000000e+00 : f32
    %613 = vector.broadcast %cst_308 : f32 to vector<64x128xf32>
    %614 = arith.maximumf %612, %613 : vector<64x128xf32>
    %615 = arith.maximumf %601, %614 : vector<64x128xf32>
    %c0_309 = arith.constant 0 : index
    %c44 = arith.constant 44 : index
    %c0_310 = arith.constant 0 : index
    %c0_311 = arith.constant 0 : index
    %616 = vector.load %arg2[%c0_309, %c44, %c0_310, %c0_311] : memref<1x50x64x3xf32, #tpu.memory_space<vmem>>, vector<1x1x64x3xf32>
    %617 = vector.shape_cast %616 : vector<1x1x64x3xf32> to vector<64x3xf32>
    %618 = arith.mulf %617, %617 : vector<64x3xf32>
    %cst_312 = arith.constant dense<0.000000e+00> : vector<64xf32>
    %619 = vector.multi_reduction <add>, %618, %cst_312 [1] : vector<64x3xf32> to vector<64xf32>
    %620 = vector.shape_cast %619 : vector<64xf32> to vector<64x1xf32>
    %cst_313 = arith.constant 1.000000e-24 : f32
    %621 = vector.broadcast %cst_313 : f32 to vector<64x1xf32>
    %622 = arith.maximumf %620, %621 : vector<64x1xf32>
    %623 = math.rsqrt %622 : vector<64x1xf32>
    %624 = vector.broadcast %623 : vector<64x1xf32> to vector<64x3xf32>
    %625 = arith.mulf %617, %624 : vector<64x3xf32>
    %cst_314 = arith.constant dense<0.000000e+00> : vector<64x128xf32>
    %626 = tpu.matmul %625, %0, %cst_314 {dimension_numbers = #tpu.dot_dimension_numbers<[1], [0], [0], [1], [0, 0, 1, 1], [], []>} : vector<64x3xf32>, vector<3x128xf32>, vector<64x128xf32> -> vector<64x128xf32>
    %cst_315 = arith.constant 0.000000e+00 : f32
    %627 = vector.broadcast %cst_315 : f32 to vector<64x128xf32>
    %628 = arith.maximumf %626, %627 : vector<64x128xf32>
    %629 = arith.maximumf %615, %628 : vector<64x128xf32>
    %c0_316 = arith.constant 0 : index
    %c45 = arith.constant 45 : index
    %c0_317 = arith.constant 0 : index
    %c0_318 = arith.constant 0 : index
    %630 = vector.load %arg2[%c0_316, %c45, %c0_317, %c0_318] : memref<1x50x64x3xf32, #tpu.memory_space<vmem>>, vector<1x1x64x3xf32>
    %631 = vector.shape_cast %630 : vector<1x1x64x3xf32> to vector<64x3xf32>
    %632 = arith.mulf %631, %631 : vector<64x3xf32>
    %cst_319 = arith.constant dense<0.000000e+00> : vector<64xf32>
    %633 = vector.multi_reduction <add>, %632, %cst_319 [1] : vector<64x3xf32> to vector<64xf32>
    %634 = vector.shape_cast %633 : vector<64xf32> to vector<64x1xf32>
    %cst_320 = arith.constant 1.000000e-24 : f32
    %635 = vector.broadcast %cst_320 : f32 to vector<64x1xf32>
    %636 = arith.maximumf %634, %635 : vector<64x1xf32>
    %637 = math.rsqrt %636 : vector<64x1xf32>
    %638 = vector.broadcast %637 : vector<64x1xf32> to vector<64x3xf32>
    %639 = arith.mulf %631, %638 : vector<64x3xf32>
    %cst_321 = arith.constant dense<0.000000e+00> : vector<64x128xf32>
    %640 = tpu.matmul %639, %0, %cst_321 {dimension_numbers = #tpu.dot_dimension_numbers<[1], [0], [0], [1], [0, 0, 1, 1], [], []>} : vector<64x3xf32>, vector<3x128xf32>, vector<64x128xf32> -> vector<64x128xf32>
    %cst_322 = arith.constant 0.000000e+00 : f32
    %641 = vector.broadcast %cst_322 : f32 to vector<64x128xf32>
    %642 = arith.maximumf %640, %641 : vector<64x128xf32>
    %643 = arith.maximumf %629, %642 : vector<64x128xf32>
    %c0_323 = arith.constant 0 : index
    %c46 = arith.constant 46 : index
    %c0_324 = arith.constant 0 : index
    %c0_325 = arith.constant 0 : index
    %644 = vector.load %arg2[%c0_323, %c46, %c0_324, %c0_325] : memref<1x50x64x3xf32, #tpu.memory_space<vmem>>, vector<1x1x64x3xf32>
    %645 = vector.shape_cast %644 : vector<1x1x64x3xf32> to vector<64x3xf32>
    %646 = arith.mulf %645, %645 : vector<64x3xf32>
    %cst_326 = arith.constant dense<0.000000e+00> : vector<64xf32>
    %647 = vector.multi_reduction <add>, %646, %cst_326 [1] : vector<64x3xf32> to vector<64xf32>
    %648 = vector.shape_cast %647 : vector<64xf32> to vector<64x1xf32>
    %cst_327 = arith.constant 1.000000e-24 : f32
    %649 = vector.broadcast %cst_327 : f32 to vector<64x1xf32>
    %650 = arith.maximumf %648, %649 : vector<64x1xf32>
    %651 = math.rsqrt %650 : vector<64x1xf32>
    %652 = vector.broadcast %651 : vector<64x1xf32> to vector<64x3xf32>
    %653 = arith.mulf %645, %652 : vector<64x3xf32>
    %cst_328 = arith.constant dense<0.000000e+00> : vector<64x128xf32>
    %654 = tpu.matmul %653, %0, %cst_328 {dimension_numbers = #tpu.dot_dimension_numbers<[1], [0], [0], [1], [0, 0, 1, 1], [], []>} : vector<64x3xf32>, vector<3x128xf32>, vector<64x128xf32> -> vector<64x128xf32>
    %cst_329 = arith.constant 0.000000e+00 : f32
    %655 = vector.broadcast %cst_329 : f32 to vector<64x128xf32>
    %656 = arith.maximumf %654, %655 : vector<64x128xf32>
    %657 = arith.maximumf %643, %656 : vector<64x128xf32>
    %c0_330 = arith.constant 0 : index
    %c47 = arith.constant 47 : index
    %c0_331 = arith.constant 0 : index
    %c0_332 = arith.constant 0 : index
    %658 = vector.load %arg2[%c0_330, %c47, %c0_331, %c0_332] : memref<1x50x64x3xf32, #tpu.memory_space<vmem>>, vector<1x1x64x3xf32>
    %659 = vector.shape_cast %658 : vector<1x1x64x3xf32> to vector<64x3xf32>
    %660 = arith.mulf %659, %659 : vector<64x3xf32>
    %cst_333 = arith.constant dense<0.000000e+00> : vector<64xf32>
    %661 = vector.multi_reduction <add>, %660, %cst_333 [1] : vector<64x3xf32> to vector<64xf32>
    %662 = vector.shape_cast %661 : vector<64xf32> to vector<64x1xf32>
    %cst_334 = arith.constant 1.000000e-24 : f32
    %663 = vector.broadcast %cst_334 : f32 to vector<64x1xf32>
    %664 = arith.maximumf %662, %663 : vector<64x1xf32>
    %665 = math.rsqrt %664 : vector<64x1xf32>
    %666 = vector.broadcast %665 : vector<64x1xf32> to vector<64x3xf32>
    %667 = arith.mulf %659, %666 : vector<64x3xf32>
    %cst_335 = arith.constant dense<0.000000e+00> : vector<64x128xf32>
    %668 = tpu.matmul %667, %0, %cst_335 {dimension_numbers = #tpu.dot_dimension_numbers<[1], [0], [0], [1], [0, 0, 1, 1], [], []>} : vector<64x3xf32>, vector<3x128xf32>, vector<64x128xf32> -> vector<64x128xf32>
    %cst_336 = arith.constant 0.000000e+00 : f32
    %669 = vector.broadcast %cst_336 : f32 to vector<64x128xf32>
    %670 = arith.maximumf %668, %669 : vector<64x128xf32>
    %671 = arith.maximumf %657, %670 : vector<64x128xf32>
    %c0_337 = arith.constant 0 : index
    %c48 = arith.constant 48 : index
    %c0_338 = arith.constant 0 : index
    %c0_339 = arith.constant 0 : index
    %672 = vector.load %arg2[%c0_337, %c48, %c0_338, %c0_339] : memref<1x50x64x3xf32, #tpu.memory_space<vmem>>, vector<1x1x64x3xf32>
    %673 = vector.shape_cast %672 : vector<1x1x64x3xf32> to vector<64x3xf32>
    %674 = arith.mulf %673, %673 : vector<64x3xf32>
    %cst_340 = arith.constant dense<0.000000e+00> : vector<64xf32>
    %675 = vector.multi_reduction <add>, %674, %cst_340 [1] : vector<64x3xf32> to vector<64xf32>
    %676 = vector.shape_cast %675 : vector<64xf32> to vector<64x1xf32>
    %cst_341 = arith.constant 1.000000e-24 : f32
    %677 = vector.broadcast %cst_341 : f32 to vector<64x1xf32>
    %678 = arith.maximumf %676, %677 : vector<64x1xf32>
    %679 = math.rsqrt %678 : vector<64x1xf32>
    %680 = vector.broadcast %679 : vector<64x1xf32> to vector<64x3xf32>
    %681 = arith.mulf %673, %680 : vector<64x3xf32>
    %cst_342 = arith.constant dense<0.000000e+00> : vector<64x128xf32>
    %682 = tpu.matmul %681, %0, %cst_342 {dimension_numbers = #tpu.dot_dimension_numbers<[1], [0], [0], [1], [0, 0, 1, 1], [], []>} : vector<64x3xf32>, vector<3x128xf32>, vector<64x128xf32> -> vector<64x128xf32>
    %cst_343 = arith.constant 0.000000e+00 : f32
    %683 = vector.broadcast %cst_343 : f32 to vector<64x128xf32>
    %684 = arith.maximumf %682, %683 : vector<64x128xf32>
    %685 = arith.maximumf %671, %684 : vector<64x128xf32>
    %c0_344 = arith.constant 0 : index
    %c49 = arith.constant 49 : index
    %c0_345 = arith.constant 0 : index
    %c0_346 = arith.constant 0 : index
    %686 = vector.load %arg2[%c0_344, %c49, %c0_345, %c0_346] : memref<1x50x64x3xf32, #tpu.memory_space<vmem>>, vector<1x1x64x3xf32>
    %687 = vector.shape_cast %686 : vector<1x1x64x3xf32> to vector<64x3xf32>
    %688 = arith.mulf %687, %687 : vector<64x3xf32>
    %cst_347 = arith.constant dense<0.000000e+00> : vector<64xf32>
    %689 = vector.multi_reduction <add>, %688, %cst_347 [1] : vector<64x3xf32> to vector<64xf32>
    %690 = vector.shape_cast %689 : vector<64xf32> to vector<64x1xf32>
    %cst_348 = arith.constant 1.000000e-24 : f32
    %691 = vector.broadcast %cst_348 : f32 to vector<64x1xf32>
    %692 = arith.maximumf %690, %691 : vector<64x1xf32>
    %693 = math.rsqrt %692 : vector<64x1xf32>
    %694 = vector.broadcast %693 : vector<64x1xf32> to vector<64x3xf32>
    %695 = arith.mulf %687, %694 : vector<64x3xf32>
    %cst_349 = arith.constant dense<0.000000e+00> : vector<64x128xf32>
    %696 = tpu.matmul %695, %0, %cst_349 {dimension_numbers = #tpu.dot_dimension_numbers<[1], [0], [0], [1], [0, 0, 1, 1], [], []>} : vector<64x3xf32>, vector<3x128xf32>, vector<64x128xf32> -> vector<64x128xf32>
    %cst_350 = arith.constant 0.000000e+00 : f32
    %697 = vector.broadcast %cst_350 : f32 to vector<64x128xf32>
    %698 = arith.maximumf %696, %697 : vector<64x128xf32>
    %699 = arith.maximumf %685, %698 : vector<64x128xf32>
    %c0_351 = arith.constant 0 : index
    %c0_352 = arith.constant 0 : index
    %700 = vector.load %arg4[%c0_351, %c0_352] : memref<128x32xf32, #tpu.memory_space<vmem>>, vector<128x32xf32>
    %cst_353 = arith.constant dense<0.000000e+00> : vector<64x32xf32>
    %701 = tpu.matmul %699, %700, %cst_353 {dimension_numbers = #tpu.dot_dimension_numbers<[1], [0], [0], [1], [0, 0, 1, 1], [], []>} : vector<64x128xf32>, vector<128x32xf32>, vector<64x32xf32> -> vector<64x32xf32>
    %c0_354 = arith.constant 0 : index
    %c0_355 = arith.constant 0 : index
    %c0_356 = arith.constant 0 : index
    %702 = vector.load %arg5[%c0_354, %c0_355, %c0_356] : memref<1x64x32xf32, #tpu.memory_space<vmem>>, vector<1x64x32xf32>
    %703 = vector.shape_cast %702 : vector<1x64x32xf32> to vector<64x32xf32>
    %704 = vector.shape_cast %701 : vector<64x32xf32> to vector<1x64x32xf32>
    tpu.vector_store %arg5[%c0_354, %c0_355, %c0_356], %704 {strides = array<i32>} : memref<1x64x32xf32, #tpu.memory_space<vmem>>, vector<1x64x32xf32>,
    return
  }
  func.func @transform_0(%arg0: i32, %arg1: i32) -> (i32, i32, i32, i32) {
    %c0_i32 = arith.constant 0 : i32
    %c0_i32_0 = arith.constant 0 : i32
    %c0_i32_1 = arith.constant 0 : i32
    return %arg0, %c0_i32, %arg1, %c0_i32_0 : i32, i32, i32, i32
  }
  func.func @transform_1(%arg0: i32, %arg1: i32) -> (i32, i32) {
    %c0_i32 = arith.constant 0 : i32
    %c0_i32_0 = arith.constant 0 : i32
    %c0_i32_1 = arith.constant 0 : i32
    return %c0_i32, %c0_i32_0 : i32, i32
  }
  func.func @transform_2(%arg0: i32, %arg1: i32) -> (i32, i32) {
    %c0_i32 = arith.constant 0 : i32
    %c0_i32_0 = arith.constant 0 : i32
    %c0_i32_1 = arith.constant 0 : i32
    return %c0_i32, %c0_i32_0 : i32, i32
  }
  func.func @transform_3(%arg0: i32, %arg1: i32) -> (i32, i32, i32) {
    %c0_i32 = arith.constant 0 : i32
    %c0_i32_0 = arith.constant 0 : i32
    return %arg0, %arg1, %c0_i32 : i32, i32, i32
  }
}

module attributes {stable_mosaic.version = 11 : i64} {
  func.func @_linear_bn_relu_kernel(%arg0: i32, %arg1: memref<128x32xf32, #tpu.memory_space<vmem>>, %arg2: memref<1x32xf32, #tpu.memory_space<vmem>>, %arg3: memref<1x32xf32, #tpu.memory_space<vmem>>, %arg4: memref<32x160xf32, #tpu.memory_space<vmem>>, %arg5: memref<1x160xf32, #tpu.memory_space<vmem>>, %arg6: memref<128x160xf32, #tpu.memory_space<vmem>>) attributes {dimension_semantics = [#tpu.dimension_semantics<parallel>], iteration_bounds = array<i64: 1>, scalar_prefetch = 0 : i64, scratch_operands = 0 : i64, tpu.core_type = #tpu.core_type<tc>, window_params = [{transform_indices = @transform_0, window_bounds = array<i64: 128, 32>}, {pipeline_mode = #tpu.pipeline_mode<synchronous>, transform_indices = @transform_1, window_bounds = array<i64: 1, 32>}, {pipeline_mode = #tpu.pipeline_mode<synchronous>, transform_indices = @transform_2, window_bounds = array<i64: 1, 32>}, {pipeline_mode = #tpu.pipeline_mode<synchronous>, transform_indices = @transform_3, window_bounds = array<i64: 32, 160>}, {pipeline_mode = #tpu.pipeline_mode<synchronous>, transform_indices = @transform_4, window_bounds = array<i64: 1, 160>}, {transform_indices = @transform_5, window_bounds = array<i64: 128, 160>}]} {
    %c0 = arith.constant 0 : index
    %c0_0 = arith.constant 0 : index
    %0 = vector.load %arg1[%c0, %c0_0] : memref<128x32xf32, #tpu.memory_space<vmem>>, vector<128x32xf32>
    %c0_1 = arith.constant 0 : index
    %c0_2 = arith.constant 0 : index
    %1 = vector.load %arg2[%c0_1, %c0_2] : memref<1x32xf32, #tpu.memory_space<vmem>>, vector<1x32xf32>
    %2 = vector.broadcast %1 : vector<1x32xf32> to vector<128x32xf32>
    %3 = arith.mulf %0, %2 : vector<128x32xf32>
    %c0_3 = arith.constant 0 : index
    %c0_4 = arith.constant 0 : index
    %4 = vector.load %arg3[%c0_3, %c0_4] : memref<1x32xf32, #tpu.memory_space<vmem>>, vector<1x32xf32>
    %5 = vector.broadcast %4 : vector<1x32xf32> to vector<128x32xf32>
    %6 = arith.addf %3, %5 : vector<128x32xf32>
    %cst = arith.constant 0.000000e+00 : f32
    %7 = vector.broadcast %cst : f32 to vector<128x32xf32>
    %8 = arith.maximumf %6, %7 : vector<128x32xf32>
    %c0_5 = arith.constant 0 : index
    %c0_6 = arith.constant 0 : index
    %9 = vector.load %arg4[%c0_5, %c0_6] : memref<32x160xf32, #tpu.memory_space<vmem>>, vector<32x160xf32>
    %cst_7 = arith.constant dense<0.000000e+00> : vector<128x160xf32>
    %10 = tpu.matmul %8, %9, %cst_7 {dimension_numbers = #tpu.dot_dimension_numbers<[1], [0], [0], [1], [0, 0, 1, 1], [], []>} : vector<128x32xf32>, vector<32x160xf32>, vector<128x160xf32> -> vector<128x160xf32>
    %c0_8 = arith.constant 0 : index
    %c0_9 = arith.constant 0 : index
    %11 = vector.load %arg5[%c0_8, %c0_9] : memref<1x160xf32, #tpu.memory_space<vmem>>, vector<1x160xf32>
    %12 = vector.broadcast %11 : vector<1x160xf32> to vector<128x160xf32>
    %13 = arith.addf %10, %12 : vector<128x160xf32>
    %c0_10 = arith.constant 0 : index
    %c0_11 = arith.constant 0 : index
    %14 = vector.load %arg6[%c0_10, %c0_11] : memref<128x160xf32, #tpu.memory_space<vmem>>, vector<128x160xf32>
    tpu.vector_store %arg6[%c0_10, %c0_11], %13 {strides = array<i32>} : memref<128x160xf32, #tpu.memory_space<vmem>>, vector<128x160xf32>,
    return
  }
  func.func @transform_0(%arg0: i32) -> (i32, i32) {
    %c0_i32 = arith.constant 0 : i32
    %c0_i32_0 = arith.constant 0 : i32
    return %arg0, %c0_i32 : i32, i32
  }
  func.func @transform_1(%arg0: i32) -> (i32, i32) {
    %c0_i32 = arith.constant 0 : i32
    %c0_i32_0 = arith.constant 0 : i32
    %c0_i32_1 = arith.constant 0 : i32
    return %c0_i32, %c0_i32_0 : i32, i32
  }
  func.func @transform_2(%arg0: i32) -> (i32, i32) {
    %c0_i32 = arith.constant 0 : i32
    %c0_i32_0 = arith.constant 0 : i32
    %c0_i32_1 = arith.constant 0 : i32
    return %c0_i32, %c0_i32_0 : i32, i32
  }
  func.func @transform_3(%arg0: i32) -> (i32, i32) {
    %c0_i32 = arith.constant 0 : i32
    %c0_i32_0 = arith.constant 0 : i32
    %c0_i32_1 = arith.constant 0 : i32
    return %c0_i32, %c0_i32_0 : i32, i32
  }
  func.func @transform_4(%arg0: i32) -> (i32, i32) {
    %c0_i32 = arith.constant 0 : i32
    %c0_i32_0 = arith.constant 0 : i32
    %c0_i32_1 = arith.constant 0 : i32
    return %c0_i32, %c0_i32_0 : i32, i32
  }
  func.func @transform_5(%arg0: i32) -> (i32, i32) {
    %c0_i32 = arith.constant 0 : i32
    %c0_i32_0 = arith.constant 0 : i32
    return %arg0, %c0_i32 : i32, i32
  }
}

module attributes {stable_mosaic.version = 11 : i64} {
  func.func @_conv_layer_fuse_kernel(%arg0: i32, %arg1: i32, %arg2: memref<1x50x64x3xf32, #tpu.memory_space<vmem>>, %arg3: memref<3x128xf32, #tpu.memory_space<vmem>>, %arg4: memref<1x50x64x128xf32, #tpu.memory_space<vmem>>, %arg5: memref<1x64x32xf32, #tpu.memory_space<vmem>>, %arg6: memref<128x32xf32, #tpu.memory_space<vmem>>, %arg7: memref<1x64x32xf32, #tpu.memory_space<vmem>>) attributes {dimension_semantics = [#tpu.dimension_semantics<parallel>, #tpu.dimension_semantics<parallel>], iteration_bounds = array<i64: 2, 1>, scalar_prefetch = 0 : i64, scratch_operands = 0 : i64, tpu.core_type = #tpu.core_type<tc>, window_params = [{transform_indices = @transform_0, window_bounds = array<i64: 1, 50, 64, 3>}, {pipeline_mode = #tpu.pipeline_mode<synchronous>, transform_indices = @transform_1, window_bounds = array<i64: 3, 128>}, {transform_indices = @transform_2, window_bounds = array<i64: 1, 50, 64, 128>}, {transform_indices = @transform_3, window_bounds = array<i64: 1, 64, 32>}, {pipeline_mode = #tpu.pipeline_mode<synchronous>, transform_indices = @transform_4, window_bounds = array<i64: 128, 32>}, {transform_indices = @transform_5, window_bounds = array<i64: 1, 64, 32>}]} {
    %c0 = arith.constant 0 : index
    %c0_0 = arith.constant 0 : index
    %0 = vector.load %arg3[%c0, %c0_0] : memref<3x128xf32, #tpu.memory_space<vmem>>, vector<3x128xf32>
    %c0_1 = arith.constant 0 : index
    %c0_2 = arith.constant 0 : index
    %c0_3 = arith.constant 0 : index
    %c0_4 = arith.constant 0 : index
    %1 = vector.load %arg2[%c0_1, %c0_2, %c0_3, %c0_4] : memref<1x50x64x3xf32, #tpu.memory_space<vmem>>, vector<1x1x64x3xf32>
    %2 = vector.shape_cast %1 : vector<1x1x64x3xf32> to vector<64x3xf32>
    %3 = arith.mulf %2, %2 : vector<64x3xf32>
    %cst = arith.constant dense<0.000000e+00> : vector<64xf32>
    %4 = vector.multi_reduction <add>, %3, %cst [1] : vector<64x3xf32> to vector<64xf32>
    %5 = vector.shape_cast %4 : vector<64xf32> to vector<64x1xf32>
    %cst_5 = arith.constant 1.000000e-24 : f32
    %6 = vector.broadcast %cst_5 : f32 to vector<64x1xf32>
    %7 = arith.maximumf %5, %6 : vector<64x1xf32>
    %8 = math.rsqrt %7 : vector<64x1xf32>
    %9 = vector.broadcast %8 : vector<64x1xf32> to vector<64x3xf32>
    %10 = arith.mulf %2, %9 : vector<64x3xf32>
    %cst_6 = arith.constant dense<0.000000e+00> : vector<64x128xf32>
    %11 = tpu.matmul %10, %0, %cst_6 {dimension_numbers = #tpu.dot_dimension_numbers<[1], [0], [0], [1], [0, 0, 1, 1], [], []>} : vector<64x3xf32>, vector<3x128xf32>, vector<64x128xf32> -> vector<64x128xf32>
    %cst_7 = arith.constant 0.000000e+00 : f32
    %12 = vector.broadcast %cst_7 : f32 to vector<64x128xf32>
    %13 = arith.maximumf %11, %12 : vector<64x128xf32>
    %c0_8 = arith.constant 0 : index
    %c0_9 = arith.constant 0 : index
    %c0_10 = arith.constant 0 : index
    %c0_11 = arith.constant 0 : index
    %14 = vector.load %arg4[%c0_8, %c0_9, %c0_10, %c0_11] : memref<1x50x64x128xf32, #tpu.memory_space<vmem>>, vector<1x1x64x128xf32>
    %15 = vector.shape_cast %14 : vector<1x1x64x128xf32> to vector<64x128xf32>
    %16 = arith.mulf %13, %15 : vector<64x128xf32>
    %c0_12 = arith.constant 0 : index
    %c1 = arith.constant 1 : index
    %c0_13 = arith.constant 0 : index
    %c0_14 = arith.constant 0 : index
    %17 = vector.load %arg2[%c0_12, %c1, %c0_13, %c0_14] : memref<1x50x64x3xf32, #tpu.memory_space<vmem>>, vector<1x1x64x3xf32>
    %18 = vector.shape_cast %17 : vector<1x1x64x3xf32> to vector<64x3xf32>
    %19 = arith.mulf %18, %18 : vector<64x3xf32>
    %cst_15 = arith.constant dense<0.000000e+00> : vector<64xf32>
    %20 = vector.multi_reduction <add>, %19, %cst_15 [1] : vector<64x3xf32> to vector<64xf32>
    %21 = vector.shape_cast %20 : vector<64xf32> to vector<64x1xf32>
    %cst_16 = arith.constant 1.000000e-24 : f32
    %22 = vector.broadcast %cst_16 : f32 to vector<64x1xf32>
    %23 = arith.maximumf %21, %22 : vector<64x1xf32>
    %24 = math.rsqrt %23 : vector<64x1xf32>
    %25 = vector.broadcast %24 : vector<64x1xf32> to vector<64x3xf32>
    %26 = arith.mulf %18, %25 : vector<64x3xf32>
    %cst_17 = arith.constant dense<0.000000e+00> : vector<64x128xf32>
    %27 = tpu.matmul %26, %0, %cst_17 {dimension_numbers = #tpu.dot_dimension_numbers<[1], [0], [0], [1], [0, 0, 1, 1], [], []>} : vector<64x3xf32>, vector<3x128xf32>, vector<64x128xf32> -> vector<64x128xf32>
    %cst_18 = arith.constant 0.000000e+00 : f32
    %28 = vector.broadcast %cst_18 : f32 to vector<64x128xf32>
    %29 = arith.maximumf %27, %28 : vector<64x128xf32>
    %c0_19 = arith.constant 0 : index
    %c1_20 = arith.constant 1 : index
    %c0_21 = arith.constant 0 : index
    %c0_22 = arith.constant 0 : index
    %30 = vector.load %arg4[%c0_19, %c1_20, %c0_21, %c0_22] : memref<1x50x64x128xf32, #tpu.memory_space<vmem>>, vector<1x1x64x128xf32>
    %31 = vector.shape_cast %30 : vector<1x1x64x128xf32> to vector<64x128xf32>
    %32 = arith.mulf %29, %31 : vector<64x128xf32>
    %33 = arith.maximumf %16, %32 : vector<64x128xf32>
    %c0_23 = arith.constant 0 : index
    %c2 = arith.constant 2 : index
    %c0_24 = arith.constant 0 : index
    %c0_25 = arith.constant 0 : index
    %34 = vector.load %arg2[%c0_23, %c2, %c0_24, %c0_25] : memref<1x50x64x3xf32, #tpu.memory_space<vmem>>, vector<1x1x64x3xf32>
    %35 = vector.shape_cast %34 : vector<1x1x64x3xf32> to vector<64x3xf32>
    %36 = arith.mulf %35, %35 : vector<64x3xf32>
    %cst_26 = arith.constant dense<0.000000e+00> : vector<64xf32>
    %37 = vector.multi_reduction <add>, %36, %cst_26 [1] : vector<64x3xf32> to vector<64xf32>
    %38 = vector.shape_cast %37 : vector<64xf32> to vector<64x1xf32>
    %cst_27 = arith.constant 1.000000e-24 : f32
    %39 = vector.broadcast %cst_27 : f32 to vector<64x1xf32>
    %40 = arith.maximumf %38, %39 : vector<64x1xf32>
    %41 = math.rsqrt %40 : vector<64x1xf32>
    %42 = vector.broadcast %41 : vector<64x1xf32> to vector<64x3xf32>
    %43 = arith.mulf %35, %42 : vector<64x3xf32>
    %cst_28 = arith.constant dense<0.000000e+00> : vector<64x128xf32>
    %44 = tpu.matmul %43, %0, %cst_28 {dimension_numbers = #tpu.dot_dimension_numbers<[1], [0], [0], [1], [0, 0, 1, 1], [], []>} : vector<64x3xf32>, vector<3x128xf32>, vector<64x128xf32> -> vector<64x128xf32>
    %cst_29 = arith.constant 0.000000e+00 : f32
    %45 = vector.broadcast %cst_29 : f32 to vector<64x128xf32>
    %46 = arith.maximumf %44, %45 : vector<64x128xf32>
    %c0_30 = arith.constant 0 : index
    %c2_31 = arith.constant 2 : index
    %c0_32 = arith.constant 0 : index
    %c0_33 = arith.constant 0 : index
    %47 = vector.load %arg4[%c0_30, %c2_31, %c0_32, %c0_33] : memref<1x50x64x128xf32, #tpu.memory_space<vmem>>, vector<1x1x64x128xf32>
    %48 = vector.shape_cast %47 : vector<1x1x64x128xf32> to vector<64x128xf32>
    %49 = arith.mulf %46, %48 : vector<64x128xf32>
    %50 = arith.maximumf %33, %49 : vector<64x128xf32>
    %c0_34 = arith.constant 0 : index
    %c3 = arith.constant 3 : index
    %c0_35 = arith.constant 0 : index
    %c0_36 = arith.constant 0 : index
    %51 = vector.load %arg2[%c0_34, %c3, %c0_35, %c0_36] : memref<1x50x64x3xf32, #tpu.memory_space<vmem>>, vector<1x1x64x3xf32>
    %52 = vector.shape_cast %51 : vector<1x1x64x3xf32> to vector<64x3xf32>
    %53 = arith.mulf %52, %52 : vector<64x3xf32>
    %cst_37 = arith.constant dense<0.000000e+00> : vector<64xf32>
    %54 = vector.multi_reduction <add>, %53, %cst_37 [1] : vector<64x3xf32> to vector<64xf32>
    %55 = vector.shape_cast %54 : vector<64xf32> to vector<64x1xf32>
    %cst_38 = arith.constant 1.000000e-24 : f32
    %56 = vector.broadcast %cst_38 : f32 to vector<64x1xf32>
    %57 = arith.maximumf %55, %56 : vector<64x1xf32>
    %58 = math.rsqrt %57 : vector<64x1xf32>
    %59 = vector.broadcast %58 : vector<64x1xf32> to vector<64x3xf32>
    %60 = arith.mulf %52, %59 : vector<64x3xf32>
    %cst_39 = arith.constant dense<0.000000e+00> : vector<64x128xf32>
    %61 = tpu.matmul %60, %0, %cst_39 {dimension_numbers = #tpu.dot_dimension_numbers<[1], [0], [0], [1], [0, 0, 1, 1], [], []>} : vector<64x3xf32>, vector<3x128xf32>, vector<64x128xf32> -> vector<64x128xf32>
    %cst_40 = arith.constant 0.000000e+00 : f32
    %62 = vector.broadcast %cst_40 : f32 to vector<64x128xf32>
    %63 = arith.maximumf %61, %62 : vector<64x128xf32>
    %c0_41 = arith.constant 0 : index
    %c3_42 = arith.constant 3 : index
    %c0_43 = arith.constant 0 : index
    %c0_44 = arith.constant 0 : index
    %64 = vector.load %arg4[%c0_41, %c3_42, %c0_43, %c0_44] : memref<1x50x64x128xf32, #tpu.memory_space<vmem>>, vector<1x1x64x128xf32>
    %65 = vector.shape_cast %64 : vector<1x1x64x128xf32> to vector<64x128xf32>
    %66 = arith.mulf %63, %65 : vector<64x128xf32>
    %67 = arith.maximumf %50, %66 : vector<64x128xf32>
    %c0_45 = arith.constant 0 : index
    %c4 = arith.constant 4 : index
    %c0_46 = arith.constant 0 : index
    %c0_47 = arith.constant 0 : index
    %68 = vector.load %arg2[%c0_45, %c4, %c0_46, %c0_47] : memref<1x50x64x3xf32, #tpu.memory_space<vmem>>, vector<1x1x64x3xf32>
    %69 = vector.shape_cast %68 : vector<1x1x64x3xf32> to vector<64x3xf32>
    %70 = arith.mulf %69, %69 : vector<64x3xf32>
    %cst_48 = arith.constant dense<0.000000e+00> : vector<64xf32>
    %71 = vector.multi_reduction <add>, %70, %cst_48 [1] : vector<64x3xf32> to vector<64xf32>
    %72 = vector.shape_cast %71 : vector<64xf32> to vector<64x1xf32>
    %cst_49 = arith.constant 1.000000e-24 : f32
    %73 = vector.broadcast %cst_49 : f32 to vector<64x1xf32>
    %74 = arith.maximumf %72, %73 : vector<64x1xf32>
    %75 = math.rsqrt %74 : vector<64x1xf32>
    %76 = vector.broadcast %75 : vector<64x1xf32> to vector<64x3xf32>
    %77 = arith.mulf %69, %76 : vector<64x3xf32>
    %cst_50 = arith.constant dense<0.000000e+00> : vector<64x128xf32>
    %78 = tpu.matmul %77, %0, %cst_50 {dimension_numbers = #tpu.dot_dimension_numbers<[1], [0], [0], [1], [0, 0, 1, 1], [], []>} : vector<64x3xf32>, vector<3x128xf32>, vector<64x128xf32> -> vector<64x128xf32>
    %cst_51 = arith.constant 0.000000e+00 : f32
    %79 = vector.broadcast %cst_51 : f32 to vector<64x128xf32>
    %80 = arith.maximumf %78, %79 : vector<64x128xf32>
    %c0_52 = arith.constant 0 : index
    %c4_53 = arith.constant 4 : index
    %c0_54 = arith.constant 0 : index
    %c0_55 = arith.constant 0 : index
    %81 = vector.load %arg4[%c0_52, %c4_53, %c0_54, %c0_55] : memref<1x50x64x128xf32, #tpu.memory_space<vmem>>, vector<1x1x64x128xf32>
    %82 = vector.shape_cast %81 : vector<1x1x64x128xf32> to vector<64x128xf32>
    %83 = arith.mulf %80, %82 : vector<64x128xf32>
    %84 = arith.maximumf %67, %83 : vector<64x128xf32>
    %c0_56 = arith.constant 0 : index
    %c5 = arith.constant 5 : index
    %c0_57 = arith.constant 0 : index
    %c0_58 = arith.constant 0 : index
    %85 = vector.load %arg2[%c0_56, %c5, %c0_57, %c0_58] : memref<1x50x64x3xf32, #tpu.memory_space<vmem>>, vector<1x1x64x3xf32>
    %86 = vector.shape_cast %85 : vector<1x1x64x3xf32> to vector<64x3xf32>
    %87 = arith.mulf %86, %86 : vector<64x3xf32>
    %cst_59 = arith.constant dense<0.000000e+00> : vector<64xf32>
    %88 = vector.multi_reduction <add>, %87, %cst_59 [1] : vector<64x3xf32> to vector<64xf32>
    %89 = vector.shape_cast %88 : vector<64xf32> to vector<64x1xf32>
    %cst_60 = arith.constant 1.000000e-24 : f32
    %90 = vector.broadcast %cst_60 : f32 to vector<64x1xf32>
    %91 = arith.maximumf %89, %90 : vector<64x1xf32>
    %92 = math.rsqrt %91 : vector<64x1xf32>
    %93 = vector.broadcast %92 : vector<64x1xf32> to vector<64x3xf32>
    %94 = arith.mulf %86, %93 : vector<64x3xf32>
    %cst_61 = arith.constant dense<0.000000e+00> : vector<64x128xf32>
    %95 = tpu.matmul %94, %0, %cst_61 {dimension_numbers = #tpu.dot_dimension_numbers<[1], [0], [0], [1], [0, 0, 1, 1], [], []>} : vector<64x3xf32>, vector<3x128xf32>, vector<64x128xf32> -> vector<64x128xf32>
    %cst_62 = arith.constant 0.000000e+00 : f32
    %96 = vector.broadcast %cst_62 : f32 to vector<64x128xf32>
    %97 = arith.maximumf %95, %96 : vector<64x128xf32>
    %c0_63 = arith.constant 0 : index
    %c5_64 = arith.constant 5 : index
    %c0_65 = arith.constant 0 : index
    %c0_66 = arith.constant 0 : index
    %98 = vector.load %arg4[%c0_63, %c5_64, %c0_65, %c0_66] : memref<1x50x64x128xf32, #tpu.memory_space<vmem>>, vector<1x1x64x128xf32>
    %99 = vector.shape_cast %98 : vector<1x1x64x128xf32> to vector<64x128xf32>
    %100 = arith.mulf %97, %99 : vector<64x128xf32>
    %101 = arith.maximumf %84, %100 : vector<64x128xf32>
    %c0_67 = arith.constant 0 : index
    %c6 = arith.constant 6 : index
    %c0_68 = arith.constant 0 : index
    %c0_69 = arith.constant 0 : index
    %102 = vector.load %arg2[%c0_67, %c6, %c0_68, %c0_69] : memref<1x50x64x3xf32, #tpu.memory_space<vmem>>, vector<1x1x64x3xf32>
    %103 = vector.shape_cast %102 : vector<1x1x64x3xf32> to vector<64x3xf32>
    %104 = arith.mulf %103, %103 : vector<64x3xf32>
    %cst_70 = arith.constant dense<0.000000e+00> : vector<64xf32>
    %105 = vector.multi_reduction <add>, %104, %cst_70 [1] : vector<64x3xf32> to vector<64xf32>
    %106 = vector.shape_cast %105 : vector<64xf32> to vector<64x1xf32>
    %cst_71 = arith.constant 1.000000e-24 : f32
    %107 = vector.broadcast %cst_71 : f32 to vector<64x1xf32>
    %108 = arith.maximumf %106, %107 : vector<64x1xf32>
    %109 = math.rsqrt %108 : vector<64x1xf32>
    %110 = vector.broadcast %109 : vector<64x1xf32> to vector<64x3xf32>
    %111 = arith.mulf %103, %110 : vector<64x3xf32>
    %cst_72 = arith.constant dense<0.000000e+00> : vector<64x128xf32>
    %112 = tpu.matmul %111, %0, %cst_72 {dimension_numbers = #tpu.dot_dimension_numbers<[1], [0], [0], [1], [0, 0, 1, 1], [], []>} : vector<64x3xf32>, vector<3x128xf32>, vector<64x128xf32> -> vector<64x128xf32>
    %cst_73 = arith.constant 0.000000e+00 : f32
    %113 = vector.broadcast %cst_73 : f32 to vector<64x128xf32>
    %114 = arith.maximumf %112, %113 : vector<64x128xf32>
    %c0_74 = arith.constant 0 : index
    %c6_75 = arith.constant 6 : index
    %c0_76 = arith.constant 0 : index
    %c0_77 = arith.constant 0 : index
    %115 = vector.load %arg4[%c0_74, %c6_75, %c0_76, %c0_77] : memref<1x50x64x128xf32, #tpu.memory_space<vmem>>, vector<1x1x64x128xf32>
    %116 = vector.shape_cast %115 : vector<1x1x64x128xf32> to vector<64x128xf32>
    %117 = arith.mulf %114, %116 : vector<64x128xf32>
    %118 = arith.maximumf %101, %117 : vector<64x128xf32>
    %c0_78 = arith.constant 0 : index
    %c7 = arith.constant 7 : index
    %c0_79 = arith.constant 0 : index
    %c0_80 = arith.constant 0 : index
    %119 = vector.load %arg2[%c0_78, %c7, %c0_79, %c0_80] : memref<1x50x64x3xf32, #tpu.memory_space<vmem>>, vector<1x1x64x3xf32>
    %120 = vector.shape_cast %119 : vector<1x1x64x3xf32> to vector<64x3xf32>
    %121 = arith.mulf %120, %120 : vector<64x3xf32>
    %cst_81 = arith.constant dense<0.000000e+00> : vector<64xf32>
    %122 = vector.multi_reduction <add>, %121, %cst_81 [1] : vector<64x3xf32> to vector<64xf32>
    %123 = vector.shape_cast %122 : vector<64xf32> to vector<64x1xf32>
    %cst_82 = arith.constant 1.000000e-24 : f32
    %124 = vector.broadcast %cst_82 : f32 to vector<64x1xf32>
    %125 = arith.maximumf %123, %124 : vector<64x1xf32>
    %126 = math.rsqrt %125 : vector<64x1xf32>
    %127 = vector.broadcast %126 : vector<64x1xf32> to vector<64x3xf32>
    %128 = arith.mulf %120, %127 : vector<64x3xf32>
    %cst_83 = arith.constant dense<0.000000e+00> : vector<64x128xf32>
    %129 = tpu.matmul %128, %0, %cst_83 {dimension_numbers = #tpu.dot_dimension_numbers<[1], [0], [0], [1], [0, 0, 1, 1], [], []>} : vector<64x3xf32>, vector<3x128xf32>, vector<64x128xf32> -> vector<64x128xf32>
    %cst_84 = arith.constant 0.000000e+00 : f32
    %130 = vector.broadcast %cst_84 : f32 to vector<64x128xf32>
    %131 = arith.maximumf %129, %130 : vector<64x128xf32>
    %c0_85 = arith.constant 0 : index
    %c7_86 = arith.constant 7 : index
    %c0_87 = arith.constant 0 : index
    %c0_88 = arith.constant 0 : index
    %132 = vector.load %arg4[%c0_85, %c7_86, %c0_87, %c0_88] : memref<1x50x64x128xf32, #tpu.memory_space<vmem>>, vector<1x1x64x128xf32>
    %133 = vector.shape_cast %132 : vector<1x1x64x128xf32> to vector<64x128xf32>
    %134 = arith.mulf %131, %133 : vector<64x128xf32>
    %135 = arith.maximumf %118, %134 : vector<64x128xf32>
    %c0_89 = arith.constant 0 : index
    %c8 = arith.constant 8 : index
    %c0_90 = arith.constant 0 : index
    %c0_91 = arith.constant 0 : index
    %136 = vector.load %arg2[%c0_89, %c8, %c0_90, %c0_91] : memref<1x50x64x3xf32, #tpu.memory_space<vmem>>, vector<1x1x64x3xf32>
    %137 = vector.shape_cast %136 : vector<1x1x64x3xf32> to vector<64x3xf32>
    %138 = arith.mulf %137, %137 : vector<64x3xf32>
    %cst_92 = arith.constant dense<0.000000e+00> : vector<64xf32>
    %139 = vector.multi_reduction <add>, %138, %cst_92 [1] : vector<64x3xf32> to vector<64xf32>
    %140 = vector.shape_cast %139 : vector<64xf32> to vector<64x1xf32>
    %cst_93 = arith.constant 1.000000e-24 : f32
    %141 = vector.broadcast %cst_93 : f32 to vector<64x1xf32>
    %142 = arith.maximumf %140, %141 : vector<64x1xf32>
    %143 = math.rsqrt %142 : vector<64x1xf32>
    %144 = vector.broadcast %143 : vector<64x1xf32> to vector<64x3xf32>
    %145 = arith.mulf %137, %144 : vector<64x3xf32>
    %cst_94 = arith.constant dense<0.000000e+00> : vector<64x128xf32>
    %146 = tpu.matmul %145, %0, %cst_94 {dimension_numbers = #tpu.dot_dimension_numbers<[1], [0], [0], [1], [0, 0, 1, 1], [], []>} : vector<64x3xf32>, vector<3x128xf32>, vector<64x128xf32> -> vector<64x128xf32>
    %cst_95 = arith.constant 0.000000e+00 : f32
    %147 = vector.broadcast %cst_95 : f32 to vector<64x128xf32>
    %148 = arith.maximumf %146, %147 : vector<64x128xf32>
    %c0_96 = arith.constant 0 : index
    %c8_97 = arith.constant 8 : index
    %c0_98 = arith.constant 0 : index
    %c0_99 = arith.constant 0 : index
    %149 = vector.load %arg4[%c0_96, %c8_97, %c0_98, %c0_99] : memref<1x50x64x128xf32, #tpu.memory_space<vmem>>, vector<1x1x64x128xf32>
    %150 = vector.shape_cast %149 : vector<1x1x64x128xf32> to vector<64x128xf32>
    %151 = arith.mulf %148, %150 : vector<64x128xf32>
    %152 = arith.maximumf %135, %151 : vector<64x128xf32>
    %c0_100 = arith.constant 0 : index
    %c9 = arith.constant 9 : index
    %c0_101 = arith.constant 0 : index
    %c0_102 = arith.constant 0 : index
    %153 = vector.load %arg2[%c0_100, %c9, %c0_101, %c0_102] : memref<1x50x64x3xf32, #tpu.memory_space<vmem>>, vector<1x1x64x3xf32>
    %154 = vector.shape_cast %153 : vector<1x1x64x3xf32> to vector<64x3xf32>
    %155 = arith.mulf %154, %154 : vector<64x3xf32>
    %cst_103 = arith.constant dense<0.000000e+00> : vector<64xf32>
    %156 = vector.multi_reduction <add>, %155, %cst_103 [1] : vector<64x3xf32> to vector<64xf32>
    %157 = vector.shape_cast %156 : vector<64xf32> to vector<64x1xf32>
    %cst_104 = arith.constant 1.000000e-24 : f32
    %158 = vector.broadcast %cst_104 : f32 to vector<64x1xf32>
    %159 = arith.maximumf %157, %158 : vector<64x1xf32>
    %160 = math.rsqrt %159 : vector<64x1xf32>
    %161 = vector.broadcast %160 : vector<64x1xf32> to vector<64x3xf32>
    %162 = arith.mulf %154, %161 : vector<64x3xf32>
    %cst_105 = arith.constant dense<0.000000e+00> : vector<64x128xf32>
    %163 = tpu.matmul %162, %0, %cst_105 {dimension_numbers = #tpu.dot_dimension_numbers<[1], [0], [0], [1], [0, 0, 1, 1], [], []>} : vector<64x3xf32>, vector<3x128xf32>, vector<64x128xf32> -> vector<64x128xf32>
    %cst_106 = arith.constant 0.000000e+00 : f32
    %164 = vector.broadcast %cst_106 : f32 to vector<64x128xf32>
    %165 = arith.maximumf %163, %164 : vector<64x128xf32>
    %c0_107 = arith.constant 0 : index
    %c9_108 = arith.constant 9 : index
    %c0_109 = arith.constant 0 : index
    %c0_110 = arith.constant 0 : index
    %166 = vector.load %arg4[%c0_107, %c9_108, %c0_109, %c0_110] : memref<1x50x64x128xf32, #tpu.memory_space<vmem>>, vector<1x1x64x128xf32>
    %167 = vector.shape_cast %166 : vector<1x1x64x128xf32> to vector<64x128xf32>
    %168 = arith.mulf %165, %167 : vector<64x128xf32>
    %169 = arith.maximumf %152, %168 : vector<64x128xf32>
    %c0_111 = arith.constant 0 : index
    %c10 = arith.constant 10 : index
    %c0_112 = arith.constant 0 : index
    %c0_113 = arith.constant 0 : index
    %170 = vector.load %arg2[%c0_111, %c10, %c0_112, %c0_113] : memref<1x50x64x3xf32, #tpu.memory_space<vmem>>, vector<1x1x64x3xf32>
    %171 = vector.shape_cast %170 : vector<1x1x64x3xf32> to vector<64x3xf32>
    %172 = arith.mulf %171, %171 : vector<64x3xf32>
    %cst_114 = arith.constant dense<0.000000e+00> : vector<64xf32>
    %173 = vector.multi_reduction <add>, %172, %cst_114 [1] : vector<64x3xf32> to vector<64xf32>
    %174 = vector.shape_cast %173 : vector<64xf32> to vector<64x1xf32>
    %cst_115 = arith.constant 1.000000e-24 : f32
    %175 = vector.broadcast %cst_115 : f32 to vector<64x1xf32>
    %176 = arith.maximumf %174, %175 : vector<64x1xf32>
    %177 = math.rsqrt %176 : vector<64x1xf32>
    %178 = vector.broadcast %177 : vector<64x1xf32> to vector<64x3xf32>
    %179 = arith.mulf %171, %178 : vector<64x3xf32>
    %cst_116 = arith.constant dense<0.000000e+00> : vector<64x128xf32>
    %180 = tpu.matmul %179, %0, %cst_116 {dimension_numbers = #tpu.dot_dimension_numbers<[1], [0], [0], [1], [0, 0, 1, 1], [], []>} : vector<64x3xf32>, vector<3x128xf32>, vector<64x128xf32> -> vector<64x128xf32>
    %cst_117 = arith.constant 0.000000e+00 : f32
    %181 = vector.broadcast %cst_117 : f32 to vector<64x128xf32>
    %182 = arith.maximumf %180, %181 : vector<64x128xf32>
    %c0_118 = arith.constant 0 : index
    %c10_119 = arith.constant 10 : index
    %c0_120 = arith.constant 0 : index
    %c0_121 = arith.constant 0 : index
    %183 = vector.load %arg4[%c0_118, %c10_119, %c0_120, %c0_121] : memref<1x50x64x128xf32, #tpu.memory_space<vmem>>, vector<1x1x64x128xf32>
    %184 = vector.shape_cast %183 : vector<1x1x64x128xf32> to vector<64x128xf32>
    %185 = arith.mulf %182, %184 : vector<64x128xf32>
    %186 = arith.maximumf %169, %185 : vector<64x128xf32>
    %c0_122 = arith.constant 0 : index
    %c11 = arith.constant 11 : index
    %c0_123 = arith.constant 0 : index
    %c0_124 = arith.constant 0 : index
    %187 = vector.load %arg2[%c0_122, %c11, %c0_123, %c0_124] : memref<1x50x64x3xf32, #tpu.memory_space<vmem>>, vector<1x1x64x3xf32>
    %188 = vector.shape_cast %187 : vector<1x1x64x3xf32> to vector<64x3xf32>
    %189 = arith.mulf %188, %188 : vector<64x3xf32>
    %cst_125 = arith.constant dense<0.000000e+00> : vector<64xf32>
    %190 = vector.multi_reduction <add>, %189, %cst_125 [1] : vector<64x3xf32> to vector<64xf32>
    %191 = vector.shape_cast %190 : vector<64xf32> to vector<64x1xf32>
    %cst_126 = arith.constant 1.000000e-24 : f32
    %192 = vector.broadcast %cst_126 : f32 to vector<64x1xf32>
    %193 = arith.maximumf %191, %192 : vector<64x1xf32>
    %194 = math.rsqrt %193 : vector<64x1xf32>
    %195 = vector.broadcast %194 : vector<64x1xf32> to vector<64x3xf32>
    %196 = arith.mulf %188, %195 : vector<64x3xf32>
    %cst_127 = arith.constant dense<0.000000e+00> : vector<64x128xf32>
    %197 = tpu.matmul %196, %0, %cst_127 {dimension_numbers = #tpu.dot_dimension_numbers<[1], [0], [0], [1], [0, 0, 1, 1], [], []>} : vector<64x3xf32>, vector<3x128xf32>, vector<64x128xf32> -> vector<64x128xf32>
    %cst_128 = arith.constant 0.000000e+00 : f32
    %198 = vector.broadcast %cst_128 : f32 to vector<64x128xf32>
    %199 = arith.maximumf %197, %198 : vector<64x128xf32>
    %c0_129 = arith.constant 0 : index
    %c11_130 = arith.constant 11 : index
    %c0_131 = arith.constant 0 : index
    %c0_132 = arith.constant 0 : index
    %200 = vector.load %arg4[%c0_129, %c11_130, %c0_131, %c0_132] : memref<1x50x64x128xf32, #tpu.memory_space<vmem>>, vector<1x1x64x128xf32>
    %201 = vector.shape_cast %200 : vector<1x1x64x128xf32> to vector<64x128xf32>
    %202 = arith.mulf %199, %201 : vector<64x128xf32>
    %203 = arith.maximumf %186, %202 : vector<64x128xf32>
    %c0_133 = arith.constant 0 : index
    %c12 = arith.constant 12 : index
    %c0_134 = arith.constant 0 : index
    %c0_135 = arith.constant 0 : index
    %204 = vector.load %arg2[%c0_133, %c12, %c0_134, %c0_135] : memref<1x50x64x3xf32, #tpu.memory_space<vmem>>, vector<1x1x64x3xf32>
    %205 = vector.shape_cast %204 : vector<1x1x64x3xf32> to vector<64x3xf32>
    %206 = arith.mulf %205, %205 : vector<64x3xf32>
    %cst_136 = arith.constant dense<0.000000e+00> : vector<64xf32>
    %207 = vector.multi_reduction <add>, %206, %cst_136 [1] : vector<64x3xf32> to vector<64xf32>
    %208 = vector.shape_cast %207 : vector<64xf32> to vector<64x1xf32>
    %cst_137 = arith.constant 1.000000e-24 : f32
    %209 = vector.broadcast %cst_137 : f32 to vector<64x1xf32>
    %210 = arith.maximumf %208, %209 : vector<64x1xf32>
    %211 = math.rsqrt %210 : vector<64x1xf32>
    %212 = vector.broadcast %211 : vector<64x1xf32> to vector<64x3xf32>
    %213 = arith.mulf %205, %212 : vector<64x3xf32>
    %cst_138 = arith.constant dense<0.000000e+00> : vector<64x128xf32>
    %214 = tpu.matmul %213, %0, %cst_138 {dimension_numbers = #tpu.dot_dimension_numbers<[1], [0], [0], [1], [0, 0, 1, 1], [], []>} : vector<64x3xf32>, vector<3x128xf32>, vector<64x128xf32> -> vector<64x128xf32>
    %cst_139 = arith.constant 0.000000e+00 : f32
    %215 = vector.broadcast %cst_139 : f32 to vector<64x128xf32>
    %216 = arith.maximumf %214, %215 : vector<64x128xf32>
    %c0_140 = arith.constant 0 : index
    %c12_141 = arith.constant 12 : index
    %c0_142 = arith.constant 0 : index
    %c0_143 = arith.constant 0 : index
    %217 = vector.load %arg4[%c0_140, %c12_141, %c0_142, %c0_143] : memref<1x50x64x128xf32, #tpu.memory_space<vmem>>, vector<1x1x64x128xf32>
    %218 = vector.shape_cast %217 : vector<1x1x64x128xf32> to vector<64x128xf32>
    %219 = arith.mulf %216, %218 : vector<64x128xf32>
    %220 = arith.maximumf %203, %219 : vector<64x128xf32>
    %c0_144 = arith.constant 0 : index
    %c13 = arith.constant 13 : index
    %c0_145 = arith.constant 0 : index
    %c0_146 = arith.constant 0 : index
    %221 = vector.load %arg2[%c0_144, %c13, %c0_145, %c0_146] : memref<1x50x64x3xf32, #tpu.memory_space<vmem>>, vector<1x1x64x3xf32>
    %222 = vector.shape_cast %221 : vector<1x1x64x3xf32> to vector<64x3xf32>
    %223 = arith.mulf %222, %222 : vector<64x3xf32>
    %cst_147 = arith.constant dense<0.000000e+00> : vector<64xf32>
    %224 = vector.multi_reduction <add>, %223, %cst_147 [1] : vector<64x3xf32> to vector<64xf32>
    %225 = vector.shape_cast %224 : vector<64xf32> to vector<64x1xf32>
    %cst_148 = arith.constant 1.000000e-24 : f32
    %226 = vector.broadcast %cst_148 : f32 to vector<64x1xf32>
    %227 = arith.maximumf %225, %226 : vector<64x1xf32>
    %228 = math.rsqrt %227 : vector<64x1xf32>
    %229 = vector.broadcast %228 : vector<64x1xf32> to vector<64x3xf32>
    %230 = arith.mulf %222, %229 : vector<64x3xf32>
    %cst_149 = arith.constant dense<0.000000e+00> : vector<64x128xf32>
    %231 = tpu.matmul %230, %0, %cst_149 {dimension_numbers = #tpu.dot_dimension_numbers<[1], [0], [0], [1], [0, 0, 1, 1], [], []>} : vector<64x3xf32>, vector<3x128xf32>, vector<64x128xf32> -> vector<64x128xf32>
    %cst_150 = arith.constant 0.000000e+00 : f32
    %232 = vector.broadcast %cst_150 : f32 to vector<64x128xf32>
    %233 = arith.maximumf %231, %232 : vector<64x128xf32>
    %c0_151 = arith.constant 0 : index
    %c13_152 = arith.constant 13 : index
    %c0_153 = arith.constant 0 : index
    %c0_154 = arith.constant 0 : index
    %234 = vector.load %arg4[%c0_151, %c13_152, %c0_153, %c0_154] : memref<1x50x64x128xf32, #tpu.memory_space<vmem>>, vector<1x1x64x128xf32>
    %235 = vector.shape_cast %234 : vector<1x1x64x128xf32> to vector<64x128xf32>
    %236 = arith.mulf %233, %235 : vector<64x128xf32>
    %237 = arith.maximumf %220, %236 : vector<64x128xf32>
    %c0_155 = arith.constant 0 : index
    %c14 = arith.constant 14 : index
    %c0_156 = arith.constant 0 : index
    %c0_157 = arith.constant 0 : index
    %238 = vector.load %arg2[%c0_155, %c14, %c0_156, %c0_157] : memref<1x50x64x3xf32, #tpu.memory_space<vmem>>, vector<1x1x64x3xf32>
    %239 = vector.shape_cast %238 : vector<1x1x64x3xf32> to vector<64x3xf32>
    %240 = arith.mulf %239, %239 : vector<64x3xf32>
    %cst_158 = arith.constant dense<0.000000e+00> : vector<64xf32>
    %241 = vector.multi_reduction <add>, %240, %cst_158 [1] : vector<64x3xf32> to vector<64xf32>
    %242 = vector.shape_cast %241 : vector<64xf32> to vector<64x1xf32>
    %cst_159 = arith.constant 1.000000e-24 : f32
    %243 = vector.broadcast %cst_159 : f32 to vector<64x1xf32>
    %244 = arith.maximumf %242, %243 : vector<64x1xf32>
    %245 = math.rsqrt %244 : vector<64x1xf32>
    %246 = vector.broadcast %245 : vector<64x1xf32> to vector<64x3xf32>
    %247 = arith.mulf %239, %246 : vector<64x3xf32>
    %cst_160 = arith.constant dense<0.000000e+00> : vector<64x128xf32>
    %248 = tpu.matmul %247, %0, %cst_160 {dimension_numbers = #tpu.dot_dimension_numbers<[1], [0], [0], [1], [0, 0, 1, 1], [], []>} : vector<64x3xf32>, vector<3x128xf32>, vector<64x128xf32> -> vector<64x128xf32>
    %cst_161 = arith.constant 0.000000e+00 : f32
    %249 = vector.broadcast %cst_161 : f32 to vector<64x128xf32>
    %250 = arith.maximumf %248, %249 : vector<64x128xf32>
    %c0_162 = arith.constant 0 : index
    %c14_163 = arith.constant 14 : index
    %c0_164 = arith.constant 0 : index
    %c0_165 = arith.constant 0 : index
    %251 = vector.load %arg4[%c0_162, %c14_163, %c0_164, %c0_165] : memref<1x50x64x128xf32, #tpu.memory_space<vmem>>, vector<1x1x64x128xf32>
    %252 = vector.shape_cast %251 : vector<1x1x64x128xf32> to vector<64x128xf32>
    %253 = arith.mulf %250, %252 : vector<64x128xf32>
    %254 = arith.maximumf %237, %253 : vector<64x128xf32>
    %c0_166 = arith.constant 0 : index
    %c15 = arith.constant 15 : index
    %c0_167 = arith.constant 0 : index
    %c0_168 = arith.constant 0 : index
    %255 = vector.load %arg2[%c0_166, %c15, %c0_167, %c0_168] : memref<1x50x64x3xf32, #tpu.memory_space<vmem>>, vector<1x1x64x3xf32>
    %256 = vector.shape_cast %255 : vector<1x1x64x3xf32> to vector<64x3xf32>
    %257 = arith.mulf %256, %256 : vector<64x3xf32>
    %cst_169 = arith.constant dense<0.000000e+00> : vector<64xf32>
    %258 = vector.multi_reduction <add>, %257, %cst_169 [1] : vector<64x3xf32> to vector<64xf32>
    %259 = vector.shape_cast %258 : vector<64xf32> to vector<64x1xf32>
    %cst_170 = arith.constant 1.000000e-24 : f32
    %260 = vector.broadcast %cst_170 : f32 to vector<64x1xf32>
    %261 = arith.maximumf %259, %260 : vector<64x1xf32>
    %262 = math.rsqrt %261 : vector<64x1xf32>
    %263 = vector.broadcast %262 : vector<64x1xf32> to vector<64x3xf32>
    %264 = arith.mulf %256, %263 : vector<64x3xf32>
    %cst_171 = arith.constant dense<0.000000e+00> : vector<64x128xf32>
    %265 = tpu.matmul %264, %0, %cst_171 {dimension_numbers = #tpu.dot_dimension_numbers<[1], [0], [0], [1], [0, 0, 1, 1], [], []>} : vector<64x3xf32>, vector<3x128xf32>, vector<64x128xf32> -> vector<64x128xf32>
    %cst_172 = arith.constant 0.000000e+00 : f32
    %266 = vector.broadcast %cst_172 : f32 to vector<64x128xf32>
    %267 = arith.maximumf %265, %266 : vector<64x128xf32>
    %c0_173 = arith.constant 0 : index
    %c15_174 = arith.constant 15 : index
    %c0_175 = arith.constant 0 : index
    %c0_176 = arith.constant 0 : index
    %268 = vector.load %arg4[%c0_173, %c15_174, %c0_175, %c0_176] : memref<1x50x64x128xf32, #tpu.memory_space<vmem>>, vector<1x1x64x128xf32>
    %269 = vector.shape_cast %268 : vector<1x1x64x128xf32> to vector<64x128xf32>
    %270 = arith.mulf %267, %269 : vector<64x128xf32>
    %271 = arith.maximumf %254, %270 : vector<64x128xf32>
    %c0_177 = arith.constant 0 : index
    %c16 = arith.constant 16 : index
    %c0_178 = arith.constant 0 : index
    %c0_179 = arith.constant 0 : index
    %272 = vector.load %arg2[%c0_177, %c16, %c0_178, %c0_179] : memref<1x50x64x3xf32, #tpu.memory_space<vmem>>, vector<1x1x64x3xf32>
    %273 = vector.shape_cast %272 : vector<1x1x64x3xf32> to vector<64x3xf32>
    %274 = arith.mulf %273, %273 : vector<64x3xf32>
    %cst_180 = arith.constant dense<0.000000e+00> : vector<64xf32>
    %275 = vector.multi_reduction <add>, %274, %cst_180 [1] : vector<64x3xf32> to vector<64xf32>
    %276 = vector.shape_cast %275 : vector<64xf32> to vector<64x1xf32>
    %cst_181 = arith.constant 1.000000e-24 : f32
    %277 = vector.broadcast %cst_181 : f32 to vector<64x1xf32>
    %278 = arith.maximumf %276, %277 : vector<64x1xf32>
    %279 = math.rsqrt %278 : vector<64x1xf32>
    %280 = vector.broadcast %279 : vector<64x1xf32> to vector<64x3xf32>
    %281 = arith.mulf %273, %280 : vector<64x3xf32>
    %cst_182 = arith.constant dense<0.000000e+00> : vector<64x128xf32>
    %282 = tpu.matmul %281, %0, %cst_182 {dimension_numbers = #tpu.dot_dimension_numbers<[1], [0], [0], [1], [0, 0, 1, 1], [], []>} : vector<64x3xf32>, vector<3x128xf32>, vector<64x128xf32> -> vector<64x128xf32>
    %cst_183 = arith.constant 0.000000e+00 : f32
    %283 = vector.broadcast %cst_183 : f32 to vector<64x128xf32>
    %284 = arith.maximumf %282, %283 : vector<64x128xf32>
    %c0_184 = arith.constant 0 : index
    %c16_185 = arith.constant 16 : index
    %c0_186 = arith.constant 0 : index
    %c0_187 = arith.constant 0 : index
    %285 = vector.load %arg4[%c0_184, %c16_185, %c0_186, %c0_187] : memref<1x50x64x128xf32, #tpu.memory_space<vmem>>, vector<1x1x64x128xf32>
    %286 = vector.shape_cast %285 : vector<1x1x64x128xf32> to vector<64x128xf32>
    %287 = arith.mulf %284, %286 : vector<64x128xf32>
    %288 = arith.maximumf %271, %287 : vector<64x128xf32>
    %c0_188 = arith.constant 0 : index
    %c17 = arith.constant 17 : index
    %c0_189 = arith.constant 0 : index
    %c0_190 = arith.constant 0 : index
    %289 = vector.load %arg2[%c0_188, %c17, %c0_189, %c0_190] : memref<1x50x64x3xf32, #tpu.memory_space<vmem>>, vector<1x1x64x3xf32>
    %290 = vector.shape_cast %289 : vector<1x1x64x3xf32> to vector<64x3xf32>
    %291 = arith.mulf %290, %290 : vector<64x3xf32>
    %cst_191 = arith.constant dense<0.000000e+00> : vector<64xf32>
    %292 = vector.multi_reduction <add>, %291, %cst_191 [1] : vector<64x3xf32> to vector<64xf32>
    %293 = vector.shape_cast %292 : vector<64xf32> to vector<64x1xf32>
    %cst_192 = arith.constant 1.000000e-24 : f32
    %294 = vector.broadcast %cst_192 : f32 to vector<64x1xf32>
    %295 = arith.maximumf %293, %294 : vector<64x1xf32>
    %296 = math.rsqrt %295 : vector<64x1xf32>
    %297 = vector.broadcast %296 : vector<64x1xf32> to vector<64x3xf32>
    %298 = arith.mulf %290, %297 : vector<64x3xf32>
    %cst_193 = arith.constant dense<0.000000e+00> : vector<64x128xf32>
    %299 = tpu.matmul %298, %0, %cst_193 {dimension_numbers = #tpu.dot_dimension_numbers<[1], [0], [0], [1], [0, 0, 1, 1], [], []>} : vector<64x3xf32>, vector<3x128xf32>, vector<64x128xf32> -> vector<64x128xf32>
    %cst_194 = arith.constant 0.000000e+00 : f32
    %300 = vector.broadcast %cst_194 : f32 to vector<64x128xf32>
    %301 = arith.maximumf %299, %300 : vector<64x128xf32>
    %c0_195 = arith.constant 0 : index
    %c17_196 = arith.constant 17 : index
    %c0_197 = arith.constant 0 : index
    %c0_198 = arith.constant 0 : index
    %302 = vector.load %arg4[%c0_195, %c17_196, %c0_197, %c0_198] : memref<1x50x64x128xf32, #tpu.memory_space<vmem>>, vector<1x1x64x128xf32>
    %303 = vector.shape_cast %302 : vector<1x1x64x128xf32> to vector<64x128xf32>
    %304 = arith.mulf %301, %303 : vector<64x128xf32>
    %305 = arith.maximumf %288, %304 : vector<64x128xf32>
    %c0_199 = arith.constant 0 : index
    %c18 = arith.constant 18 : index
    %c0_200 = arith.constant 0 : index
    %c0_201 = arith.constant 0 : index
    %306 = vector.load %arg2[%c0_199, %c18, %c0_200, %c0_201] : memref<1x50x64x3xf32, #tpu.memory_space<vmem>>, vector<1x1x64x3xf32>
    %307 = vector.shape_cast %306 : vector<1x1x64x3xf32> to vector<64x3xf32>
    %308 = arith.mulf %307, %307 : vector<64x3xf32>
    %cst_202 = arith.constant dense<0.000000e+00> : vector<64xf32>
    %309 = vector.multi_reduction <add>, %308, %cst_202 [1] : vector<64x3xf32> to vector<64xf32>
    %310 = vector.shape_cast %309 : vector<64xf32> to vector<64x1xf32>
    %cst_203 = arith.constant 1.000000e-24 : f32
    %311 = vector.broadcast %cst_203 : f32 to vector<64x1xf32>
    %312 = arith.maximumf %310, %311 : vector<64x1xf32>
    %313 = math.rsqrt %312 : vector<64x1xf32>
    %314 = vector.broadcast %313 : vector<64x1xf32> to vector<64x3xf32>
    %315 = arith.mulf %307, %314 : vector<64x3xf32>
    %cst_204 = arith.constant dense<0.000000e+00> : vector<64x128xf32>
    %316 = tpu.matmul %315, %0, %cst_204 {dimension_numbers = #tpu.dot_dimension_numbers<[1], [0], [0], [1], [0, 0, 1, 1], [], []>} : vector<64x3xf32>, vector<3x128xf32>, vector<64x128xf32> -> vector<64x128xf32>
    %cst_205 = arith.constant 0.000000e+00 : f32
    %317 = vector.broadcast %cst_205 : f32 to vector<64x128xf32>
    %318 = arith.maximumf %316, %317 : vector<64x128xf32>
    %c0_206 = arith.constant 0 : index
    %c18_207 = arith.constant 18 : index
    %c0_208 = arith.constant 0 : index
    %c0_209 = arith.constant 0 : index
    %319 = vector.load %arg4[%c0_206, %c18_207, %c0_208, %c0_209] : memref<1x50x64x128xf32, #tpu.memory_space<vmem>>, vector<1x1x64x128xf32>
    %320 = vector.shape_cast %319 : vector<1x1x64x128xf32> to vector<64x128xf32>
    %321 = arith.mulf %318, %320 : vector<64x128xf32>
    %322 = arith.maximumf %305, %321 : vector<64x128xf32>
    %c0_210 = arith.constant 0 : index
    %c19 = arith.constant 19 : index
    %c0_211 = arith.constant 0 : index
    %c0_212 = arith.constant 0 : index
    %323 = vector.load %arg2[%c0_210, %c19, %c0_211, %c0_212] : memref<1x50x64x3xf32, #tpu.memory_space<vmem>>, vector<1x1x64x3xf32>
    %324 = vector.shape_cast %323 : vector<1x1x64x3xf32> to vector<64x3xf32>
    %325 = arith.mulf %324, %324 : vector<64x3xf32>
    %cst_213 = arith.constant dense<0.000000e+00> : vector<64xf32>
    %326 = vector.multi_reduction <add>, %325, %cst_213 [1] : vector<64x3xf32> to vector<64xf32>
    %327 = vector.shape_cast %326 : vector<64xf32> to vector<64x1xf32>
    %cst_214 = arith.constant 1.000000e-24 : f32
    %328 = vector.broadcast %cst_214 : f32 to vector<64x1xf32>
    %329 = arith.maximumf %327, %328 : vector<64x1xf32>
    %330 = math.rsqrt %329 : vector<64x1xf32>
    %331 = vector.broadcast %330 : vector<64x1xf32> to vector<64x3xf32>
    %332 = arith.mulf %324, %331 : vector<64x3xf32>
    %cst_215 = arith.constant dense<0.000000e+00> : vector<64x128xf32>
    %333 = tpu.matmul %332, %0, %cst_215 {dimension_numbers = #tpu.dot_dimension_numbers<[1], [0], [0], [1], [0, 0, 1, 1], [], []>} : vector<64x3xf32>, vector<3x128xf32>, vector<64x128xf32> -> vector<64x128xf32>
    %cst_216 = arith.constant 0.000000e+00 : f32
    %334 = vector.broadcast %cst_216 : f32 to vector<64x128xf32>
    %335 = arith.maximumf %333, %334 : vector<64x128xf32>
    %c0_217 = arith.constant 0 : index
    %c19_218 = arith.constant 19 : index
    %c0_219 = arith.constant 0 : index
    %c0_220 = arith.constant 0 : index
    %336 = vector.load %arg4[%c0_217, %c19_218, %c0_219, %c0_220] : memref<1x50x64x128xf32, #tpu.memory_space<vmem>>, vector<1x1x64x128xf32>
    %337 = vector.shape_cast %336 : vector<1x1x64x128xf32> to vector<64x128xf32>
    %338 = arith.mulf %335, %337 : vector<64x128xf32>
    %339 = arith.maximumf %322, %338 : vector<64x128xf32>
    %c0_221 = arith.constant 0 : index
    %c20 = arith.constant 20 : index
    %c0_222 = arith.constant 0 : index
    %c0_223 = arith.constant 0 : index
    %340 = vector.load %arg2[%c0_221, %c20, %c0_222, %c0_223] : memref<1x50x64x3xf32, #tpu.memory_space<vmem>>, vector<1x1x64x3xf32>
    %341 = vector.shape_cast %340 : vector<1x1x64x3xf32> to vector<64x3xf32>
    %342 = arith.mulf %341, %341 : vector<64x3xf32>
    %cst_224 = arith.constant dense<0.000000e+00> : vector<64xf32>
    %343 = vector.multi_reduction <add>, %342, %cst_224 [1] : vector<64x3xf32> to vector<64xf32>
    %344 = vector.shape_cast %343 : vector<64xf32> to vector<64x1xf32>
    %cst_225 = arith.constant 1.000000e-24 : f32
    %345 = vector.broadcast %cst_225 : f32 to vector<64x1xf32>
    %346 = arith.maximumf %344, %345 : vector<64x1xf32>
    %347 = math.rsqrt %346 : vector<64x1xf32>
    %348 = vector.broadcast %347 : vector<64x1xf32> to vector<64x3xf32>
    %349 = arith.mulf %341, %348 : vector<64x3xf32>
    %cst_226 = arith.constant dense<0.000000e+00> : vector<64x128xf32>
    %350 = tpu.matmul %349, %0, %cst_226 {dimension_numbers = #tpu.dot_dimension_numbers<[1], [0], [0], [1], [0, 0, 1, 1], [], []>} : vector<64x3xf32>, vector<3x128xf32>, vector<64x128xf32> -> vector<64x128xf32>
    %cst_227 = arith.constant 0.000000e+00 : f32
    %351 = vector.broadcast %cst_227 : f32 to vector<64x128xf32>
    %352 = arith.maximumf %350, %351 : vector<64x128xf32>
    %c0_228 = arith.constant 0 : index
    %c20_229 = arith.constant 20 : index
    %c0_230 = arith.constant 0 : index
    %c0_231 = arith.constant 0 : index
    %353 = vector.load %arg4[%c0_228, %c20_229, %c0_230, %c0_231] : memref<1x50x64x128xf32, #tpu.memory_space<vmem>>, vector<1x1x64x128xf32>
    %354 = vector.shape_cast %353 : vector<1x1x64x128xf32> to vector<64x128xf32>
    %355 = arith.mulf %352, %354 : vector<64x128xf32>
    %356 = arith.maximumf %339, %355 : vector<64x128xf32>
    %c0_232 = arith.constant 0 : index
    %c21 = arith.constant 21 : index
    %c0_233 = arith.constant 0 : index
    %c0_234 = arith.constant 0 : index
    %357 = vector.load %arg2[%c0_232, %c21, %c0_233, %c0_234] : memref<1x50x64x3xf32, #tpu.memory_space<vmem>>, vector<1x1x64x3xf32>
    %358 = vector.shape_cast %357 : vector<1x1x64x3xf32> to vector<64x3xf32>
    %359 = arith.mulf %358, %358 : vector<64x3xf32>
    %cst_235 = arith.constant dense<0.000000e+00> : vector<64xf32>
    %360 = vector.multi_reduction <add>, %359, %cst_235 [1] : vector<64x3xf32> to vector<64xf32>
    %361 = vector.shape_cast %360 : vector<64xf32> to vector<64x1xf32>
    %cst_236 = arith.constant 1.000000e-24 : f32
    %362 = vector.broadcast %cst_236 : f32 to vector<64x1xf32>
    %363 = arith.maximumf %361, %362 : vector<64x1xf32>
    %364 = math.rsqrt %363 : vector<64x1xf32>
    %365 = vector.broadcast %364 : vector<64x1xf32> to vector<64x3xf32>
    %366 = arith.mulf %358, %365 : vector<64x3xf32>
    %cst_237 = arith.constant dense<0.000000e+00> : vector<64x128xf32>
    %367 = tpu.matmul %366, %0, %cst_237 {dimension_numbers = #tpu.dot_dimension_numbers<[1], [0], [0], [1], [0, 0, 1, 1], [], []>} : vector<64x3xf32>, vector<3x128xf32>, vector<64x128xf32> -> vector<64x128xf32>
    %cst_238 = arith.constant 0.000000e+00 : f32
    %368 = vector.broadcast %cst_238 : f32 to vector<64x128xf32>
    %369 = arith.maximumf %367, %368 : vector<64x128xf32>
    %c0_239 = arith.constant 0 : index
    %c21_240 = arith.constant 21 : index
    %c0_241 = arith.constant 0 : index
    %c0_242 = arith.constant 0 : index
    %370 = vector.load %arg4[%c0_239, %c21_240, %c0_241, %c0_242] : memref<1x50x64x128xf32, #tpu.memory_space<vmem>>, vector<1x1x64x128xf32>
    %371 = vector.shape_cast %370 : vector<1x1x64x128xf32> to vector<64x128xf32>
    %372 = arith.mulf %369, %371 : vector<64x128xf32>
    %373 = arith.maximumf %356, %372 : vector<64x128xf32>
    %c0_243 = arith.constant 0 : index
    %c22 = arith.constant 22 : index
    %c0_244 = arith.constant 0 : index
    %c0_245 = arith.constant 0 : index
    %374 = vector.load %arg2[%c0_243, %c22, %c0_244, %c0_245] : memref<1x50x64x3xf32, #tpu.memory_space<vmem>>, vector<1x1x64x3xf32>
    %375 = vector.shape_cast %374 : vector<1x1x64x3xf32> to vector<64x3xf32>
    %376 = arith.mulf %375, %375 : vector<64x3xf32>
    %cst_246 = arith.constant dense<0.000000e+00> : vector<64xf32>
    %377 = vector.multi_reduction <add>, %376, %cst_246 [1] : vector<64x3xf32> to vector<64xf32>
    %378 = vector.shape_cast %377 : vector<64xf32> to vector<64x1xf32>
    %cst_247 = arith.constant 1.000000e-24 : f32
    %379 = vector.broadcast %cst_247 : f32 to vector<64x1xf32>
    %380 = arith.maximumf %378, %379 : vector<64x1xf32>
    %381 = math.rsqrt %380 : vector<64x1xf32>
    %382 = vector.broadcast %381 : vector<64x1xf32> to vector<64x3xf32>
    %383 = arith.mulf %375, %382 : vector<64x3xf32>
    %cst_248 = arith.constant dense<0.000000e+00> : vector<64x128xf32>
    %384 = tpu.matmul %383, %0, %cst_248 {dimension_numbers = #tpu.dot_dimension_numbers<[1], [0], [0], [1], [0, 0, 1, 1], [], []>} : vector<64x3xf32>, vector<3x128xf32>, vector<64x128xf32> -> vector<64x128xf32>
    %cst_249 = arith.constant 0.000000e+00 : f32
    %385 = vector.broadcast %cst_249 : f32 to vector<64x128xf32>
    %386 = arith.maximumf %384, %385 : vector<64x128xf32>
    %c0_250 = arith.constant 0 : index
    %c22_251 = arith.constant 22 : index
    %c0_252 = arith.constant 0 : index
    %c0_253 = arith.constant 0 : index
    %387 = vector.load %arg4[%c0_250, %c22_251, %c0_252, %c0_253] : memref<1x50x64x128xf32, #tpu.memory_space<vmem>>, vector<1x1x64x128xf32>
    %388 = vector.shape_cast %387 : vector<1x1x64x128xf32> to vector<64x128xf32>
    %389 = arith.mulf %386, %388 : vector<64x128xf32>
    %390 = arith.maximumf %373, %389 : vector<64x128xf32>
    %c0_254 = arith.constant 0 : index
    %c23 = arith.constant 23 : index
    %c0_255 = arith.constant 0 : index
    %c0_256 = arith.constant 0 : index
    %391 = vector.load %arg2[%c0_254, %c23, %c0_255, %c0_256] : memref<1x50x64x3xf32, #tpu.memory_space<vmem>>, vector<1x1x64x3xf32>
    %392 = vector.shape_cast %391 : vector<1x1x64x3xf32> to vector<64x3xf32>
    %393 = arith.mulf %392, %392 : vector<64x3xf32>
    %cst_257 = arith.constant dense<0.000000e+00> : vector<64xf32>
    %394 = vector.multi_reduction <add>, %393, %cst_257 [1] : vector<64x3xf32> to vector<64xf32>
    %395 = vector.shape_cast %394 : vector<64xf32> to vector<64x1xf32>
    %cst_258 = arith.constant 1.000000e-24 : f32
    %396 = vector.broadcast %cst_258 : f32 to vector<64x1xf32>
    %397 = arith.maximumf %395, %396 : vector<64x1xf32>
    %398 = math.rsqrt %397 : vector<64x1xf32>
    %399 = vector.broadcast %398 : vector<64x1xf32> to vector<64x3xf32>
    %400 = arith.mulf %392, %399 : vector<64x3xf32>
    %cst_259 = arith.constant dense<0.000000e+00> : vector<64x128xf32>
    %401 = tpu.matmul %400, %0, %cst_259 {dimension_numbers = #tpu.dot_dimension_numbers<[1], [0], [0], [1], [0, 0, 1, 1], [], []>} : vector<64x3xf32>, vector<3x128xf32>, vector<64x128xf32> -> vector<64x128xf32>
    %cst_260 = arith.constant 0.000000e+00 : f32
    %402 = vector.broadcast %cst_260 : f32 to vector<64x128xf32>
    %403 = arith.maximumf %401, %402 : vector<64x128xf32>
    %c0_261 = arith.constant 0 : index
    %c23_262 = arith.constant 23 : index
    %c0_263 = arith.constant 0 : index
    %c0_264 = arith.constant 0 : index
    %404 = vector.load %arg4[%c0_261, %c23_262, %c0_263, %c0_264] : memref<1x50x64x128xf32, #tpu.memory_space<vmem>>, vector<1x1x64x128xf32>
    %405 = vector.shape_cast %404 : vector<1x1x64x128xf32> to vector<64x128xf32>
    %406 = arith.mulf %403, %405 : vector<64x128xf32>
    %407 = arith.maximumf %390, %406 : vector<64x128xf32>
    %c0_265 = arith.constant 0 : index
    %c24 = arith.constant 24 : index
    %c0_266 = arith.constant 0 : index
    %c0_267 = arith.constant 0 : index
    %408 = vector.load %arg2[%c0_265, %c24, %c0_266, %c0_267] : memref<1x50x64x3xf32, #tpu.memory_space<vmem>>, vector<1x1x64x3xf32>
    %409 = vector.shape_cast %408 : vector<1x1x64x3xf32> to vector<64x3xf32>
    %410 = arith.mulf %409, %409 : vector<64x3xf32>
    %cst_268 = arith.constant dense<0.000000e+00> : vector<64xf32>
    %411 = vector.multi_reduction <add>, %410, %cst_268 [1] : vector<64x3xf32> to vector<64xf32>
    %412 = vector.shape_cast %411 : vector<64xf32> to vector<64x1xf32>
    %cst_269 = arith.constant 1.000000e-24 : f32
    %413 = vector.broadcast %cst_269 : f32 to vector<64x1xf32>
    %414 = arith.maximumf %412, %413 : vector<64x1xf32>
    %415 = math.rsqrt %414 : vector<64x1xf32>
    %416 = vector.broadcast %415 : vector<64x1xf32> to vector<64x3xf32>
    %417 = arith.mulf %409, %416 : vector<64x3xf32>
    %cst_270 = arith.constant dense<0.000000e+00> : vector<64x128xf32>
    %418 = tpu.matmul %417, %0, %cst_270 {dimension_numbers = #tpu.dot_dimension_numbers<[1], [0], [0], [1], [0, 0, 1, 1], [], []>} : vector<64x3xf32>, vector<3x128xf32>, vector<64x128xf32> -> vector<64x128xf32>
    %cst_271 = arith.constant 0.000000e+00 : f32
    %419 = vector.broadcast %cst_271 : f32 to vector<64x128xf32>
    %420 = arith.maximumf %418, %419 : vector<64x128xf32>
    %c0_272 = arith.constant 0 : index
    %c24_273 = arith.constant 24 : index
    %c0_274 = arith.constant 0 : index
    %c0_275 = arith.constant 0 : index
    %421 = vector.load %arg4[%c0_272, %c24_273, %c0_274, %c0_275] : memref<1x50x64x128xf32, #tpu.memory_space<vmem>>, vector<1x1x64x128xf32>
    %422 = vector.shape_cast %421 : vector<1x1x64x128xf32> to vector<64x128xf32>
    %423 = arith.mulf %420, %422 : vector<64x128xf32>
    %424 = arith.maximumf %407, %423 : vector<64x128xf32>
    %c0_276 = arith.constant 0 : index
    %c25 = arith.constant 25 : index
    %c0_277 = arith.constant 0 : index
    %c0_278 = arith.constant 0 : index
    %425 = vector.load %arg2[%c0_276, %c25, %c0_277, %c0_278] : memref<1x50x64x3xf32, #tpu.memory_space<vmem>>, vector<1x1x64x3xf32>
    %426 = vector.shape_cast %425 : vector<1x1x64x3xf32> to vector<64x3xf32>
    %427 = arith.mulf %426, %426 : vector<64x3xf32>
    %cst_279 = arith.constant dense<0.000000e+00> : vector<64xf32>
    %428 = vector.multi_reduction <add>, %427, %cst_279 [1] : vector<64x3xf32> to vector<64xf32>
    %429 = vector.shape_cast %428 : vector<64xf32> to vector<64x1xf32>
    %cst_280 = arith.constant 1.000000e-24 : f32
    %430 = vector.broadcast %cst_280 : f32 to vector<64x1xf32>
    %431 = arith.maximumf %429, %430 : vector<64x1xf32>
    %432 = math.rsqrt %431 : vector<64x1xf32>
    %433 = vector.broadcast %432 : vector<64x1xf32> to vector<64x3xf32>
    %434 = arith.mulf %426, %433 : vector<64x3xf32>
    %cst_281 = arith.constant dense<0.000000e+00> : vector<64x128xf32>
    %435 = tpu.matmul %434, %0, %cst_281 {dimension_numbers = #tpu.dot_dimension_numbers<[1], [0], [0], [1], [0, 0, 1, 1], [], []>} : vector<64x3xf32>, vector<3x128xf32>, vector<64x128xf32> -> vector<64x128xf32>
    %cst_282 = arith.constant 0.000000e+00 : f32
    %436 = vector.broadcast %cst_282 : f32 to vector<64x128xf32>
    %437 = arith.maximumf %435, %436 : vector<64x128xf32>
    %c0_283 = arith.constant 0 : index
    %c25_284 = arith.constant 25 : index
    %c0_285 = arith.constant 0 : index
    %c0_286 = arith.constant 0 : index
    %438 = vector.load %arg4[%c0_283, %c25_284, %c0_285, %c0_286] : memref<1x50x64x128xf32, #tpu.memory_space<vmem>>, vector<1x1x64x128xf32>
    %439 = vector.shape_cast %438 : vector<1x1x64x128xf32> to vector<64x128xf32>
    %440 = arith.mulf %437, %439 : vector<64x128xf32>
    %441 = arith.maximumf %424, %440 : vector<64x128xf32>
    %c0_287 = arith.constant 0 : index
    %c26 = arith.constant 26 : index
    %c0_288 = arith.constant 0 : index
    %c0_289 = arith.constant 0 : index
    %442 = vector.load %arg2[%c0_287, %c26, %c0_288, %c0_289] : memref<1x50x64x3xf32, #tpu.memory_space<vmem>>, vector<1x1x64x3xf32>
    %443 = vector.shape_cast %442 : vector<1x1x64x3xf32> to vector<64x3xf32>
    %444 = arith.mulf %443, %443 : vector<64x3xf32>
    %cst_290 = arith.constant dense<0.000000e+00> : vector<64xf32>
    %445 = vector.multi_reduction <add>, %444, %cst_290 [1] : vector<64x3xf32> to vector<64xf32>
    %446 = vector.shape_cast %445 : vector<64xf32> to vector<64x1xf32>
    %cst_291 = arith.constant 1.000000e-24 : f32
    %447 = vector.broadcast %cst_291 : f32 to vector<64x1xf32>
    %448 = arith.maximumf %446, %447 : vector<64x1xf32>
    %449 = math.rsqrt %448 : vector<64x1xf32>
    %450 = vector.broadcast %449 : vector<64x1xf32> to vector<64x3xf32>
    %451 = arith.mulf %443, %450 : vector<64x3xf32>
    %cst_292 = arith.constant dense<0.000000e+00> : vector<64x128xf32>
    %452 = tpu.matmul %451, %0, %cst_292 {dimension_numbers = #tpu.dot_dimension_numbers<[1], [0], [0], [1], [0, 0, 1, 1], [], []>} : vector<64x3xf32>, vector<3x128xf32>, vector<64x128xf32> -> vector<64x128xf32>
    %cst_293 = arith.constant 0.000000e+00 : f32
    %453 = vector.broadcast %cst_293 : f32 to vector<64x128xf32>
    %454 = arith.maximumf %452, %453 : vector<64x128xf32>
    %c0_294 = arith.constant 0 : index
    %c26_295 = arith.constant 26 : index
    %c0_296 = arith.constant 0 : index
    %c0_297 = arith.constant 0 : index
    %455 = vector.load %arg4[%c0_294, %c26_295, %c0_296, %c0_297] : memref<1x50x64x128xf32, #tpu.memory_space<vmem>>, vector<1x1x64x128xf32>
    %456 = vector.shape_cast %455 : vector<1x1x64x128xf32> to vector<64x128xf32>
    %457 = arith.mulf %454, %456 : vector<64x128xf32>
    %458 = arith.maximumf %441, %457 : vector<64x128xf32>
    %c0_298 = arith.constant 0 : index
    %c27 = arith.constant 27 : index
    %c0_299 = arith.constant 0 : index
    %c0_300 = arith.constant 0 : index
    %459 = vector.load %arg2[%c0_298, %c27, %c0_299, %c0_300] : memref<1x50x64x3xf32, #tpu.memory_space<vmem>>, vector<1x1x64x3xf32>
    %460 = vector.shape_cast %459 : vector<1x1x64x3xf32> to vector<64x3xf32>
    %461 = arith.mulf %460, %460 : vector<64x3xf32>
    %cst_301 = arith.constant dense<0.000000e+00> : vector<64xf32>
    %462 = vector.multi_reduction <add>, %461, %cst_301 [1] : vector<64x3xf32> to vector<64xf32>
    %463 = vector.shape_cast %462 : vector<64xf32> to vector<64x1xf32>
    %cst_302 = arith.constant 1.000000e-24 : f32
    %464 = vector.broadcast %cst_302 : f32 to vector<64x1xf32>
    %465 = arith.maximumf %463, %464 : vector<64x1xf32>
    %466 = math.rsqrt %465 : vector<64x1xf32>
    %467 = vector.broadcast %466 : vector<64x1xf32> to vector<64x3xf32>
    %468 = arith.mulf %460, %467 : vector<64x3xf32>
    %cst_303 = arith.constant dense<0.000000e+00> : vector<64x128xf32>
    %469 = tpu.matmul %468, %0, %cst_303 {dimension_numbers = #tpu.dot_dimension_numbers<[1], [0], [0], [1], [0, 0, 1, 1], [], []>} : vector<64x3xf32>, vector<3x128xf32>, vector<64x128xf32> -> vector<64x128xf32>
    %cst_304 = arith.constant 0.000000e+00 : f32
    %470 = vector.broadcast %cst_304 : f32 to vector<64x128xf32>
    %471 = arith.maximumf %469, %470 : vector<64x128xf32>
    %c0_305 = arith.constant 0 : index
    %c27_306 = arith.constant 27 : index
    %c0_307 = arith.constant 0 : index
    %c0_308 = arith.constant 0 : index
    %472 = vector.load %arg4[%c0_305, %c27_306, %c0_307, %c0_308] : memref<1x50x64x128xf32, #tpu.memory_space<vmem>>, vector<1x1x64x128xf32>
    %473 = vector.shape_cast %472 : vector<1x1x64x128xf32> to vector<64x128xf32>
    %474 = arith.mulf %471, %473 : vector<64x128xf32>
    %475 = arith.maximumf %458, %474 : vector<64x128xf32>
    %c0_309 = arith.constant 0 : index
    %c28 = arith.constant 28 : index
    %c0_310 = arith.constant 0 : index
    %c0_311 = arith.constant 0 : index
    %476 = vector.load %arg2[%c0_309, %c28, %c0_310, %c0_311] : memref<1x50x64x3xf32, #tpu.memory_space<vmem>>, vector<1x1x64x3xf32>
    %477 = vector.shape_cast %476 : vector<1x1x64x3xf32> to vector<64x3xf32>
    %478 = arith.mulf %477, %477 : vector<64x3xf32>
    %cst_312 = arith.constant dense<0.000000e+00> : vector<64xf32>
    %479 = vector.multi_reduction <add>, %478, %cst_312 [1] : vector<64x3xf32> to vector<64xf32>
    %480 = vector.shape_cast %479 : vector<64xf32> to vector<64x1xf32>
    %cst_313 = arith.constant 1.000000e-24 : f32
    %481 = vector.broadcast %cst_313 : f32 to vector<64x1xf32>
    %482 = arith.maximumf %480, %481 : vector<64x1xf32>
    %483 = math.rsqrt %482 : vector<64x1xf32>
    %484 = vector.broadcast %483 : vector<64x1xf32> to vector<64x3xf32>
    %485 = arith.mulf %477, %484 : vector<64x3xf32>
    %cst_314 = arith.constant dense<0.000000e+00> : vector<64x128xf32>
    %486 = tpu.matmul %485, %0, %cst_314 {dimension_numbers = #tpu.dot_dimension_numbers<[1], [0], [0], [1], [0, 0, 1, 1], [], []>} : vector<64x3xf32>, vector<3x128xf32>, vector<64x128xf32> -> vector<64x128xf32>
    %cst_315 = arith.constant 0.000000e+00 : f32
    %487 = vector.broadcast %cst_315 : f32 to vector<64x128xf32>
    %488 = arith.maximumf %486, %487 : vector<64x128xf32>
    %c0_316 = arith.constant 0 : index
    %c28_317 = arith.constant 28 : index
    %c0_318 = arith.constant 0 : index
    %c0_319 = arith.constant 0 : index
    %489 = vector.load %arg4[%c0_316, %c28_317, %c0_318, %c0_319] : memref<1x50x64x128xf32, #tpu.memory_space<vmem>>, vector<1x1x64x128xf32>
    %490 = vector.shape_cast %489 : vector<1x1x64x128xf32> to vector<64x128xf32>
    %491 = arith.mulf %488, %490 : vector<64x128xf32>
    %492 = arith.maximumf %475, %491 : vector<64x128xf32>
    %c0_320 = arith.constant 0 : index
    %c29 = arith.constant 29 : index
    %c0_321 = arith.constant 0 : index
    %c0_322 = arith.constant 0 : index
    %493 = vector.load %arg2[%c0_320, %c29, %c0_321, %c0_322] : memref<1x50x64x3xf32, #tpu.memory_space<vmem>>, vector<1x1x64x3xf32>
    %494 = vector.shape_cast %493 : vector<1x1x64x3xf32> to vector<64x3xf32>
    %495 = arith.mulf %494, %494 : vector<64x3xf32>
    %cst_323 = arith.constant dense<0.000000e+00> : vector<64xf32>
    %496 = vector.multi_reduction <add>, %495, %cst_323 [1] : vector<64x3xf32> to vector<64xf32>
    %497 = vector.shape_cast %496 : vector<64xf32> to vector<64x1xf32>
    %cst_324 = arith.constant 1.000000e-24 : f32
    %498 = vector.broadcast %cst_324 : f32 to vector<64x1xf32>
    %499 = arith.maximumf %497, %498 : vector<64x1xf32>
    %500 = math.rsqrt %499 : vector<64x1xf32>
    %501 = vector.broadcast %500 : vector<64x1xf32> to vector<64x3xf32>
    %502 = arith.mulf %494, %501 : vector<64x3xf32>
    %cst_325 = arith.constant dense<0.000000e+00> : vector<64x128xf32>
    %503 = tpu.matmul %502, %0, %cst_325 {dimension_numbers = #tpu.dot_dimension_numbers<[1], [0], [0], [1], [0, 0, 1, 1], [], []>} : vector<64x3xf32>, vector<3x128xf32>, vector<64x128xf32> -> vector<64x128xf32>
    %cst_326 = arith.constant 0.000000e+00 : f32
    %504 = vector.broadcast %cst_326 : f32 to vector<64x128xf32>
    %505 = arith.maximumf %503, %504 : vector<64x128xf32>
    %c0_327 = arith.constant 0 : index
    %c29_328 = arith.constant 29 : index
    %c0_329 = arith.constant 0 : index
    %c0_330 = arith.constant 0 : index
    %506 = vector.load %arg4[%c0_327, %c29_328, %c0_329, %c0_330] : memref<1x50x64x128xf32, #tpu.memory_space<vmem>>, vector<1x1x64x128xf32>
    %507 = vector.shape_cast %506 : vector<1x1x64x128xf32> to vector<64x128xf32>
    %508 = arith.mulf %505, %507 : vector<64x128xf32>
    %509 = arith.maximumf %492, %508 : vector<64x128xf32>
    %c0_331 = arith.constant 0 : index
    %c30 = arith.constant 30 : index
    %c0_332 = arith.constant 0 : index
    %c0_333 = arith.constant 0 : index
    %510 = vector.load %arg2[%c0_331, %c30, %c0_332, %c0_333] : memref<1x50x64x3xf32, #tpu.memory_space<vmem>>, vector<1x1x64x3xf32>
    %511 = vector.shape_cast %510 : vector<1x1x64x3xf32> to vector<64x3xf32>
    %512 = arith.mulf %511, %511 : vector<64x3xf32>
    %cst_334 = arith.constant dense<0.000000e+00> : vector<64xf32>
    %513 = vector.multi_reduction <add>, %512, %cst_334 [1] : vector<64x3xf32> to vector<64xf32>
    %514 = vector.shape_cast %513 : vector<64xf32> to vector<64x1xf32>
    %cst_335 = arith.constant 1.000000e-24 : f32
    %515 = vector.broadcast %cst_335 : f32 to vector<64x1xf32>
    %516 = arith.maximumf %514, %515 : vector<64x1xf32>
    %517 = math.rsqrt %516 : vector<64x1xf32>
    %518 = vector.broadcast %517 : vector<64x1xf32> to vector<64x3xf32>
    %519 = arith.mulf %511, %518 : vector<64x3xf32>
    %cst_336 = arith.constant dense<0.000000e+00> : vector<64x128xf32>
    %520 = tpu.matmul %519, %0, %cst_336 {dimension_numbers = #tpu.dot_dimension_numbers<[1], [0], [0], [1], [0, 0, 1, 1], [], []>} : vector<64x3xf32>, vector<3x128xf32>, vector<64x128xf32> -> vector<64x128xf32>
    %cst_337 = arith.constant 0.000000e+00 : f32
    %521 = vector.broadcast %cst_337 : f32 to vector<64x128xf32>
    %522 = arith.maximumf %520, %521 : vector<64x128xf32>
    %c0_338 = arith.constant 0 : index
    %c30_339 = arith.constant 30 : index
    %c0_340 = arith.constant 0 : index
    %c0_341 = arith.constant 0 : index
    %523 = vector.load %arg4[%c0_338, %c30_339, %c0_340, %c0_341] : memref<1x50x64x128xf32, #tpu.memory_space<vmem>>, vector<1x1x64x128xf32>
    %524 = vector.shape_cast %523 : vector<1x1x64x128xf32> to vector<64x128xf32>
    %525 = arith.mulf %522, %524 : vector<64x128xf32>
    %526 = arith.maximumf %509, %525 : vector<64x128xf32>
    %c0_342 = arith.constant 0 : index
    %c31 = arith.constant 31 : index
    %c0_343 = arith.constant 0 : index
    %c0_344 = arith.constant 0 : index
    %527 = vector.load %arg2[%c0_342, %c31, %c0_343, %c0_344] : memref<1x50x64x3xf32, #tpu.memory_space<vmem>>, vector<1x1x64x3xf32>
    %528 = vector.shape_cast %527 : vector<1x1x64x3xf32> to vector<64x3xf32>
    %529 = arith.mulf %528, %528 : vector<64x3xf32>
    %cst_345 = arith.constant dense<0.000000e+00> : vector<64xf32>
    %530 = vector.multi_reduction <add>, %529, %cst_345 [1] : vector<64x3xf32> to vector<64xf32>
    %531 = vector.shape_cast %530 : vector<64xf32> to vector<64x1xf32>
    %cst_346 = arith.constant 1.000000e-24 : f32
    %532 = vector.broadcast %cst_346 : f32 to vector<64x1xf32>
    %533 = arith.maximumf %531, %532 : vector<64x1xf32>
    %534 = math.rsqrt %533 : vector<64x1xf32>
    %535 = vector.broadcast %534 : vector<64x1xf32> to vector<64x3xf32>
    %536 = arith.mulf %528, %535 : vector<64x3xf32>
    %cst_347 = arith.constant dense<0.000000e+00> : vector<64x128xf32>
    %537 = tpu.matmul %536, %0, %cst_347 {dimension_numbers = #tpu.dot_dimension_numbers<[1], [0], [0], [1], [0, 0, 1, 1], [], []>} : vector<64x3xf32>, vector<3x128xf32>, vector<64x128xf32> -> vector<64x128xf32>
    %cst_348 = arith.constant 0.000000e+00 : f32
    %538 = vector.broadcast %cst_348 : f32 to vector<64x128xf32>
    %539 = arith.maximumf %537, %538 : vector<64x128xf32>
    %c0_349 = arith.constant 0 : index
    %c31_350 = arith.constant 31 : index
    %c0_351 = arith.constant 0 : index
    %c0_352 = arith.constant 0 : index
    %540 = vector.load %arg4[%c0_349, %c31_350, %c0_351, %c0_352] : memref<1x50x64x128xf32, #tpu.memory_space<vmem>>, vector<1x1x64x128xf32>
    %541 = vector.shape_cast %540 : vector<1x1x64x128xf32> to vector<64x128xf32>
    %542 = arith.mulf %539, %541 : vector<64x128xf32>
    %543 = arith.maximumf %526, %542 : vector<64x128xf32>
    %c0_353 = arith.constant 0 : index
    %c32 = arith.constant 32 : index
    %c0_354 = arith.constant 0 : index
    %c0_355 = arith.constant 0 : index
    %544 = vector.load %arg2[%c0_353, %c32, %c0_354, %c0_355] : memref<1x50x64x3xf32, #tpu.memory_space<vmem>>, vector<1x1x64x3xf32>
    %545 = vector.shape_cast %544 : vector<1x1x64x3xf32> to vector<64x3xf32>
    %546 = arith.mulf %545, %545 : vector<64x3xf32>
    %cst_356 = arith.constant dense<0.000000e+00> : vector<64xf32>
    %547 = vector.multi_reduction <add>, %546, %cst_356 [1] : vector<64x3xf32> to vector<64xf32>
    %548 = vector.shape_cast %547 : vector<64xf32> to vector<64x1xf32>
    %cst_357 = arith.constant 1.000000e-24 : f32
    %549 = vector.broadcast %cst_357 : f32 to vector<64x1xf32>
    %550 = arith.maximumf %548, %549 : vector<64x1xf32>
    %551 = math.rsqrt %550 : vector<64x1xf32>
    %552 = vector.broadcast %551 : vector<64x1xf32> to vector<64x3xf32>
    %553 = arith.mulf %545, %552 : vector<64x3xf32>
    %cst_358 = arith.constant dense<0.000000e+00> : vector<64x128xf32>
    %554 = tpu.matmul %553, %0, %cst_358 {dimension_numbers = #tpu.dot_dimension_numbers<[1], [0], [0], [1], [0, 0, 1, 1], [], []>} : vector<64x3xf32>, vector<3x128xf32>, vector<64x128xf32> -> vector<64x128xf32>
    %cst_359 = arith.constant 0.000000e+00 : f32
    %555 = vector.broadcast %cst_359 : f32 to vector<64x128xf32>
    %556 = arith.maximumf %554, %555 : vector<64x128xf32>
    %c0_360 = arith.constant 0 : index
    %c32_361 = arith.constant 32 : index
    %c0_362 = arith.constant 0 : index
    %c0_363 = arith.constant 0 : index
    %557 = vector.load %arg4[%c0_360, %c32_361, %c0_362, %c0_363] : memref<1x50x64x128xf32, #tpu.memory_space<vmem>>, vector<1x1x64x128xf32>
    %558 = vector.shape_cast %557 : vector<1x1x64x128xf32> to vector<64x128xf32>
    %559 = arith.mulf %556, %558 : vector<64x128xf32>
    %560 = arith.maximumf %543, %559 : vector<64x128xf32>
    %c0_364 = arith.constant 0 : index
    %c33 = arith.constant 33 : index
    %c0_365 = arith.constant 0 : index
    %c0_366 = arith.constant 0 : index
    %561 = vector.load %arg2[%c0_364, %c33, %c0_365, %c0_366] : memref<1x50x64x3xf32, #tpu.memory_space<vmem>>, vector<1x1x64x3xf32>
    %562 = vector.shape_cast %561 : vector<1x1x64x3xf32> to vector<64x3xf32>
    %563 = arith.mulf %562, %562 : vector<64x3xf32>
    %cst_367 = arith.constant dense<0.000000e+00> : vector<64xf32>
    %564 = vector.multi_reduction <add>, %563, %cst_367 [1] : vector<64x3xf32> to vector<64xf32>
    %565 = vector.shape_cast %564 : vector<64xf32> to vector<64x1xf32>
    %cst_368 = arith.constant 1.000000e-24 : f32
    %566 = vector.broadcast %cst_368 : f32 to vector<64x1xf32>
    %567 = arith.maximumf %565, %566 : vector<64x1xf32>
    %568 = math.rsqrt %567 : vector<64x1xf32>
    %569 = vector.broadcast %568 : vector<64x1xf32> to vector<64x3xf32>
    %570 = arith.mulf %562, %569 : vector<64x3xf32>
    %cst_369 = arith.constant dense<0.000000e+00> : vector<64x128xf32>
    %571 = tpu.matmul %570, %0, %cst_369 {dimension_numbers = #tpu.dot_dimension_numbers<[1], [0], [0], [1], [0, 0, 1, 1], [], []>} : vector<64x3xf32>, vector<3x128xf32>, vector<64x128xf32> -> vector<64x128xf32>
    %cst_370 = arith.constant 0.000000e+00 : f32
    %572 = vector.broadcast %cst_370 : f32 to vector<64x128xf32>
    %573 = arith.maximumf %571, %572 : vector<64x128xf32>
    %c0_371 = arith.constant 0 : index
    %c33_372 = arith.constant 33 : index
    %c0_373 = arith.constant 0 : index
    %c0_374 = arith.constant 0 : index
    %574 = vector.load %arg4[%c0_371, %c33_372, %c0_373, %c0_374] : memref<1x50x64x128xf32, #tpu.memory_space<vmem>>, vector<1x1x64x128xf32>
    %575 = vector.shape_cast %574 : vector<1x1x64x128xf32> to vector<64x128xf32>
    %576 = arith.mulf %573, %575 : vector<64x128xf32>
    %577 = arith.maximumf %560, %576 : vector<64x128xf32>
    %c0_375 = arith.constant 0 : index
    %c34 = arith.constant 34 : index
    %c0_376 = arith.constant 0 : index
    %c0_377 = arith.constant 0 : index
    %578 = vector.load %arg2[%c0_375, %c34, %c0_376, %c0_377] : memref<1x50x64x3xf32, #tpu.memory_space<vmem>>, vector<1x1x64x3xf32>
    %579 = vector.shape_cast %578 : vector<1x1x64x3xf32> to vector<64x3xf32>
    %580 = arith.mulf %579, %579 : vector<64x3xf32>
    %cst_378 = arith.constant dense<0.000000e+00> : vector<64xf32>
    %581 = vector.multi_reduction <add>, %580, %cst_378 [1] : vector<64x3xf32> to vector<64xf32>
    %582 = vector.shape_cast %581 : vector<64xf32> to vector<64x1xf32>
    %cst_379 = arith.constant 1.000000e-24 : f32
    %583 = vector.broadcast %cst_379 : f32 to vector<64x1xf32>
    %584 = arith.maximumf %582, %583 : vector<64x1xf32>
    %585 = math.rsqrt %584 : vector<64x1xf32>
    %586 = vector.broadcast %585 : vector<64x1xf32> to vector<64x3xf32>
    %587 = arith.mulf %579, %586 : vector<64x3xf32>
    %cst_380 = arith.constant dense<0.000000e+00> : vector<64x128xf32>
    %588 = tpu.matmul %587, %0, %cst_380 {dimension_numbers = #tpu.dot_dimension_numbers<[1], [0], [0], [1], [0, 0, 1, 1], [], []>} : vector<64x3xf32>, vector<3x128xf32>, vector<64x128xf32> -> vector<64x128xf32>
    %cst_381 = arith.constant 0.000000e+00 : f32
    %589 = vector.broadcast %cst_381 : f32 to vector<64x128xf32>
    %590 = arith.maximumf %588, %589 : vector<64x128xf32>
    %c0_382 = arith.constant 0 : index
    %c34_383 = arith.constant 34 : index
    %c0_384 = arith.constant 0 : index
    %c0_385 = arith.constant 0 : index
    %591 = vector.load %arg4[%c0_382, %c34_383, %c0_384, %c0_385] : memref<1x50x64x128xf32, #tpu.memory_space<vmem>>, vector<1x1x64x128xf32>
    %592 = vector.shape_cast %591 : vector<1x1x64x128xf32> to vector<64x128xf32>
    %593 = arith.mulf %590, %592 : vector<64x128xf32>
    %594 = arith.maximumf %577, %593 : vector<64x128xf32>
    %c0_386 = arith.constant 0 : index
    %c35 = arith.constant 35 : index
    %c0_387 = arith.constant 0 : index
    %c0_388 = arith.constant 0 : index
    %595 = vector.load %arg2[%c0_386, %c35, %c0_387, %c0_388] : memref<1x50x64x3xf32, #tpu.memory_space<vmem>>, vector<1x1x64x3xf32>
    %596 = vector.shape_cast %595 : vector<1x1x64x3xf32> to vector<64x3xf32>
    %597 = arith.mulf %596, %596 : vector<64x3xf32>
    %cst_389 = arith.constant dense<0.000000e+00> : vector<64xf32>
    %598 = vector.multi_reduction <add>, %597, %cst_389 [1] : vector<64x3xf32> to vector<64xf32>
    %599 = vector.shape_cast %598 : vector<64xf32> to vector<64x1xf32>
    %cst_390 = arith.constant 1.000000e-24 : f32
    %600 = vector.broadcast %cst_390 : f32 to vector<64x1xf32>
    %601 = arith.maximumf %599, %600 : vector<64x1xf32>
    %602 = math.rsqrt %601 : vector<64x1xf32>
    %603 = vector.broadcast %602 : vector<64x1xf32> to vector<64x3xf32>
    %604 = arith.mulf %596, %603 : vector<64x3xf32>
    %cst_391 = arith.constant dense<0.000000e+00> : vector<64x128xf32>
    %605 = tpu.matmul %604, %0, %cst_391 {dimension_numbers = #tpu.dot_dimension_numbers<[1], [0], [0], [1], [0, 0, 1, 1], [], []>} : vector<64x3xf32>, vector<3x128xf32>, vector<64x128xf32> -> vector<64x128xf32>
    %cst_392 = arith.constant 0.000000e+00 : f32
    %606 = vector.broadcast %cst_392 : f32 to vector<64x128xf32>
    %607 = arith.maximumf %605, %606 : vector<64x128xf32>
    %c0_393 = arith.constant 0 : index
    %c35_394 = arith.constant 35 : index
    %c0_395 = arith.constant 0 : index
    %c0_396 = arith.constant 0 : index
    %608 = vector.load %arg4[%c0_393, %c35_394, %c0_395, %c0_396] : memref<1x50x64x128xf32, #tpu.memory_space<vmem>>, vector<1x1x64x128xf32>
    %609 = vector.shape_cast %608 : vector<1x1x64x128xf32> to vector<64x128xf32>
    %610 = arith.mulf %607, %609 : vector<64x128xf32>
    %611 = arith.maximumf %594, %610 : vector<64x128xf32>
    %c0_397 = arith.constant 0 : index
    %c36 = arith.constant 36 : index
    %c0_398 = arith.constant 0 : index
    %c0_399 = arith.constant 0 : index
    %612 = vector.load %arg2[%c0_397, %c36, %c0_398, %c0_399] : memref<1x50x64x3xf32, #tpu.memory_space<vmem>>, vector<1x1x64x3xf32>
    %613 = vector.shape_cast %612 : vector<1x1x64x3xf32> to vector<64x3xf32>
    %614 = arith.mulf %613, %613 : vector<64x3xf32>
    %cst_400 = arith.constant dense<0.000000e+00> : vector<64xf32>
    %615 = vector.multi_reduction <add>, %614, %cst_400 [1] : vector<64x3xf32> to vector<64xf32>
    %616 = vector.shape_cast %615 : vector<64xf32> to vector<64x1xf32>
    %cst_401 = arith.constant 1.000000e-24 : f32
    %617 = vector.broadcast %cst_401 : f32 to vector<64x1xf32>
    %618 = arith.maximumf %616, %617 : vector<64x1xf32>
    %619 = math.rsqrt %618 : vector<64x1xf32>
    %620 = vector.broadcast %619 : vector<64x1xf32> to vector<64x3xf32>
    %621 = arith.mulf %613, %620 : vector<64x3xf32>
    %cst_402 = arith.constant dense<0.000000e+00> : vector<64x128xf32>
    %622 = tpu.matmul %621, %0, %cst_402 {dimension_numbers = #tpu.dot_dimension_numbers<[1], [0], [0], [1], [0, 0, 1, 1], [], []>} : vector<64x3xf32>, vector<3x128xf32>, vector<64x128xf32> -> vector<64x128xf32>
    %cst_403 = arith.constant 0.000000e+00 : f32
    %623 = vector.broadcast %cst_403 : f32 to vector<64x128xf32>
    %624 = arith.maximumf %622, %623 : vector<64x128xf32>
    %c0_404 = arith.constant 0 : index
    %c36_405 = arith.constant 36 : index
    %c0_406 = arith.constant 0 : index
    %c0_407 = arith.constant 0 : index
    %625 = vector.load %arg4[%c0_404, %c36_405, %c0_406, %c0_407] : memref<1x50x64x128xf32, #tpu.memory_space<vmem>>, vector<1x1x64x128xf32>
    %626 = vector.shape_cast %625 : vector<1x1x64x128xf32> to vector<64x128xf32>
    %627 = arith.mulf %624, %626 : vector<64x128xf32>
    %628 = arith.maximumf %611, %627 : vector<64x128xf32>
    %c0_408 = arith.constant 0 : index
    %c37 = arith.constant 37 : index
    %c0_409 = arith.constant 0 : index
    %c0_410 = arith.constant 0 : index
    %629 = vector.load %arg2[%c0_408, %c37, %c0_409, %c0_410] : memref<1x50x64x3xf32, #tpu.memory_space<vmem>>, vector<1x1x64x3xf32>
    %630 = vector.shape_cast %629 : vector<1x1x64x3xf32> to vector<64x3xf32>
    %631 = arith.mulf %630, %630 : vector<64x3xf32>
    %cst_411 = arith.constant dense<0.000000e+00> : vector<64xf32>
    %632 = vector.multi_reduction <add>, %631, %cst_411 [1] : vector<64x3xf32> to vector<64xf32>
    %633 = vector.shape_cast %632 : vector<64xf32> to vector<64x1xf32>
    %cst_412 = arith.constant 1.000000e-24 : f32
    %634 = vector.broadcast %cst_412 : f32 to vector<64x1xf32>
    %635 = arith.maximumf %633, %634 : vector<64x1xf32>
    %636 = math.rsqrt %635 : vector<64x1xf32>
    %637 = vector.broadcast %636 : vector<64x1xf32> to vector<64x3xf32>
    %638 = arith.mulf %630, %637 : vector<64x3xf32>
    %cst_413 = arith.constant dense<0.000000e+00> : vector<64x128xf32>
    %639 = tpu.matmul %638, %0, %cst_413 {dimension_numbers = #tpu.dot_dimension_numbers<[1], [0], [0], [1], [0, 0, 1, 1], [], []>} : vector<64x3xf32>, vector<3x128xf32>, vector<64x128xf32> -> vector<64x128xf32>
    %cst_414 = arith.constant 0.000000e+00 : f32
    %640 = vector.broadcast %cst_414 : f32 to vector<64x128xf32>
    %641 = arith.maximumf %639, %640 : vector<64x128xf32>
    %c0_415 = arith.constant 0 : index
    %c37_416 = arith.constant 37 : index
    %c0_417 = arith.constant 0 : index
    %c0_418 = arith.constant 0 : index
    %642 = vector.load %arg4[%c0_415, %c37_416, %c0_417, %c0_418] : memref<1x50x64x128xf32, #tpu.memory_space<vmem>>, vector<1x1x64x128xf32>
    %643 = vector.shape_cast %642 : vector<1x1x64x128xf32> to vector<64x128xf32>
    %644 = arith.mulf %641, %643 : vector<64x128xf32>
    %645 = arith.maximumf %628, %644 : vector<64x128xf32>
    %c0_419 = arith.constant 0 : index
    %c38 = arith.constant 38 : index
    %c0_420 = arith.constant 0 : index
    %c0_421 = arith.constant 0 : index
    %646 = vector.load %arg2[%c0_419, %c38, %c0_420, %c0_421] : memref<1x50x64x3xf32, #tpu.memory_space<vmem>>, vector<1x1x64x3xf32>
    %647 = vector.shape_cast %646 : vector<1x1x64x3xf32> to vector<64x3xf32>
    %648 = arith.mulf %647, %647 : vector<64x3xf32>
    %cst_422 = arith.constant dense<0.000000e+00> : vector<64xf32>
    %649 = vector.multi_reduction <add>, %648, %cst_422 [1] : vector<64x3xf32> to vector<64xf32>
    %650 = vector.shape_cast %649 : vector<64xf32> to vector<64x1xf32>
    %cst_423 = arith.constant 1.000000e-24 : f32
    %651 = vector.broadcast %cst_423 : f32 to vector<64x1xf32>
    %652 = arith.maximumf %650, %651 : vector<64x1xf32>
    %653 = math.rsqrt %652 : vector<64x1xf32>
    %654 = vector.broadcast %653 : vector<64x1xf32> to vector<64x3xf32>
    %655 = arith.mulf %647, %654 : vector<64x3xf32>
    %cst_424 = arith.constant dense<0.000000e+00> : vector<64x128xf32>
    %656 = tpu.matmul %655, %0, %cst_424 {dimension_numbers = #tpu.dot_dimension_numbers<[1], [0], [0], [1], [0, 0, 1, 1], [], []>} : vector<64x3xf32>, vector<3x128xf32>, vector<64x128xf32> -> vector<64x128xf32>
    %cst_425 = arith.constant 0.000000e+00 : f32
    %657 = vector.broadcast %cst_425 : f32 to vector<64x128xf32>
    %658 = arith.maximumf %656, %657 : vector<64x128xf32>
    %c0_426 = arith.constant 0 : index
    %c38_427 = arith.constant 38 : index
    %c0_428 = arith.constant 0 : index
    %c0_429 = arith.constant 0 : index
    %659 = vector.load %arg4[%c0_426, %c38_427, %c0_428, %c0_429] : memref<1x50x64x128xf32, #tpu.memory_space<vmem>>, vector<1x1x64x128xf32>
    %660 = vector.shape_cast %659 : vector<1x1x64x128xf32> to vector<64x128xf32>
    %661 = arith.mulf %658, %660 : vector<64x128xf32>
    %662 = arith.maximumf %645, %661 : vector<64x128xf32>
    %c0_430 = arith.constant 0 : index
    %c39 = arith.constant 39 : index
    %c0_431 = arith.constant 0 : index
    %c0_432 = arith.constant 0 : index
    %663 = vector.load %arg2[%c0_430, %c39, %c0_431, %c0_432] : memref<1x50x64x3xf32, #tpu.memory_space<vmem>>, vector<1x1x64x3xf32>
    %664 = vector.shape_cast %663 : vector<1x1x64x3xf32> to vector<64x3xf32>
    %665 = arith.mulf %664, %664 : vector<64x3xf32>
    %cst_433 = arith.constant dense<0.000000e+00> : vector<64xf32>
    %666 = vector.multi_reduction <add>, %665, %cst_433 [1] : vector<64x3xf32> to vector<64xf32>
    %667 = vector.shape_cast %666 : vector<64xf32> to vector<64x1xf32>
    %cst_434 = arith.constant 1.000000e-24 : f32
    %668 = vector.broadcast %cst_434 : f32 to vector<64x1xf32>
    %669 = arith.maximumf %667, %668 : vector<64x1xf32>
    %670 = math.rsqrt %669 : vector<64x1xf32>
    %671 = vector.broadcast %670 : vector<64x1xf32> to vector<64x3xf32>
    %672 = arith.mulf %664, %671 : vector<64x3xf32>
    %cst_435 = arith.constant dense<0.000000e+00> : vector<64x128xf32>
    %673 = tpu.matmul %672, %0, %cst_435 {dimension_numbers = #tpu.dot_dimension_numbers<[1], [0], [0], [1], [0, 0, 1, 1], [], []>} : vector<64x3xf32>, vector<3x128xf32>, vector<64x128xf32> -> vector<64x128xf32>
    %cst_436 = arith.constant 0.000000e+00 : f32
    %674 = vector.broadcast %cst_436 : f32 to vector<64x128xf32>
    %675 = arith.maximumf %673, %674 : vector<64x128xf32>
    %c0_437 = arith.constant 0 : index
    %c39_438 = arith.constant 39 : index
    %c0_439 = arith.constant 0 : index
    %c0_440 = arith.constant 0 : index
    %676 = vector.load %arg4[%c0_437, %c39_438, %c0_439, %c0_440] : memref<1x50x64x128xf32, #tpu.memory_space<vmem>>, vector<1x1x64x128xf32>
    %677 = vector.shape_cast %676 : vector<1x1x64x128xf32> to vector<64x128xf32>
    %678 = arith.mulf %675, %677 : vector<64x128xf32>
    %679 = arith.maximumf %662, %678 : vector<64x128xf32>
    %c0_441 = arith.constant 0 : index
    %c40 = arith.constant 40 : index
    %c0_442 = arith.constant 0 : index
    %c0_443 = arith.constant 0 : index
    %680 = vector.load %arg2[%c0_441, %c40, %c0_442, %c0_443] : memref<1x50x64x3xf32, #tpu.memory_space<vmem>>, vector<1x1x64x3xf32>
    %681 = vector.shape_cast %680 : vector<1x1x64x3xf32> to vector<64x3xf32>
    %682 = arith.mulf %681, %681 : vector<64x3xf32>
    %cst_444 = arith.constant dense<0.000000e+00> : vector<64xf32>
    %683 = vector.multi_reduction <add>, %682, %cst_444 [1] : vector<64x3xf32> to vector<64xf32>
    %684 = vector.shape_cast %683 : vector<64xf32> to vector<64x1xf32>
    %cst_445 = arith.constant 1.000000e-24 : f32
    %685 = vector.broadcast %cst_445 : f32 to vector<64x1xf32>
    %686 = arith.maximumf %684, %685 : vector<64x1xf32>
    %687 = math.rsqrt %686 : vector<64x1xf32>
    %688 = vector.broadcast %687 : vector<64x1xf32> to vector<64x3xf32>
    %689 = arith.mulf %681, %688 : vector<64x3xf32>
    %cst_446 = arith.constant dense<0.000000e+00> : vector<64x128xf32>
    %690 = tpu.matmul %689, %0, %cst_446 {dimension_numbers = #tpu.dot_dimension_numbers<[1], [0], [0], [1], [0, 0, 1, 1], [], []>} : vector<64x3xf32>, vector<3x128xf32>, vector<64x128xf32> -> vector<64x128xf32>
    %cst_447 = arith.constant 0.000000e+00 : f32
    %691 = vector.broadcast %cst_447 : f32 to vector<64x128xf32>
    %692 = arith.maximumf %690, %691 : vector<64x128xf32>
    %c0_448 = arith.constant 0 : index
    %c40_449 = arith.constant 40 : index
    %c0_450 = arith.constant 0 : index
    %c0_451 = arith.constant 0 : index
    %693 = vector.load %arg4[%c0_448, %c40_449, %c0_450, %c0_451] : memref<1x50x64x128xf32, #tpu.memory_space<vmem>>, vector<1x1x64x128xf32>
    %694 = vector.shape_cast %693 : vector<1x1x64x128xf32> to vector<64x128xf32>
    %695 = arith.mulf %692, %694 : vector<64x128xf32>
    %696 = arith.maximumf %679, %695 : vector<64x128xf32>
    %c0_452 = arith.constant 0 : index
    %c41 = arith.constant 41 : index
    %c0_453 = arith.constant 0 : index
    %c0_454 = arith.constant 0 : index
    %697 = vector.load %arg2[%c0_452, %c41, %c0_453, %c0_454] : memref<1x50x64x3xf32, #tpu.memory_space<vmem>>, vector<1x1x64x3xf32>
    %698 = vector.shape_cast %697 : vector<1x1x64x3xf32> to vector<64x3xf32>
    %699 = arith.mulf %698, %698 : vector<64x3xf32>
    %cst_455 = arith.constant dense<0.000000e+00> : vector<64xf32>
    %700 = vector.multi_reduction <add>, %699, %cst_455 [1] : vector<64x3xf32> to vector<64xf32>
    %701 = vector.shape_cast %700 : vector<64xf32> to vector<64x1xf32>
    %cst_456 = arith.constant 1.000000e-24 : f32
    %702 = vector.broadcast %cst_456 : f32 to vector<64x1xf32>
    %703 = arith.maximumf %701, %702 : vector<64x1xf32>
    %704 = math.rsqrt %703 : vector<64x1xf32>
    %705 = vector.broadcast %704 : vector<64x1xf32> to vector<64x3xf32>
    %706 = arith.mulf %698, %705 : vector<64x3xf32>
    %cst_457 = arith.constant dense<0.000000e+00> : vector<64x128xf32>
    %707 = tpu.matmul %706, %0, %cst_457 {dimension_numbers = #tpu.dot_dimension_numbers<[1], [0], [0], [1], [0, 0, 1, 1], [], []>} : vector<64x3xf32>, vector<3x128xf32>, vector<64x128xf32> -> vector<64x128xf32>
    %cst_458 = arith.constant 0.000000e+00 : f32
    %708 = vector.broadcast %cst_458 : f32 to vector<64x128xf32>
    %709 = arith.maximumf %707, %708 : vector<64x128xf32>
    %c0_459 = arith.constant 0 : index
    %c41_460 = arith.constant 41 : index
    %c0_461 = arith.constant 0 : index
    %c0_462 = arith.constant 0 : index
    %710 = vector.load %arg4[%c0_459, %c41_460, %c0_461, %c0_462] : memref<1x50x64x128xf32, #tpu.memory_space<vmem>>, vector<1x1x64x128xf32>
    %711 = vector.shape_cast %710 : vector<1x1x64x128xf32> to vector<64x128xf32>
    %712 = arith.mulf %709, %711 : vector<64x128xf32>
    %713 = arith.maximumf %696, %712 : vector<64x128xf32>
    %c0_463 = arith.constant 0 : index
    %c42 = arith.constant 42 : index
    %c0_464 = arith.constant 0 : index
    %c0_465 = arith.constant 0 : index
    %714 = vector.load %arg2[%c0_463, %c42, %c0_464, %c0_465] : memref<1x50x64x3xf32, #tpu.memory_space<vmem>>, vector<1x1x64x3xf32>
    %715 = vector.shape_cast %714 : vector<1x1x64x3xf32> to vector<64x3xf32>
    %716 = arith.mulf %715, %715 : vector<64x3xf32>
    %cst_466 = arith.constant dense<0.000000e+00> : vector<64xf32>
    %717 = vector.multi_reduction <add>, %716, %cst_466 [1] : vector<64x3xf32> to vector<64xf32>
    %718 = vector.shape_cast %717 : vector<64xf32> to vector<64x1xf32>
    %cst_467 = arith.constant 1.000000e-24 : f32
    %719 = vector.broadcast %cst_467 : f32 to vector<64x1xf32>
    %720 = arith.maximumf %718, %719 : vector<64x1xf32>
    %721 = math.rsqrt %720 : vector<64x1xf32>
    %722 = vector.broadcast %721 : vector<64x1xf32> to vector<64x3xf32>
    %723 = arith.mulf %715, %722 : vector<64x3xf32>
    %cst_468 = arith.constant dense<0.000000e+00> : vector<64x128xf32>
    %724 = tpu.matmul %723, %0, %cst_468 {dimension_numbers = #tpu.dot_dimension_numbers<[1], [0], [0], [1], [0, 0, 1, 1], [], []>} : vector<64x3xf32>, vector<3x128xf32>, vector<64x128xf32> -> vector<64x128xf32>
    %cst_469 = arith.constant 0.000000e+00 : f32
    %725 = vector.broadcast %cst_469 : f32 to vector<64x128xf32>
    %726 = arith.maximumf %724, %725 : vector<64x128xf32>
    %c0_470 = arith.constant 0 : index
    %c42_471 = arith.constant 42 : index
    %c0_472 = arith.constant 0 : index
    %c0_473 = arith.constant 0 : index
    %727 = vector.load %arg4[%c0_470, %c42_471, %c0_472, %c0_473] : memref<1x50x64x128xf32, #tpu.memory_space<vmem>>, vector<1x1x64x128xf32>
    %728 = vector.shape_cast %727 : vector<1x1x64x128xf32> to vector<64x128xf32>
    %729 = arith.mulf %726, %728 : vector<64x128xf32>
    %730 = arith.maximumf %713, %729 : vector<64x128xf32>
    %c0_474 = arith.constant 0 : index
    %c43 = arith.constant 43 : index
    %c0_475 = arith.constant 0 : index
    %c0_476 = arith.constant 0 : index
    %731 = vector.load %arg2[%c0_474, %c43, %c0_475, %c0_476] : memref<1x50x64x3xf32, #tpu.memory_space<vmem>>, vector<1x1x64x3xf32>
    %732 = vector.shape_cast %731 : vector<1x1x64x3xf32> to vector<64x3xf32>
    %733 = arith.mulf %732, %732 : vector<64x3xf32>
    %cst_477 = arith.constant dense<0.000000e+00> : vector<64xf32>
    %734 = vector.multi_reduction <add>, %733, %cst_477 [1] : vector<64x3xf32> to vector<64xf32>
    %735 = vector.shape_cast %734 : vector<64xf32> to vector<64x1xf32>
    %cst_478 = arith.constant 1.000000e-24 : f32
    %736 = vector.broadcast %cst_478 : f32 to vector<64x1xf32>
    %737 = arith.maximumf %735, %736 : vector<64x1xf32>
    %738 = math.rsqrt %737 : vector<64x1xf32>
    %739 = vector.broadcast %738 : vector<64x1xf32> to vector<64x3xf32>
    %740 = arith.mulf %732, %739 : vector<64x3xf32>
    %cst_479 = arith.constant dense<0.000000e+00> : vector<64x128xf32>
    %741 = tpu.matmul %740, %0, %cst_479 {dimension_numbers = #tpu.dot_dimension_numbers<[1], [0], [0], [1], [0, 0, 1, 1], [], []>} : vector<64x3xf32>, vector<3x128xf32>, vector<64x128xf32> -> vector<64x128xf32>
    %cst_480 = arith.constant 0.000000e+00 : f32
    %742 = vector.broadcast %cst_480 : f32 to vector<64x128xf32>
    %743 = arith.maximumf %741, %742 : vector<64x128xf32>
    %c0_481 = arith.constant 0 : index
    %c43_482 = arith.constant 43 : index
    %c0_483 = arith.constant 0 : index
    %c0_484 = arith.constant 0 : index
    %744 = vector.load %arg4[%c0_481, %c43_482, %c0_483, %c0_484] : memref<1x50x64x128xf32, #tpu.memory_space<vmem>>, vector<1x1x64x128xf32>
    %745 = vector.shape_cast %744 : vector<1x1x64x128xf32> to vector<64x128xf32>
    %746 = arith.mulf %743, %745 : vector<64x128xf32>
    %747 = arith.maximumf %730, %746 : vector<64x128xf32>
    %c0_485 = arith.constant 0 : index
    %c44 = arith.constant 44 : index
    %c0_486 = arith.constant 0 : index
    %c0_487 = arith.constant 0 : index
    %748 = vector.load %arg2[%c0_485, %c44, %c0_486, %c0_487] : memref<1x50x64x3xf32, #tpu.memory_space<vmem>>, vector<1x1x64x3xf32>
    %749 = vector.shape_cast %748 : vector<1x1x64x3xf32> to vector<64x3xf32>
    %750 = arith.mulf %749, %749 : vector<64x3xf32>
    %cst_488 = arith.constant dense<0.000000e+00> : vector<64xf32>
    %751 = vector.multi_reduction <add>, %750, %cst_488 [1] : vector<64x3xf32> to vector<64xf32>
    %752 = vector.shape_cast %751 : vector<64xf32> to vector<64x1xf32>
    %cst_489 = arith.constant 1.000000e-24 : f32
    %753 = vector.broadcast %cst_489 : f32 to vector<64x1xf32>
    %754 = arith.maximumf %752, %753 : vector<64x1xf32>
    %755 = math.rsqrt %754 : vector<64x1xf32>
    %756 = vector.broadcast %755 : vector<64x1xf32> to vector<64x3xf32>
    %757 = arith.mulf %749, %756 : vector<64x3xf32>
    %cst_490 = arith.constant dense<0.000000e+00> : vector<64x128xf32>
    %758 = tpu.matmul %757, %0, %cst_490 {dimension_numbers = #tpu.dot_dimension_numbers<[1], [0], [0], [1], [0, 0, 1, 1], [], []>} : vector<64x3xf32>, vector<3x128xf32>, vector<64x128xf32> -> vector<64x128xf32>
    %cst_491 = arith.constant 0.000000e+00 : f32
    %759 = vector.broadcast %cst_491 : f32 to vector<64x128xf32>
    %760 = arith.maximumf %758, %759 : vector<64x128xf32>
    %c0_492 = arith.constant 0 : index
    %c44_493 = arith.constant 44 : index
    %c0_494 = arith.constant 0 : index
    %c0_495 = arith.constant 0 : index
    %761 = vector.load %arg4[%c0_492, %c44_493, %c0_494, %c0_495] : memref<1x50x64x128xf32, #tpu.memory_space<vmem>>, vector<1x1x64x128xf32>
    %762 = vector.shape_cast %761 : vector<1x1x64x128xf32> to vector<64x128xf32>
    %763 = arith.mulf %760, %762 : vector<64x128xf32>
    %764 = arith.maximumf %747, %763 : vector<64x128xf32>
    %c0_496 = arith.constant 0 : index
    %c45 = arith.constant 45 : index
    %c0_497 = arith.constant 0 : index
    %c0_498 = arith.constant 0 : index
    %765 = vector.load %arg2[%c0_496, %c45, %c0_497, %c0_498] : memref<1x50x64x3xf32, #tpu.memory_space<vmem>>, vector<1x1x64x3xf32>
    %766 = vector.shape_cast %765 : vector<1x1x64x3xf32> to vector<64x3xf32>
    %767 = arith.mulf %766, %766 : vector<64x3xf32>
    %cst_499 = arith.constant dense<0.000000e+00> : vector<64xf32>
    %768 = vector.multi_reduction <add>, %767, %cst_499 [1] : vector<64x3xf32> to vector<64xf32>
    %769 = vector.shape_cast %768 : vector<64xf32> to vector<64x1xf32>
    %cst_500 = arith.constant 1.000000e-24 : f32
    %770 = vector.broadcast %cst_500 : f32 to vector<64x1xf32>
    %771 = arith.maximumf %769, %770 : vector<64x1xf32>
    %772 = math.rsqrt %771 : vector<64x1xf32>
    %773 = vector.broadcast %772 : vector<64x1xf32> to vector<64x3xf32>
    %774 = arith.mulf %766, %773 : vector<64x3xf32>
    %cst_501 = arith.constant dense<0.000000e+00> : vector<64x128xf32>
    %775 = tpu.matmul %774, %0, %cst_501 {dimension_numbers = #tpu.dot_dimension_numbers<[1], [0], [0], [1], [0, 0, 1, 1], [], []>} : vector<64x3xf32>, vector<3x128xf32>, vector<64x128xf32> -> vector<64x128xf32>
    %cst_502 = arith.constant 0.000000e+00 : f32
    %776 = vector.broadcast %cst_502 : f32 to vector<64x128xf32>
    %777 = arith.maximumf %775, %776 : vector<64x128xf32>
    %c0_503 = arith.constant 0 : index
    %c45_504 = arith.constant 45 : index
    %c0_505 = arith.constant 0 : index
    %c0_506 = arith.constant 0 : index
    %778 = vector.load %arg4[%c0_503, %c45_504, %c0_505, %c0_506] : memref<1x50x64x128xf32, #tpu.memory_space<vmem>>, vector<1x1x64x128xf32>
    %779 = vector.shape_cast %778 : vector<1x1x64x128xf32> to vector<64x128xf32>
    %780 = arith.mulf %777, %779 : vector<64x128xf32>
    %781 = arith.maximumf %764, %780 : vector<64x128xf32>
    %c0_507 = arith.constant 0 : index
    %c46 = arith.constant 46 : index
    %c0_508 = arith.constant 0 : index
    %c0_509 = arith.constant 0 : index
    %782 = vector.load %arg2[%c0_507, %c46, %c0_508, %c0_509] : memref<1x50x64x3xf32, #tpu.memory_space<vmem>>, vector<1x1x64x3xf32>
    %783 = vector.shape_cast %782 : vector<1x1x64x3xf32> to vector<64x3xf32>
    %784 = arith.mulf %783, %783 : vector<64x3xf32>
    %cst_510 = arith.constant dense<0.000000e+00> : vector<64xf32>
    %785 = vector.multi_reduction <add>, %784, %cst_510 [1] : vector<64x3xf32> to vector<64xf32>
    %786 = vector.shape_cast %785 : vector<64xf32> to vector<64x1xf32>
    %cst_511 = arith.constant 1.000000e-24 : f32
    %787 = vector.broadcast %cst_511 : f32 to vector<64x1xf32>
    %788 = arith.maximumf %786, %787 : vector<64x1xf32>
    %789 = math.rsqrt %788 : vector<64x1xf32>
    %790 = vector.broadcast %789 : vector<64x1xf32> to vector<64x3xf32>
    %791 = arith.mulf %783, %790 : vector<64x3xf32>
    %cst_512 = arith.constant dense<0.000000e+00> : vector<64x128xf32>
    %792 = tpu.matmul %791, %0, %cst_512 {dimension_numbers = #tpu.dot_dimension_numbers<[1], [0], [0], [1], [0, 0, 1, 1], [], []>} : vector<64x3xf32>, vector<3x128xf32>, vector<64x128xf32> -> vector<64x128xf32>
    %cst_513 = arith.constant 0.000000e+00 : f32
    %793 = vector.broadcast %cst_513 : f32 to vector<64x128xf32>
    %794 = arith.maximumf %792, %793 : vector<64x128xf32>
    %c0_514 = arith.constant 0 : index
    %c46_515 = arith.constant 46 : index
    %c0_516 = arith.constant 0 : index
    %c0_517 = arith.constant 0 : index
    %795 = vector.load %arg4[%c0_514, %c46_515, %c0_516, %c0_517] : memref<1x50x64x128xf32, #tpu.memory_space<vmem>>, vector<1x1x64x128xf32>
    %796 = vector.shape_cast %795 : vector<1x1x64x128xf32> to vector<64x128xf32>
    %797 = arith.mulf %794, %796 : vector<64x128xf32>
    %798 = arith.maximumf %781, %797 : vector<64x128xf32>
    %c0_518 = arith.constant 0 : index
    %c47 = arith.constant 47 : index
    %c0_519 = arith.constant 0 : index
    %c0_520 = arith.constant 0 : index
    %799 = vector.load %arg2[%c0_518, %c47, %c0_519, %c0_520] : memref<1x50x64x3xf32, #tpu.memory_space<vmem>>, vector<1x1x64x3xf32>
    %800 = vector.shape_cast %799 : vector<1x1x64x3xf32> to vector<64x3xf32>
    %801 = arith.mulf %800, %800 : vector<64x3xf32>
    %cst_521 = arith.constant dense<0.000000e+00> : vector<64xf32>
    %802 = vector.multi_reduction <add>, %801, %cst_521 [1] : vector<64x3xf32> to vector<64xf32>
    %803 = vector.shape_cast %802 : vector<64xf32> to vector<64x1xf32>
    %cst_522 = arith.constant 1.000000e-24 : f32
    %804 = vector.broadcast %cst_522 : f32 to vector<64x1xf32>
    %805 = arith.maximumf %803, %804 : vector<64x1xf32>
    %806 = math.rsqrt %805 : vector<64x1xf32>
    %807 = vector.broadcast %806 : vector<64x1xf32> to vector<64x3xf32>
    %808 = arith.mulf %800, %807 : vector<64x3xf32>
    %cst_523 = arith.constant dense<0.000000e+00> : vector<64x128xf32>
    %809 = tpu.matmul %808, %0, %cst_523 {dimension_numbers = #tpu.dot_dimension_numbers<[1], [0], [0], [1], [0, 0, 1, 1], [], []>} : vector<64x3xf32>, vector<3x128xf32>, vector<64x128xf32> -> vector<64x128xf32>
    %cst_524 = arith.constant 0.000000e+00 : f32
    %810 = vector.broadcast %cst_524 : f32 to vector<64x128xf32>
    %811 = arith.maximumf %809, %810 : vector<64x128xf32>
    %c0_525 = arith.constant 0 : index
    %c47_526 = arith.constant 47 : index
    %c0_527 = arith.constant 0 : index
    %c0_528 = arith.constant 0 : index
    %812 = vector.load %arg4[%c0_525, %c47_526, %c0_527, %c0_528] : memref<1x50x64x128xf32, #tpu.memory_space<vmem>>, vector<1x1x64x128xf32>
    %813 = vector.shape_cast %812 : vector<1x1x64x128xf32> to vector<64x128xf32>
    %814 = arith.mulf %811, %813 : vector<64x128xf32>
    %815 = arith.maximumf %798, %814 : vector<64x128xf32>
    %c0_529 = arith.constant 0 : index
    %c48 = arith.constant 48 : index
    %c0_530 = arith.constant 0 : index
    %c0_531 = arith.constant 0 : index
    %816 = vector.load %arg2[%c0_529, %c48, %c0_530, %c0_531] : memref<1x50x64x3xf32, #tpu.memory_space<vmem>>, vector<1x1x64x3xf32>
    %817 = vector.shape_cast %816 : vector<1x1x64x3xf32> to vector<64x3xf32>
    %818 = arith.mulf %817, %817 : vector<64x3xf32>
    %cst_532 = arith.constant dense<0.000000e+00> : vector<64xf32>
    %819 = vector.multi_reduction <add>, %818, %cst_532 [1] : vector<64x3xf32> to vector<64xf32>
    %820 = vector.shape_cast %819 : vector<64xf32> to vector<64x1xf32>
    %cst_533 = arith.constant 1.000000e-24 : f32
    %821 = vector.broadcast %cst_533 : f32 to vector<64x1xf32>
    %822 = arith.maximumf %820, %821 : vector<64x1xf32>
    %823 = math.rsqrt %822 : vector<64x1xf32>
    %824 = vector.broadcast %823 : vector<64x1xf32> to vector<64x3xf32>
    %825 = arith.mulf %817, %824 : vector<64x3xf32>
    %cst_534 = arith.constant dense<0.000000e+00> : vector<64x128xf32>
    %826 = tpu.matmul %825, %0, %cst_534 {dimension_numbers = #tpu.dot_dimension_numbers<[1], [0], [0], [1], [0, 0, 1, 1], [], []>} : vector<64x3xf32>, vector<3x128xf32>, vector<64x128xf32> -> vector<64x128xf32>
    %cst_535 = arith.constant 0.000000e+00 : f32
    %827 = vector.broadcast %cst_535 : f32 to vector<64x128xf32>
    %828 = arith.maximumf %826, %827 : vector<64x128xf32>
    %c0_536 = arith.constant 0 : index
    %c48_537 = arith.constant 48 : index
    %c0_538 = arith.constant 0 : index
    %c0_539 = arith.constant 0 : index
    %829 = vector.load %arg4[%c0_536, %c48_537, %c0_538, %c0_539] : memref<1x50x64x128xf32, #tpu.memory_space<vmem>>, vector<1x1x64x128xf32>
    %830 = vector.shape_cast %829 : vector<1x1x64x128xf32> to vector<64x128xf32>
    %831 = arith.mulf %828, %830 : vector<64x128xf32>
    %832 = arith.maximumf %815, %831 : vector<64x128xf32>
    %c0_540 = arith.constant 0 : index
    %c49 = arith.constant 49 : index
    %c0_541 = arith.constant 0 : index
    %c0_542 = arith.constant 0 : index
    %833 = vector.load %arg2[%c0_540, %c49, %c0_541, %c0_542] : memref<1x50x64x3xf32, #tpu.memory_space<vmem>>, vector<1x1x64x3xf32>
    %834 = vector.shape_cast %833 : vector<1x1x64x3xf32> to vector<64x3xf32>
    %835 = arith.mulf %834, %834 : vector<64x3xf32>
    %cst_543 = arith.constant dense<0.000000e+00> : vector<64xf32>
    %836 = vector.multi_reduction <add>, %835, %cst_543 [1] : vector<64x3xf32> to vector<64xf32>
    %837 = vector.shape_cast %836 : vector<64xf32> to vector<64x1xf32>
    %cst_544 = arith.constant 1.000000e-24 : f32
    %838 = vector.broadcast %cst_544 : f32 to vector<64x1xf32>
    %839 = arith.maximumf %837, %838 : vector<64x1xf32>
    %840 = math.rsqrt %839 : vector<64x1xf32>
    %841 = vector.broadcast %840 : vector<64x1xf32> to vector<64x3xf32>
    %842 = arith.mulf %834, %841 : vector<64x3xf32>
    %cst_545 = arith.constant dense<0.000000e+00> : vector<64x128xf32>
    %843 = tpu.matmul %842, %0, %cst_545 {dimension_numbers = #tpu.dot_dimension_numbers<[1], [0], [0], [1], [0, 0, 1, 1], [], []>} : vector<64x3xf32>, vector<3x128xf32>, vector<64x128xf32> -> vector<64x128xf32>
    %cst_546 = arith.constant 0.000000e+00 : f32
    %844 = vector.broadcast %cst_546 : f32 to vector<64x128xf32>
    %845 = arith.maximumf %843, %844 : vector<64x128xf32>
    %c0_547 = arith.constant 0 : index
    %c49_548 = arith.constant 49 : index
    %c0_549 = arith.constant 0 : index
    %c0_550 = arith.constant 0 : index
    %846 = vector.load %arg4[%c0_547, %c49_548, %c0_549, %c0_550] : memref<1x50x64x128xf32, #tpu.memory_space<vmem>>, vector<1x1x64x128xf32>
    %847 = vector.shape_cast %846 : vector<1x1x64x128xf32> to vector<64x128xf32>
    %848 = arith.mulf %845, %847 : vector<64x128xf32>
    %849 = arith.maximumf %832, %848 : vector<64x128xf32>
    %c0_551 = arith.constant 0 : index
    %c0_552 = arith.constant 0 : index
    %c0_553 = arith.constant 0 : index
    %850 = vector.load %arg5[%c0_551, %c0_552, %c0_553] : memref<1x64x32xf32, #tpu.memory_space<vmem>>, vector<1x64x32xf32>
    %851 = vector.shape_cast %850 : vector<1x64x32xf32> to vector<64x32xf32>
    %c0_554 = arith.constant 0 : index
    %c0_555 = arith.constant 0 : index
    %852 = vector.load %arg6[%c0_554, %c0_555] : memref<128x32xf32, #tpu.memory_space<vmem>>, vector<128x32xf32>
    %cst_556 = arith.constant dense<0.000000e+00> : vector<64x32xf32>
    %853 = tpu.matmul %849, %852, %cst_556 {dimension_numbers = #tpu.dot_dimension_numbers<[1], [0], [0], [1], [0, 0, 1, 1], [], []>} : vector<64x128xf32>, vector<128x32xf32>, vector<64x32xf32> -> vector<64x32xf32>
    %854 = arith.addf %851, %853 : vector<64x32xf32>
    %c0_557 = arith.constant 0 : index
    %c0_558 = arith.constant 0 : index
    %c0_559 = arith.constant 0 : index
    %855 = vector.load %arg7[%c0_557, %c0_558, %c0_559] : memref<1x64x32xf32, #tpu.memory_space<vmem>>, vector<1x64x32xf32>
    %856 = vector.shape_cast %855 : vector<1x64x32xf32> to vector<64x32xf32>
    %857 = vector.shape_cast %854 : vector<64x32xf32> to vector<1x64x32xf32>
    tpu.vector_store %arg7[%c0_557, %c0_558, %c0_559], %857 {strides = array<i32>} : memref<1x64x32xf32, #tpu.memory_space<vmem>>, vector<1x64x32xf32>,
    return
  }
  func.func @transform_0(%arg0: i32, %arg1: i32) -> (i32, i32, i32, i32) {
    %c0_i32 = arith.constant 0 : i32
    %c0_i32_0 = arith.constant 0 : i32
    %c0_i32_1 = arith.constant 0 : i32
    return %arg0, %c0_i32, %arg1, %c0_i32_0 : i32, i32, i32, i32
  }
  func.func @transform_1(%arg0: i32, %arg1: i32) -> (i32, i32) {
    %c0_i32 = arith.constant 0 : i32
    %c0_i32_0 = arith.constant 0 : i32
    %c0_i32_1 = arith.constant 0 : i32
    return %c0_i32, %c0_i32_0 : i32, i32
  }
  func.func @transform_2(%arg0: i32, %arg1: i32) -> (i32, i32, i32, i32) {
    %c0_i32 = arith.constant 0 : i32
    %c0_i32_0 = arith.constant 0 : i32
    %c0_i32_1 = arith.constant 0 : i32
    return %arg0, %c0_i32, %arg1, %c0_i32_0 : i32, i32, i32, i32
  }
  func.func @transform_3(%arg0: i32, %arg1: i32) -> (i32, i32, i32) {
    %c0_i32 = arith.constant 0 : i32
    %c0_i32_0 = arith.constant 0 : i32
    return %arg0, %arg1, %c0_i32 : i32, i32, i32
  }
  func.func @transform_4(%arg0: i32, %arg1: i32) -> (i32, i32) {
    %c0_i32 = arith.constant 0 : i32
    %c0_i32_0 = arith.constant 0 : i32
    %c0_i32_1 = arith.constant 0 : i32
    return %c0_i32, %c0_i32_0 : i32, i32
  }
  func.func @transform_5(%arg0: i32, %arg1: i32) -> (i32, i32, i32) {
    %c0_i32 = arith.constant 0 : i32
    %c0_i32_0 = arith.constant 0 : i32
    return %arg0, %arg1, %c0_i32 : i32, i32, i32
  }
}

module attributes {stable_mosaic.version = 11 : i64} {
  func.func @_bn_relu_concat_kernel(%arg0: i32, %arg1: i32, %arg2: memref<1x64x32xf32, #tpu.memory_space<vmem>>, %arg3: memref<1x32xf32, #tpu.memory_space<vmem>>, %arg4: memref<1x32xf32, #tpu.memory_space<vmem>>, %arg5: memref<1x64x32xf32, #tpu.memory_space<vmem>>, %arg6: memref<1x32xf32, #tpu.memory_space<vmem>>, %arg7: memref<1x32xf32, #tpu.memory_space<vmem>>, %arg8: memref<1x64x64xf32, #tpu.memory_space<vmem>>) attributes {dimension_semantics = [#tpu.dimension_semantics<parallel>, #tpu.dimension_semantics<parallel>], iteration_bounds = array<i64: 2, 1>, scalar_prefetch = 0 : i64, scratch_operands = 0 : i64, tpu.core_type = #tpu.core_type<tc>, window_params = [{transform_indices = @transform_0, window_bounds = array<i64: 1, 64, 32>}, {pipeline_mode = #tpu.pipeline_mode<synchronous>, transform_indices = @transform_1, window_bounds = array<i64: 1, 32>}, {pipeline_mode = #tpu.pipeline_mode<synchronous>, transform_indices = @transform_2, window_bounds = array<i64: 1, 32>}, {transform_indices = @transform_3, window_bounds = array<i64: 1, 64, 32>}, {pipeline_mode = #tpu.pipeline_mode<synchronous>, transform_indices = @transform_4, window_bounds = array<i64: 1, 32>}, {pipeline_mode = #tpu.pipeline_mode<synchronous>, transform_indices = @transform_5, window_bounds = array<i64: 1, 32>}, {transform_indices = @transform_6, window_bounds = array<i64: 1, 64, 64>}]} {
    %c0 = arith.constant 0 : index
    %c0_0 = arith.constant 0 : index
    %c0_1 = arith.constant 0 : index
    %0 = vector.load %arg2[%c0, %c0_0, %c0_1] : memref<1x64x32xf32, #tpu.memory_space<vmem>>, vector<1x64x32xf32>
    %1 = vector.shape_cast %0 : vector<1x64x32xf32> to vector<64x32xf32>
    %c0_2 = arith.constant 0 : index
    %c0_3 = arith.constant 0 : index
    %2 = vector.load %arg3[%c0_2, %c0_3] : memref<1x32xf32, #tpu.memory_space<vmem>>, vector<1x32xf32>
    %3 = vector.broadcast %2 : vector<1x32xf32> to vector<64x32xf32>
    %4 = arith.mulf %1, %3 : vector<64x32xf32>
    %c0_4 = arith.constant 0 : index
    %c0_5 = arith.constant 0 : index
    %5 = vector.load %arg4[%c0_4, %c0_5] : memref<1x32xf32, #tpu.memory_space<vmem>>, vector<1x32xf32>
    %6 = vector.broadcast %5 : vector<1x32xf32> to vector<64x32xf32>
    %7 = arith.addf %4, %6 : vector<64x32xf32>
    %cst = arith.constant 0.000000e+00 : f32
    %8 = vector.broadcast %cst : f32 to vector<64x32xf32>
    %9 = arith.maximumf %7, %8 : vector<64x32xf32>
    %c0_6 = arith.constant 0 : index
    %c0_7 = arith.constant 0 : index
    %c0_8 = arith.constant 0 : index
    %10 = vector.load %arg8[%c0_6, %c0_7, %c0_8] : memref<1x64x64xf32, #tpu.memory_space<vmem>>, vector<1x64x32xf32>
    %11 = vector.shape_cast %10 : vector<1x64x32xf32> to vector<64x32xf32>
    %12 = vector.shape_cast %9 : vector<64x32xf32> to vector<1x64x32xf32>
    tpu.vector_store %arg8[%c0_6, %c0_7, %c0_8], %12 {strides = array<i32>} : memref<1x64x64xf32, #tpu.memory_space<vmem>>, vector<1x64x32xf32>,
    %c0_9 = arith.constant 0 : index
    %c0_10 = arith.constant 0 : index
    %c0_11 = arith.constant 0 : index
    %13 = vector.load %arg5[%c0_9, %c0_10, %c0_11] : memref<1x64x32xf32, #tpu.memory_space<vmem>>, vector<1x64x32xf32>
    %14 = vector.shape_cast %13 : vector<1x64x32xf32> to vector<64x32xf32>
    %c0_12 = arith.constant 0 : index
    %c0_13 = arith.constant 0 : index
    %15 = vector.load %arg6[%c0_12, %c0_13] : memref<1x32xf32, #tpu.memory_space<vmem>>, vector<1x32xf32>
    %16 = vector.broadcast %15 : vector<1x32xf32> to vector<64x32xf32>
    %17 = arith.mulf %14, %16 : vector<64x32xf32>
    %c0_14 = arith.constant 0 : index
    %c0_15 = arith.constant 0 : index
    %18 = vector.load %arg7[%c0_14, %c0_15] : memref<1x32xf32, #tpu.memory_space<vmem>>, vector<1x32xf32>
    %19 = vector.broadcast %18 : vector<1x32xf32> to vector<64x32xf32>
    %20 = arith.addf %17, %19 : vector<64x32xf32>
    %cst_16 = arith.constant 0.000000e+00 : f32
    %21 = vector.broadcast %cst_16 : f32 to vector<64x32xf32>
    %22 = arith.maximumf %20, %21 : vector<64x32xf32>
    %c0_17 = arith.constant 0 : index
    %c0_18 = arith.constant 0 : index
    %c32 = arith.constant 32 : index
    %23 = vector.load %arg8[%c0_17, %c0_18, %c32] : memref<1x64x64xf32, #tpu.memory_space<vmem>>, vector<1x64x32xf32>
    %24 = vector.shape_cast %23 : vector<1x64x32xf32> to vector<64x32xf32>
    %25 = vector.shape_cast %22 : vector<64x32xf32> to vector<1x64x32xf32>
    tpu.vector_store %arg8[%c0_17, %c0_18, %c32], %25 {strides = array<i32>} : memref<1x64x64xf32, #tpu.memory_space<vmem>>, vector<1x64x32xf32>,
    return
  }
  func.func @transform_0(%arg0: i32, %arg1: i32) -> (i32, i32, i32) {
    %c0_i32 = arith.constant 0 : i32
    %c0_i32_0 = arith.constant 0 : i32
    return %arg0, %arg1, %c0_i32 : i32, i32, i32
  }
  func.func @transform_1(%arg0: i32, %arg1: i32) -> (i32, i32) {
    %c0_i32 = arith.constant 0 : i32
    %c0_i32_0 = arith.constant 0 : i32
    %c0_i32_1 = arith.constant 0 : i32
    return %c0_i32, %c0_i32_0 : i32, i32
  }
  func.func @transform_2(%arg0: i32, %arg1: i32) -> (i32, i32) {
    %c0_i32 = arith.constant 0 : i32
    %c0_i32_0 = arith.constant 0 : i32
    %c0_i32_1 = arith.constant 0 : i32
    return %c0_i32, %c0_i32_0 : i32, i32
  }
  func.func @transform_3(%arg0: i32, %arg1: i32) -> (i32, i32, i32) {
    %c0_i32 = arith.constant 0 : i32
    %c0_i32_0 = arith.constant 0 : i32
    return %arg0, %arg1, %c0_i32 : i32, i32, i32
  }
  func.func @transform_4(%arg0: i32, %arg1: i32) -> (i32, i32) {
    %c0_i32 = arith.constant 0 : i32
    %c0_i32_0 = arith.constant 0 : i32
    %c0_i32_1 = arith.constant 0 : i32
    return %c0_i32, %c0_i32_0 : i32, i32
  }
  func.func @transform_5(%arg0: i32, %arg1: i32) -> (i32, i32) {
    %c0_i32 = arith.constant 0 : i32
    %c0_i32_0 = arith.constant 0 : i32
    %c0_i32_1 = arith.constant 0 : i32
    return %c0_i32, %c0_i32_0 : i32, i32
  }
  func.func @transform_6(%arg0: i32, %arg1: i32) -> (i32, i32, i32) {
    %c0_i32 = arith.constant 0 : i32
    %c0_i32_0 = arith.constant 0 : i32
    return %arg0, %arg1, %c0_i32 : i32, i32, i32
  }
}

</mosaic_0001>

<llo_original>
// kernel: neg.2
$region0: #{neg.2}
  #allocation0 [shape = 's32[1]{0}', space=sflag, size = 0x4, scoped, tag = 'scoped memory for neg.2']
  %s0 = inlined_call_operand.vmem [shape: f32[2,64,64], index: 0, kind: input, shape index: {}]
  %s1 = inlined_call_operand.vmem [shape: f32[2,64,64], index: 1, kind: output, shape index: {}]
  %v2 = vld [vmem:[%s0] sm:$0xff]
  %3 = xla_tuple %v2
  %4 = xla_tuple %3
  %v5 = vxor.u32 %v2, 2147483648
  %6 = xla_tuple %v5
  %7 = vst [vmem:[%s1] sm:$0xff] %v5
  %s8 = scalar_lea.vmem %s0, 64
  %v9 = vld [vmem:[%s8] sm:$0xff]
  %10 = xla_tuple %v9
  %11 = xla_tuple %10
  %v12 = vxor.u32 %v9, 2147483648
  %13 = xla_tuple %v12
  %s14 = scalar_lea.vmem %s1, 64
  %15 = vst [vmem:[%s14] sm:$0xff] %v12
  %s16 = scalar_lea.vmem %s0, 8
  %v17 = vld [vmem:[%s16] sm:$0xff]
  %18 = xla_tuple %v17
  %19 = xla_tuple %18
  %v20 = vxor.u32 %v17, 2147483648
  %21 = xla_tuple %v20
  %s22 = scalar_lea.vmem %s1, 8
  %23 = vst [vmem:[%s22] sm:$0xff] %v20
  %s24 = scalar_lea.vmem %s0, 72
  %v25 = vld [vmem:[%s24] sm:$0xff]
  %26 = xla_tuple %v25
  %27 = xla_tuple %26
  %v28 = vxor.u32 %v25, 2147483648
  %29 = xla_tuple %v28
  %s30 = scalar_lea.vmem %s1, 72
  %31 = vst [vmem:[%s30] sm:$0xff] %v28
  %s32 = scalar_lea.vmem %s0, 16
  %v33 = vld [vmem:[%s32] sm:$0xff]
  %34 = xla_tuple %v33
  %35 = xla_tuple %34
  %v36 = vxor.u32 %v33, 2147483648
  %37 = xla_tuple %v36
  %s38 = scalar_lea.vmem %s1, 16
  %39 = vst [vmem:[%s38] sm:$0xff] %v36
  %s40 = scalar_lea.vmem %s0, 80
  %v41 = vld [vmem:[%s40] sm:$0xff]
  %42 = xla_tuple %v41
  %43 = xla_tuple %42
  %v44 = vxor.u32 %v41, 2147483648
  %45 = xla_tuple %v44
  %s46 = scalar_lea.vmem %s1, 80
  %47 = vst [vmem:[%s46] sm:$0xff] %v44
  %s48 = scalar_lea.vmem %s0, 24
  %v49 = vld [vmem:[%s48] sm:$0xff]
  %50 = xla_tuple %v49
  %51 = xla_tuple %50
  %v52 = vxor.u32 %v49, 2147483648
  %53 = xla_tuple %v52
  %s54 = scalar_lea.vmem %s1, 24
  %55 = vst [vmem:[%s54] sm:$0xff] %v52
  %s56 = scalar_lea.vmem %s0, 88
  %v57 = vld [vmem:[%s56] sm:$0xff]
  %58 = xla_tuple %v57
  %59 = xla_tuple %58
  %v60 = vxor.u32 %v57, 2147483648
  %61 = xla_tuple %v60
  %s62 = scalar_lea.vmem %s1, 88
  %63 = vst [vmem:[%s62] sm:$0xff] %v60
  %s64 = scalar_lea.vmem %s0, 32
  %v65 = vld [vmem:[%s64] sm:$0xff]
  %66 = xla_tuple %v65
  %67 = xla_tuple %66
  %v68 = vxor.u32 %v65, 2147483648
  %69 = xla_tuple %v68
  %s70 = scalar_lea.vmem %s1, 32
  %71 = vst [vmem:[%s70] sm:$0xff] %v68
  %s72 = scalar_lea.vmem %s0, 96
  %v73 = vld [vmem:[%s72] sm:$0xff]
  %74 = xla_tuple %v73
  %75 = xla_tuple %74
  %v76 = vxor.u32 %v73, 2147483648
  %77 = xla_tuple %v76
  %s78 = scalar_lea.vmem %s1, 96
  %79 = vst [vmem:[%s78] sm:$0xff] %v76
  %s80 = scalar_lea.vmem %s0, 40
  %v81 = vld [vmem:[%s80] sm:$0xff]
  %82 = xla_tuple %v81
  %83 = xla_tuple %82
  %v84 = vxor.u32 %v81, 2147483648
  %85 = xla_tuple %v84
  %s86 = scalar_lea.vmem %s1, 40
  %87 = vst [vmem:[%s86] sm:$0xff] %v84
  %s88 = scalar_lea.vmem %s0, 104
  %v89 = vld [vmem:[%s88] sm:$0xff]
  %90 = xla_tuple %v89
  %91 = xla_tuple %90
  %v92 = vxor.u32 %v89, 2147483648
  %93 = xla_tuple %v92
  %s94 = scalar_lea.vmem %s1, 104
  %95 = vst [vmem:[%s94] sm:$0xff] %v92
  %s96 = scalar_lea.vmem %s0, 48
  %v97 = vld [vmem:[%s96] sm:$0xff]
  %98 = xla_tuple %v97
  %99 = xla_tuple %98
  %v100 = vxor.u32 %v97, 2147483648
  %101 = xla_tuple %v100
  %s102 = scalar_lea.vmem %s1, 48
  %103 = vst [vmem:[%s102] sm:$0xff] %v100
  %s104 = scalar_lea.vmem %s0, 112
  %v105 = vld [vmem:[%s104] sm:$0xff]
  %106 = xla_tuple %v105
  %107 = xla_tuple %106
  %v108 = vxor.u32 %v105, 2147483648
  %109 = xla_tuple %v108
  %s110 = scalar_lea.vmem %s1, 112
  %111 = vst [vmem:[%s110] sm:$0xff] %v108
  %s112 = scalar_lea.vmem %s0, 56
  %v113 = vld [vmem:[%s112] sm:$0xff]
  %114 = xla_tuple %v113
  %115 = xla_tuple %114
  %v116 = vxor.u32 %v113, 2147483648
  %117 = xla_tuple %v116
  %s118 = scalar_lea.vmem %s1, 56
  %119 = vst [vmem:[%s118] sm:$0xff] %v116
  %s120 = scalar_lea.vmem %s0, 120
  %v121 = vld [vmem:[%s120] sm:$0xff]
  %122 = xla_tuple %v121
  %123 = xla_tuple %122
  %v124 = vxor.u32 %v121, 2147483648
  %125 = xla_tuple %v124
  %s126 = scalar_lea.vmem %s1, 120
  %127 = vst [vmem:[%s126] sm:$0xff] %v124

</llo_original>
